<compile_context>
chip_gen: v7x
topology: tpu7x:2x2x1
jax: 0.10.0
libtpu: 0.0.40
codegen_flags: <defaults>
</compile_context>

<pallas_src>
import jax
import jax.numpy as jnp
from jax import lax
from jax.experimental import pallas as pl
from jax.experimental.pallas import tpu as pltpu

LN_EPS = 1e-5
LEAKY_SLOPE = 0.01


def _encoder_kernel(x_ref, len_ref,
                    w_ih1_ref, w_hh1_ref, b_ih1_ref, b_hh1_ref,
                    w_ih2_ref, w_hh2_ref, b_ih2_ref, b_hh2_ref,
                    gamma_ref, beta_ref, w_lin_ref, b_lin_ref,
                    y_ref,
                    out1f_scr, out1b_scr, normed_scr):
    T = x_ref.shape[0]               # sequence length (time-major input)
    Bt = x_ref.shape[1]              # batch tile
    H = w_hh1_ref.shape[1]           # GRU hidden size (== in_size)
    len_col = len_ref[...]           # (Bt, 1) int32, broadcasts over hidden dim

    def gru_scan(x_read, w_ih, w_hh, b_ih, b_hh, reverse, out_ref):
        """One GRU direction over the sequence with packed-sequence length masking."""
        def step(s, h):
            t = (T - 1 - s) if reverse else s
            gx = jnp.dot(x_read(t), w_ih, preferred_element_type=jnp.float32) + b_ih
            gh = jnp.dot(h, w_hh, preferred_element_type=jnp.float32) + b_hh
            r = jax.nn.sigmoid(gx[:, 0:H] + gh[:, 0:H])
            z = jax.nn.sigmoid(gx[:, H:2 * H] + gh[:, H:2 * H])
            n = jnp.tanh(gx[:, 2 * H:3 * H] + r * gh[:, 2 * H:3 * H])
            h_new = (1.0 - z) * n + z * h
            valid = t < len_col                         # (Bt, 1) bool
            if out_ref is not None:                     # pad_packed_sequence -> zeros
                out_ref[t] = jnp.where(valid, h_new, 0.0)
            return jnp.where(valid, h_new, h)           # freeze h past the length
        return lax.fori_loop(0, T, step, jnp.zeros((Bt, H), jnp.float32))

    # ---- layer 1: bidirectional GRU over the raw input sequence ----------------
    read_x1 = lambda t: x_ref[t]
    h1_fwd = gru_scan(read_x1, w_ih1_ref[0], w_hh1_ref[0],
                      b_ih1_ref[0], b_hh1_ref[0], False, out1f_scr)
    h1_bwd = gru_scan(read_x1, w_ih1_ref[1], w_hh1_ref[1],
                      b_ih1_ref[1], b_hh1_ref[1], True, out1b_scr)

    # ---- LayerNorm(2H) on the (padded) layer-1 outputs, fully in VMEM ----------
    h1_seq = jnp.concatenate([out1f_scr[...], out1b_scr[...]], axis=-1)  # (T,Bt,2H)
    mu = jnp.mean(h1_seq, axis=-1, keepdims=True)
    var = jnp.mean(jnp.square(h1_seq - mu), axis=-1, keepdims=True)
    normed_scr[...] = ((h1_seq - mu) * lax.rsqrt(var + LN_EPS)
                       * gamma_ref[...] + beta_ref[...])

    # ---- layer 2: bidirectional GRU over the normed sequence -------------------
    read_x2 = lambda t: normed_scr[t]
    h2_fwd = gru_scan(read_x2, w_ih2_ref[0], w_hh2_ref[0],
                      b_ih2_ref[0], b_hh2_ref[0], False, None)
    h2_bwd = gru_scan(read_x2, w_ih2_ref[1], w_hh2_ref[1],
                      b_ih2_ref[1], b_hh2_ref[1], True, None)

    # ---- head: cat/permute/view == [h1_fwd, h2_fwd, h1_bwd, h2_bwd] -> Linear+LeakyReLU
    h_cat = jnp.concatenate([h1_fwd, h2_fwd, h1_bwd, h2_bwd], axis=-1)   # (Bt, 4H)
    y = jnp.dot(h_cat, w_lin_ref[...], preferred_element_type=jnp.float32) + b_lin_ref[...]
    y_ref[...] = jnp.where(y >= 0.0, y, LEAKY_SLOPE * y).astype(y_ref.dtype)


def private_encoder_forward(x, lengths, p):
    """x: (B, T, in_size) f32, lengths: (B,) int, params p (see init). Returns (B, out)."""
    B, T, D = x.shape
    H = p["w_hh1"].shape[1]
    out_size = p["w_lin"].shape[1]

    # Batch tiling (keeps per-step VMEM small for v7x's 64 MiB; "parallel" lets the
    # two v7x TensorCores split the batch).  Tiny B -> single full-batch block.
    if B % 8 == 0 and B >= 16:
        tile_b = min(B, 128)
        while B % tile_b:
            tile_b //= 2
    else:
        tile_b = B
    grid = (B // tile_b,)

    x_tm = jnp.transpose(x, (1, 0, 2))                    # time-major (T, B, D)
    len2d = lengths.astype(jnp.int32).reshape(B, 1)

    def _resident(shape):                                 # weights stay in VMEM every step
        nd = len(shape)
        return pl.BlockSpec(shape, lambda i, _n=nd: (0,) * _n)

    in_specs = [
        pl.BlockSpec((T, tile_b, D), lambda i: (0, i, 0)),   # x (batch-tiled)
        pl.BlockSpec((tile_b, 1), lambda i: (i, 0)),         # lengths
        _resident(p["w_ih1"].shape), _resident(p["w_hh1"].shape),
        _resident(p["b_ih1"].shape), _resident(p["b_hh1"].shape),
        _resident(p["w_ih2"].shape), _resident(p["w_hh2"].shape),
        _resident(p["b_ih2"].shape), _resident(p["b_hh2"].shape),
        _resident(p["gamma"].shape), _resident(p["beta"].shape),
        _resident(p["w_lin"].shape), _resident(p["b_lin"].shape),
    ]

    return pl.pallas_call(
        _encoder_kernel,
        out_shape=jax.ShapeDtypeStruct((B, out_size), jnp.float32),
        grid=grid,
        in_specs=in_specs,
        out_specs=pl.BlockSpec((tile_b, out_size), lambda i: (i, 0)),
        scratch_shapes=[
            pltpu.VMEM((T, tile_b, H), jnp.float32),      # layer-1 forward outputs
            pltpu.VMEM((T, tile_b, H), jnp.float32),      # layer-1 backward outputs
            pltpu.VMEM((T, tile_b, 2 * H), jnp.float32),  # LayerNorm-ed sequence
        ],
        compiler_params=pltpu.CompilerParams(
            dimension_semantics=("parallel",)),
    )(x_tm, len2d,
      p["w_ih1"], p["w_hh1"], p["b_ih1"], p["b_hh1"],
      p["w_ih2"], p["w_hh2"], p["b_ih2"], p["b_hh2"],
      p["gamma"], p["beta"], p["w_lin"], p["b_lin"])


# ----------------------------- pure-JAX reference --------------------------------
def _gru_dir_ref(x, lengths, w_ih, w_hh, b_ih, b_hh, reverse):
    B, T, _ = x.shape
    H = w_hh.shape[0]
    h = jnp.zeros((B, H), jnp.float32)
    outs = [None] * T
    order = range(T - 1, -1, -1) if reverse else range(T)
    for t in order:
        gx = x[:, t, :] @ w_ih + b_ih
        gh = h @ w_hh + b_hh
        r = jax.nn.sigmoid(gx[:, :H] + gh[:, :H])
        z = jax.nn.sigmoid(gx[:, H:2 * H] + gh[:, H:2 * H])
        n = jnp.tanh(gx[:, 2 * H:] + r * gh[:, 2 * H:])
        h_new = (1.0 - z) * n + z * h
        valid = (t < lengths)[:, None]
        outs[t] = jnp.where(valid, h_new, 0.0)
        h = jnp.where(valid, h_new, h)
    return jnp.stack(outs, axis=1), h


def private_encoder_reference(x, lengths, p):
    _, T, _ = x.shape
    o1f, h1f = _gru_dir_ref(x, lengths, p["w_ih1"][0], p["w_hh1"][0], p["b_ih1"][0], p["b_hh1"][0], False)
    o1b, h1b = _gru_dir_ref(x, lengths, p["w_ih1"][1], p["w_hh1"][1], p["b_ih1"][1], p["b_hh1"][1], True)
    h1 = jnp.concatenate([o1f, o1b], axis=-1)
    mu = h1.mean(-1, keepdims=True)
    var = ((h1 - mu) ** 2).mean(-1, keepdims=True)
    normed = (h1 - mu) / jnp.sqrt(var + LN_EPS) * p["gamma"] + p["beta"]
    _, h2f = _gru_dir_ref(normed, lengths, p["w_ih2"][0], p["w_hh2"][0], p["b_ih2"][0], p["b_hh2"][0], False)
    _, h2b = _gru_dir_ref(normed, lengths, p["w_ih2"][1], p["w_hh2"][1], p["b_ih2"][1], p["b_hh2"][1], True)
    h = jnp.concatenate([h1f, h2f, h1b, h2b], axis=-1)
    y = h @ p["w_lin"] + p["b_lin"]
    return jnp.where(y >= 0.0, y, LEAKY_SLOPE * y)


if __name__ == "__main__":
    key = jax.random.PRNGKey(0)
    B, T, in_size, out_size = 2, 8, 16, 32
    H = in_size
    ks = jax.random.split(key, 14)
    sc = 0.25
    params = {
        "w_ih1": sc * jax.random.normal(ks[0], (2, in_size, 3 * H), jnp.float32),
        "w_hh1": sc * jax.random.normal(ks[1], (2, H, 3 * H), jnp.float32),
        "b_ih1": sc * jax.random.normal(ks[2], (2, 1, 3 * H), jnp.float32),
        "b_hh1": sc * jax.random.normal(ks[3], (2, 1, 3 * H), jnp.float32),
        "w_ih2": sc * jax.random.normal(ks[4], (2, 2 * H, 3 * H), jnp.float32),
        "w_hh2": sc * jax.random.normal(ks[5], (2, H, 3 * H), jnp.float32),
        "b_ih2": sc * jax.random.normal(ks[6], (2, 1, 3 * H), jnp.float32),
        "b_hh2": sc * jax.random.normal(ks[7], (2, 1, 3 * H), jnp.float32),
        "gamma": 1.0 + 0.1 * jax.random.normal(ks[8], (1, 2 * H), jnp.float32),
        "beta": 0.1 * jax.random.normal(ks[9], (1, 2 * H), jnp.float32),
        "w_lin": sc * jax.random.normal(ks[10], (4 * H, out_size), jnp.float32),
        "b_lin": sc * jax.random.normal(ks[11], (1, out_size), jnp.float32),
    }
    x = jax.random.normal(ks[12], (B, T, in_size), jnp.float32)
    lengths = jnp.array([T, 5], dtype=jnp.int32)   # variable-length sequences

    with jax.default_matmul_precision("float32"):
        y = private_encoder_forward(x, lengths, params)
        y = jax.block_until_ready(y)
        y_ref = private_encoder_reference(x, lengths, params)

    assert y.shape == (B, out_size)
    max_err = float(jnp.max(jnp.abs(y - y_ref)))
    # Tolerance accounts for possible MXU f32 multi-pass vs XLA matmul differences.
    assert jnp.allclose(y, y_ref, atol=2e-2, rtol=2e-2), f"mismatch vs reference (max abs err {max_err})"
    print("KERNEL_OK")
</pallas_src>

<mosaic_0001>
module attributes {stable_mosaic.version = 11 : i64} {
  func.func @_encoder_kernel(%arg0: i32, %arg1: memref<8x2x16xf32, #tpu.memory_space<vmem>>, %arg2: memref<2x1xi32, #tpu.memory_space<vmem>>, %arg3: memref<2x16x48xf32, #tpu.memory_space<vmem>>, %arg4: memref<2x16x48xf32, #tpu.memory_space<vmem>>, %arg5: memref<2x1x48xf32, #tpu.memory_space<vmem>>, %arg6: memref<2x1x48xf32, #tpu.memory_space<vmem>>, %arg7: memref<2x32x48xf32, #tpu.memory_space<vmem>>, %arg8: memref<2x16x48xf32, #tpu.memory_space<vmem>>, %arg9: memref<2x1x48xf32, #tpu.memory_space<vmem>>, %arg10: memref<2x1x48xf32, #tpu.memory_space<vmem>>, %arg11: memref<1x32xf32, #tpu.memory_space<vmem>>, %arg12: memref<1x32xf32, #tpu.memory_space<vmem>>, %arg13: memref<64x32xf32, #tpu.memory_space<vmem>>, %arg14: memref<1x32xf32, #tpu.memory_space<vmem>>, %arg15: memref<2x32xf32, #tpu.memory_space<vmem>>, %arg16: memref<8x2x16xf32, #tpu.memory_space<vmem>>, %arg17: memref<8x2x16xf32, #tpu.memory_space<vmem>>, %arg18: memref<8x2x32xf32, #tpu.memory_space<vmem>>) attributes {dimension_semantics = [#tpu.dimension_semantics<parallel>], iteration_bounds = array<i64: 1>, scalar_prefetch = 0 : i64, scratch_operands = 3 : i64, tpu.core_type = #tpu.core_type<tc>, window_params = [{transform_indices = @transform_0, window_bounds = array<i64: 8, 2, 16>}, {transform_indices = @transform_1, window_bounds = array<i64: 2, 1>}, {pipeline_mode = #tpu.pipeline_mode<synchronous>, transform_indices = @transform_2, window_bounds = array<i64: 2, 16, 48>}, {pipeline_mode = #tpu.pipeline_mode<synchronous>, transform_indices = @transform_3, window_bounds = array<i64: 2, 16, 48>}, {pipeline_mode = #tpu.pipeline_mode<synchronous>, transform_indices = @transform_4, window_bounds = array<i64: 2, 1, 48>}, {pipeline_mode = #tpu.pipeline_mode<synchronous>, transform_indices = @transform_5, window_bounds = array<i64: 2, 1, 48>}, {pipeline_mode = #tpu.pipeline_mode<synchronous>, transform_indices = @transform_6, window_bounds = array<i64: 2, 32, 48>}, {pipeline_mode = #tpu.pipeline_mode<synchronous>, transform_indices = @transform_7, window_bounds = array<i64: 2, 16, 48>}, {pipeline_mode = #tpu.pipeline_mode<synchronous>, transform_indices = @transform_8, window_bounds = array<i64: 2, 1, 48>}, {pipeline_mode = #tpu.pipeline_mode<synchronous>, transform_indices = @transform_9, window_bounds = array<i64: 2, 1, 48>}, {pipeline_mode = #tpu.pipeline_mode<synchronous>, transform_indices = @transform_10, window_bounds = array<i64: 1, 32>}, {pipeline_mode = #tpu.pipeline_mode<synchronous>, transform_indices = @transform_11, window_bounds = array<i64: 1, 32>}, {pipeline_mode = #tpu.pipeline_mode<synchronous>, transform_indices = @transform_12, window_bounds = array<i64: 64, 32>}, {pipeline_mode = #tpu.pipeline_mode<synchronous>, transform_indices = @transform_13, window_bounds = array<i64: 1, 32>}, {transform_indices = @transform_14, window_bounds = array<i64: 2, 32>}]} {
    %c0 = arith.constant 0 : index
    %c0_0 = arith.constant 0 : index
    %0 = vector.load %arg2[%c0, %c0_0] : memref<2x1xi32, #tpu.memory_space<vmem>>, vector<2x1xi32>
    %c0_1 = arith.constant 0 : index
    %c0_2 = arith.constant 0 : index
    %c0_3 = arith.constant 0 : index
    %1 = vector.load %arg3[%c0_1, %c0_2, %c0_3] : memref<2x16x48xf32, #tpu.memory_space<vmem>>, vector<1x16x48xf32>
    %2 = vector.shape_cast %1 : vector<1x16x48xf32> to vector<16x48xf32>
    %c0_4 = arith.constant 0 : index
    %c0_5 = arith.constant 0 : index
    %c0_6 = arith.constant 0 : index
    %3 = vector.load %arg4[%c0_4, %c0_5, %c0_6] : memref<2x16x48xf32, #tpu.memory_space<vmem>>, vector<1x16x48xf32>
    %4 = vector.shape_cast %3 : vector<1x16x48xf32> to vector<16x48xf32>
    %c0_7 = arith.constant 0 : index
    %c0_8 = arith.constant 0 : index
    %c0_9 = arith.constant 0 : index
    %5 = vector.load %arg5[%c0_7, %c0_8, %c0_9] : memref<2x1x48xf32, #tpu.memory_space<vmem>>, vector<1x1x48xf32>
    %6 = vector.shape_cast %5 : vector<1x1x48xf32> to vector<1x48xf32>
    %c0_10 = arith.constant 0 : index
    %c0_11 = arith.constant 0 : index
    %c0_12 = arith.constant 0 : index
    %7 = vector.load %arg6[%c0_10, %c0_11, %c0_12] : memref<2x1x48xf32, #tpu.memory_space<vmem>>, vector<1x1x48xf32>
    %8 = vector.shape_cast %7 : vector<1x1x48xf32> to vector<1x48xf32>
    %cst = arith.constant 0.000000e+00 : f32
    %9 = vector.broadcast %cst : f32 to vector<2x16xf32>
    %c0_i32 = arith.constant 0 : i32
    %c8_i32 = arith.constant 8 : i32
    %10 = arith.addi %c0_i32, %c8_i32 : i32
    %c1_i32 = arith.constant 1 : i32
    %11 = scf.for %arg19 = %c0_i32 to %10 step %c1_i32 iter_args(%arg20 = %9) -> (vector<2x16xf32>)  : i32 {
      %87 = arith.index_cast %arg19 : i32 to index
      %c0_91 = arith.constant 0 : index
      %c0_92 = arith.constant 0 : index
      %88 = vector.load %arg1[%87, %c0_91, %c0_92] : memref<8x2x16xf32, #tpu.memory_space<vmem>>, vector<1x2x16xf32>
      %89 = vector.shape_cast %88 : vector<1x2x16xf32> to vector<2x16xf32>
      %cst_93 = arith.constant dense<0.000000e+00> : vector<2x48xf32>
      %90 = tpu.matmul %89, %2, %cst_93 {dimension_numbers = #tpu.dot_dimension_numbers<[1], [0], [0], [1], [0, 0, 1, 1], [], []>, precision = #tpu.contract_precision<fp32>} : vector<2x16xf32>, vector<16x48xf32>, vector<2x48xf32> -> vector<2x48xf32>
      %91 = vector.broadcast %6 : vector<1x48xf32> to vector<2x48xf32>
      %92 = arith.addf %90, %91 : vector<2x48xf32>
      %cst_94 = arith.constant dense<0.000000e+00> : vector<2x48xf32>
      %93 = tpu.matmul %arg20, %4, %cst_94 {dimension_numbers = #tpu.dot_dimension_numbers<[1], [0], [0], [1], [0, 0, 1, 1], [], []>, precision = #tpu.contract_precision<fp32>} : vector<2x16xf32>, vector<16x48xf32>, vector<2x48xf32> -> vector<2x48xf32>
      %94 = vector.broadcast %8 : vector<1x48xf32> to vector<2x48xf32>
      %95 = arith.addf %93, %94 : vector<2x48xf32>
      %96 = vector.extract_strided_slice %92 {offsets = [0, 0], sizes = [2, 16], strides = [1, 1]} : vector<2x48xf32> to vector<2x16xf32>
      %97 = vector.extract_strided_slice %95 {offsets = [0, 0], sizes = [2, 16], strides = [1, 1]} : vector<2x48xf32> to vector<2x16xf32>
      %98 = arith.addf %96, %97 : vector<2x16xf32>
      %99 = arith.negf %98 : vector<2x16xf32>
      %100 = math.exp %99 : vector<2x16xf32>
      %cst_95 = arith.constant 1.000000e+00 : f32
      %101 = vector.broadcast %cst_95 : f32 to vector<2x16xf32>
      %102 = arith.addf %101, %100 : vector<2x16xf32>
      %103 = arith.divf %101, %102 : vector<2x16xf32>
      %104 = vector.extract_strided_slice %92 {offsets = [0, 16], sizes = [2, 16], strides = [1, 1]} : vector<2x48xf32> to vector<2x16xf32>
      %105 = vector.extract_strided_slice %95 {offsets = [0, 16], sizes = [2, 16], strides = [1, 1]} : vector<2x48xf32> to vector<2x16xf32>
      %106 = arith.addf %104, %105 : vector<2x16xf32>
      %107 = arith.negf %106 : vector<2x16xf32>
      %108 = math.exp %107 : vector<2x16xf32>
      %cst_96 = arith.constant 1.000000e+00 : f32
      %109 = vector.broadcast %cst_96 : f32 to vector<2x16xf32>
      %110 = arith.addf %109, %108 : vector<2x16xf32>
      %111 = arith.divf %109, %110 : vector<2x16xf32>
      %112 = vector.extract_strided_slice %92 {offsets = [0, 32], sizes = [2, 16], strides = [1, 1]} : vector<2x48xf32> to vector<2x16xf32>
      %113 = vector.extract_strided_slice %95 {offsets = [0, 32], sizes = [2, 16], strides = [1, 1]} : vector<2x48xf32> to vector<2x16xf32>
      %114 = arith.mulf %103, %113 : vector<2x16xf32>
      %115 = arith.addf %112, %114 : vector<2x16xf32>
      %116 = math.tanh %115 : vector<2x16xf32>
      %cst_97 = arith.constant 1.000000e+00 : f32
      %117 = vector.broadcast %cst_97 : f32 to vector<2x16xf32>
      %118 = arith.subf %117, %111 : vector<2x16xf32>
      %119 = arith.mulf %118, %116 : vector<2x16xf32>
      %120 = arith.mulf %111, %arg20 : vector<2x16xf32>
      %121 = arith.addf %119, %120 : vector<2x16xf32>
      %122 = vector.broadcast %arg19 : i32 to vector<2x1xi32>
      %123 = arith.cmpi slt, %122, %0 : vector<2x1xi32>
      %cst_98 = arith.constant 0.000000e+00 : f32
      %124 = vector.shape_cast %123 : vector<2x1xi1> to vector<2x1xi1>
      %125 = vector.broadcast %124 : vector<2x1xi1> to vector<2x16xi1>
      %126 = vector.broadcast %cst_98 : f32 to vector<2x16xf32>
      %127 = arith.select %125, %121, %126 : vector<2x16xi1>, vector<2x16xf32>
      %128 = arith.index_cast %arg19 : i32 to index
      %c0_99 = arith.constant 0 : index
      %c0_100 = arith.constant 0 : index
      %129 = vector.load %arg16[%128, %c0_99, %c0_100] : memref<8x2x16xf32, #tpu.memory_space<vmem>>, vector<1x2x16xf32>
      %130 = vector.shape_cast %129 : vector<1x2x16xf32> to vector<2x16xf32>
      %131 = vector.shape_cast %127 : vector<2x16xf32> to vector<1x2x16xf32>
      tpu.vector_store %arg16[%128, %c0_99, %c0_100], %131 {strides = array<i32>} : memref<8x2x16xf32, #tpu.memory_space<vmem>>, vector<1x2x16xf32>,
      %132 = vector.shape_cast %123 : vector<2x1xi1> to vector<2x1xi1>
      %133 = vector.broadcast %132 : vector<2x1xi1> to vector<2x16xi1>
      %134 = arith.select %133, %121, %arg20 : vector<2x16xi1>, vector<2x16xf32>
      scf.yield %134 : vector<2x16xf32>
    }
    %c8_i32_13 = arith.constant 8 : i32
    %c1 = arith.constant 1 : index
    %c0_14 = arith.constant 0 : index
    %c0_15 = arith.constant 0 : index
    %12 = vector.load %arg3[%c1, %c0_14, %c0_15] : memref<2x16x48xf32, #tpu.memory_space<vmem>>, vector<1x16x48xf32>
    %13 = vector.shape_cast %12 : vector<1x16x48xf32> to vector<16x48xf32>
    %c1_16 = arith.constant 1 : index
    %c0_17 = arith.constant 0 : index
    %c0_18 = arith.constant 0 : index
    %14 = vector.load %arg4[%c1_16, %c0_17, %c0_18] : memref<2x16x48xf32, #tpu.memory_space<vmem>>, vector<1x16x48xf32>
    %15 = vector.shape_cast %14 : vector<1x16x48xf32> to vector<16x48xf32>
    %c1_19 = arith.constant 1 : index
    %c0_20 = arith.constant 0 : index
    %c0_21 = arith.constant 0 : index
    %16 = vector.load %arg5[%c1_19, %c0_20, %c0_21] : memref<2x1x48xf32, #tpu.memory_space<vmem>>, vector<1x1x48xf32>
    %17 = vector.shape_cast %16 : vector<1x1x48xf32> to vector<1x48xf32>
    %c1_22 = arith.constant 1 : index
    %c0_23 = arith.constant 0 : index
    %c0_24 = arith.constant 0 : index
    %18 = vector.load %arg6[%c1_22, %c0_23, %c0_24] : memref<2x1x48xf32, #tpu.memory_space<vmem>>, vector<1x1x48xf32>
    %19 = vector.shape_cast %18 : vector<1x1x48xf32> to vector<1x48xf32>
    %cst_25 = arith.constant 0.000000e+00 : f32
    %20 = vector.broadcast %cst_25 : f32 to vector<2x16xf32>
    %c0_i32_26 = arith.constant 0 : i32
    %c8_i32_27 = arith.constant 8 : i32
    %21 = arith.addi %c0_i32_26, %c8_i32_27 : i32
    %c1_i32_28 = arith.constant 1 : i32
    %22 = scf.for %arg19 = %c0_i32_26 to %21 step %c1_i32_28 iter_args(%arg20 = %20) -> (vector<2x16xf32>)  : i32 {
      %c7_i32 = arith.constant 7 : i32
      %87 = arith.subi %c7_i32, %arg19 : i32
      %88 = arith.index_cast %87 : i32 to index
      %c0_91 = arith.constant 0 : index
      %c0_92 = arith.constant 0 : index
      %89 = vector.load %arg1[%88, %c0_91, %c0_92] : memref<8x2x16xf32, #tpu.memory_space<vmem>>, vector<1x2x16xf32>
      %90 = vector.shape_cast %89 : vector<1x2x16xf32> to vector<2x16xf32>
      %cst_93 = arith.constant dense<0.000000e+00> : vector<2x48xf32>
      %91 = tpu.matmul %90, %13, %cst_93 {dimension_numbers = #tpu.dot_dimension_numbers<[1], [0], [0], [1], [0, 0, 1, 1], [], []>, precision = #tpu.contract_precision<fp32>} : vector<2x16xf32>, vector<16x48xf32>, vector<2x48xf32> -> vector<2x48xf32>
      %92 = vector.broadcast %17 : vector<1x48xf32> to vector<2x48xf32>
      %93 = arith.addf %91, %92 : vector<2x48xf32>
      %cst_94 = arith.constant dense<0.000000e+00> : vector<2x48xf32>
      %94 = tpu.matmul %arg20, %15, %cst_94 {dimension_numbers = #tpu.dot_dimension_numbers<[1], [0], [0], [1], [0, 0, 1, 1], [], []>, precision = #tpu.contract_precision<fp32>} : vector<2x16xf32>, vector<16x48xf32>, vector<2x48xf32> -> vector<2x48xf32>
      %95 = vector.broadcast %19 : vector<1x48xf32> to vector<2x48xf32>
      %96 = arith.addf %94, %95 : vector<2x48xf32>
      %97 = vector.extract_strided_slice %93 {offsets = [0, 0], sizes = [2, 16], strides = [1, 1]} : vector<2x48xf32> to vector<2x16xf32>
      %98 = vector.extract_strided_slice %96 {offsets = [0, 0], sizes = [2, 16], strides = [1, 1]} : vector<2x48xf32> to vector<2x16xf32>
      %99 = arith.addf %97, %98 : vector<2x16xf32>
      %100 = arith.negf %99 : vector<2x16xf32>
      %101 = math.exp %100 : vector<2x16xf32>
      %cst_95 = arith.constant 1.000000e+00 : f32
      %102 = vector.broadcast %cst_95 : f32 to vector<2x16xf32>
      %103 = arith.addf %102, %101 : vector<2x16xf32>
      %104 = arith.divf %102, %103 : vector<2x16xf32>
      %105 = vector.extract_strided_slice %93 {offsets = [0, 16], sizes = [2, 16], strides = [1, 1]} : vector<2x48xf32> to vector<2x16xf32>
      %106 = vector.extract_strided_slice %96 {offsets = [0, 16], sizes = [2, 16], strides = [1, 1]} : vector<2x48xf32> to vector<2x16xf32>
      %107 = arith.addf %105, %106 : vector<2x16xf32>
      %108 = arith.negf %107 : vector<2x16xf32>
      %109 = math.exp %108 : vector<2x16xf32>
      %cst_96 = arith.constant 1.000000e+00 : f32
      %110 = vector.broadcast %cst_96 : f32 to vector<2x16xf32>
      %111 = arith.addf %110, %109 : vector<2x16xf32>
      %112 = arith.divf %110, %111 : vector<2x16xf32>
      %113 = vector.extract_strided_slice %93 {offsets = [0, 32], sizes = [2, 16], strides = [1, 1]} : vector<2x48xf32> to vector<2x16xf32>
      %114 = vector.extract_strided_slice %96 {offsets = [0, 32], sizes = [2, 16], strides = [1, 1]} : vector<2x48xf32> to vector<2x16xf32>
      %115 = arith.mulf %104, %114 : vector<2x16xf32>
      %116 = arith.addf %113, %115 : vector<2x16xf32>
      %117 = math.tanh %116 : vector<2x16xf32>
      %cst_97 = arith.constant 1.000000e+00 : f32
      %118 = vector.broadcast %cst_97 : f32 to vector<2x16xf32>
      %119 = arith.subf %118, %112 : vector<2x16xf32>
      %120 = arith.mulf %119, %117 : vector<2x16xf32>
      %121 = arith.mulf %112, %arg20 : vector<2x16xf32>
      %122 = arith.addf %120, %121 : vector<2x16xf32>
      %123 = vector.broadcast %87 : i32 to vector<2x1xi32>
      %124 = arith.cmpi slt, %123, %0 : vector<2x1xi32>
      %cst_98 = arith.constant 0.000000e+00 : f32
      %125 = vector.shape_cast %124 : vector<2x1xi1> to vector<2x1xi1>
      %126 = vector.broadcast %125 : vector<2x1xi1> to vector<2x16xi1>
      %127 = vector.broadcast %cst_98 : f32 to vector<2x16xf32>
      %128 = arith.select %126, %122, %127 : vector<2x16xi1>, vector<2x16xf32>
      %129 = arith.index_cast %87 : i32 to index
      %c0_99 = arith.constant 0 : index
      %c0_100 = arith.constant 0 : index
      %130 = vector.load %arg17[%129, %c0_99, %c0_100] : memref<8x2x16xf32, #tpu.memory_space<vmem>>, vector<1x2x16xf32>
      %131 = vector.shape_cast %130 : vector<1x2x16xf32> to vector<2x16xf32>
      %132 = vector.shape_cast %128 : vector<2x16xf32> to vector<1x2x16xf32>
      tpu.vector_store %arg17[%129, %c0_99, %c0_100], %132 {strides = array<i32>} : memref<8x2x16xf32, #tpu.memory_space<vmem>>, vector<1x2x16xf32>,
      %133 = vector.shape_cast %124 : vector<2x1xi1> to vector<2x1xi1>
      %134 = vector.broadcast %133 : vector<2x1xi1> to vector<2x16xi1>
      %135 = arith.select %134, %122, %arg20 : vector<2x16xi1>, vector<2x16xf32>
      scf.yield %135 : vector<2x16xf32>
    }
    %c8_i32_29 = arith.constant 8 : i32
    %c0_30 = arith.constant 0 : index
    %c0_31 = arith.constant 0 : index
    %c0_32 = arith.constant 0 : index
    %23 = vector.load %arg16[%c0_30, %c0_31, %c0_32] : memref<8x2x16xf32, #tpu.memory_space<vmem>>, vector<8x2x16xf32>
    %c0_33 = arith.constant 0 : index
    %c0_34 = arith.constant 0 : index
    %c0_35 = arith.constant 0 : index
    %24 = vector.load %arg17[%c0_33, %c0_34, %c0_35] : memref<8x2x16xf32, #tpu.memory_space<vmem>>, vector<8x2x16xf32>
    %25 = tpu.concatenate %23, %24 in 2 : vector<8x2x16xf32>, vector<8x2x16xf32> -> vector<8x2x32xf32>
    %cst_36 = arith.constant dense<0.000000e+00> : vector<8x2xf32>
    %26 = vector.multi_reduction <add>, %25, %cst_36 [2] : vector<8x2x32xf32> to vector<8x2xf32>
    %27 = vector.shape_cast %26 : vector<8x2xf32> to vector<8x2x1xf32>
    %cst_37 = arith.constant 3.200000e+01 : f32
    %28 = vector.broadcast %cst_37 : f32 to vector<8x2x1xf32>
    %29 = arith.divf %27, %28 : vector<8x2x1xf32>
    %30 = vector.broadcast %29 : vector<8x2x1xf32> to vector<8x2x32xf32>
    %31 = arith.subf %25, %30 : vector<8x2x32xf32>
    %32 = arith.mulf %31, %31 : vector<8x2x32xf32>
    %cst_38 = arith.constant dense<0.000000e+00> : vector<8x2xf32>
    %33 = vector.multi_reduction <add>, %32, %cst_38 [2] : vector<8x2x32xf32> to vector<8x2xf32>
    %34 = vector.shape_cast %33 : vector<8x2xf32> to vector<8x2x1xf32>
    %cst_39 = arith.constant 3.200000e+01 : f32
    %35 = vector.broadcast %cst_39 : f32 to vector<8x2x1xf32>
    %36 = arith.divf %34, %35 : vector<8x2x1xf32>
    %37 = vector.broadcast %29 : vector<8x2x1xf32> to vector<8x2x32xf32>
    %38 = arith.subf %25, %37 : vector<8x2x32xf32>
    %cst_40 = arith.constant 9.99999974E-6 : f32
    %39 = vector.broadcast %cst_40 : f32 to vector<8x2x1xf32>
    %40 = arith.addf %36, %39 : vector<8x2x1xf32>
    %41 = math.rsqrt %40 : vector<8x2x1xf32>
    %42 = vector.broadcast %41 : vector<8x2x1xf32> to vector<8x2x32xf32>
    %43 = arith.mulf %38, %42 : vector<8x2x32xf32>
    %c0_41 = arith.constant 0 : index
    %c0_42 = arith.constant 0 : index
    %44 = vector.load %arg11[%c0_41, %c0_42] : memref<1x32xf32, #tpu.memory_space<vmem>>, vector<1x32xf32>
    %45 = vector.shape_cast %44 : vector<1x32xf32> to vector<1x1x32xf32>
    %46 = vector.broadcast %45 : vector<1x1x32xf32> to vector<8x2x32xf32>
    %47 = arith.mulf %43, %46 : vector<8x2x32xf32>
    %c0_43 = arith.constant 0 : index
    %c0_44 = arith.constant 0 : index
    %48 = vector.load %arg12[%c0_43, %c0_44] : memref<1x32xf32, #tpu.memory_space<vmem>>, vector<1x32xf32>
    %49 = vector.shape_cast %48 : vector<1x32xf32> to vector<1x1x32xf32>
    %50 = vector.broadcast %49 : vector<1x1x32xf32> to vector<8x2x32xf32>
    %51 = arith.addf %47, %50 : vector<8x2x32xf32>
    %c0_45 = arith.constant 0 : index
    %c0_46 = arith.constant 0 : index
    %c0_47 = arith.constant 0 : index
    %52 = vector.load %arg18[%c0_45, %c0_46, %c0_47] : memref<8x2x32xf32, #tpu.memory_space<vmem>>, vector<8x2x32xf32>
    tpu.vector_store %arg18[%c0_45, %c0_46, %c0_47], %51 {strides = array<i32>} : memref<8x2x32xf32, #tpu.memory_space<vmem>>, vector<8x2x32xf32>,
    %c0_48 = arith.constant 0 : index
    %c0_49 = arith.constant 0 : index
    %c0_50 = arith.constant 0 : index
    %53 = vector.load %arg7[%c0_48, %c0_49, %c0_50] : memref<2x32x48xf32, #tpu.memory_space<vmem>>, vector<1x32x48xf32>
    %54 = vector.shape_cast %53 : vector<1x32x48xf32> to vector<32x48xf32>
    %c0_51 = arith.constant 0 : index
    %c0_52 = arith.constant 0 : index
    %c0_53 = arith.constant 0 : index
    %55 = vector.load %arg8[%c0_51, %c0_52, %c0_53] : memref<2x16x48xf32, #tpu.memory_space<vmem>>, vector<1x16x48xf32>
    %56 = vector.shape_cast %55 : vector<1x16x48xf32> to vector<16x48xf32>
    %c0_54 = arith.constant 0 : index
    %c0_55 = arith.constant 0 : index
    %c0_56 = arith.constant 0 : index
    %57 = vector.load %arg9[%c0_54, %c0_55, %c0_56] : memref<2x1x48xf32, #tpu.memory_space<vmem>>, vector<1x1x48xf32>
    %58 = vector.shape_cast %57 : vector<1x1x48xf32> to vector<1x48xf32>
    %c0_57 = arith.constant 0 : index
    %c0_58 = arith.constant 0 : index
    %c0_59 = arith.constant 0 : index
    %59 = vector.load %arg10[%c0_57, %c0_58, %c0_59] : memref<2x1x48xf32, #tpu.memory_space<vmem>>, vector<1x1x48xf32>
    %60 = vector.shape_cast %59 : vector<1x1x48xf32> to vector<1x48xf32>
    %cst_60 = arith.constant 0.000000e+00 : f32
    %61 = vector.broadcast %cst_60 : f32 to vector<2x16xf32>
    %c0_i32_61 = arith.constant 0 : i32
    %c8_i32_62 = arith.constant 8 : i32
    %62 = arith.addi %c0_i32_61, %c8_i32_62 : i32
    %c1_i32_63 = arith.constant 1 : i32
    %63 = scf.for %arg19 = %c0_i32_61 to %62 step %c1_i32_63 iter_args(%arg20 = %61) -> (vector<2x16xf32>)  : i32 {
      %87 = arith.index_cast %arg19 : i32 to index
      %c0_91 = arith.constant 0 : index
      %c0_92 = arith.constant 0 : index
      %88 = vector.load %arg18[%87, %c0_91, %c0_92] : memref<8x2x32xf32, #tpu.memory_space<vmem>>, vector<1x2x32xf32>
      %89 = vector.shape_cast %88 : vector<1x2x32xf32> to vector<2x32xf32>
      %cst_93 = arith.constant dense<0.000000e+00> : vector<2x48xf32>
      %90 = tpu.matmul %89, %54, %cst_93 {dimension_numbers = #tpu.dot_dimension_numbers<[1], [0], [0], [1], [0, 0, 1, 1], [], []>, precision = #tpu.contract_precision<fp32>} : vector<2x32xf32>, vector<32x48xf32>, vector<2x48xf32> -> vector<2x48xf32>
      %91 = vector.broadcast %58 : vector<1x48xf32> to vector<2x48xf32>
      %92 = arith.addf %90, %91 : vector<2x48xf32>
      %cst_94 = arith.constant dense<0.000000e+00> : vector<2x48xf32>
      %93 = tpu.matmul %arg20, %56, %cst_94 {dimension_numbers = #tpu.dot_dimension_numbers<[1], [0], [0], [1], [0, 0, 1, 1], [], []>, precision = #tpu.contract_precision<fp32>} : vector<2x16xf32>, vector<16x48xf32>, vector<2x48xf32> -> vector<2x48xf32>
      %94 = vector.broadcast %60 : vector<1x48xf32> to vector<2x48xf32>
      %95 = arith.addf %93, %94 : vector<2x48xf32>
      %96 = vector.extract_strided_slice %92 {offsets = [0, 0], sizes = [2, 16], strides = [1, 1]} : vector<2x48xf32> to vector<2x16xf32>
      %97 = vector.extract_strided_slice %95 {offsets = [0, 0], sizes = [2, 16], strides = [1, 1]} : vector<2x48xf32> to vector<2x16xf32>
      %98 = arith.addf %96, %97 : vector<2x16xf32>
      %99 = arith.negf %98 : vector<2x16xf32>
      %100 = math.exp %99 : vector<2x16xf32>
      %cst_95 = arith.constant 1.000000e+00 : f32
      %101 = vector.broadcast %cst_95 : f32 to vector<2x16xf32>
      %102 = arith.addf %101, %100 : vector<2x16xf32>
      %103 = arith.divf %101, %102 : vector<2x16xf32>
      %104 = vector.extract_strided_slice %92 {offsets = [0, 16], sizes = [2, 16], strides = [1, 1]} : vector<2x48xf32> to vector<2x16xf32>
      %105 = vector.extract_strided_slice %95 {offsets = [0, 16], sizes = [2, 16], strides = [1, 1]} : vector<2x48xf32> to vector<2x16xf32>
      %106 = arith.addf %104, %105 : vector<2x16xf32>
      %107 = arith.negf %106 : vector<2x16xf32>
      %108 = math.exp %107 : vector<2x16xf32>
      %cst_96 = arith.constant 1.000000e+00 : f32
      %109 = vector.broadcast %cst_96 : f32 to vector<2x16xf32>
      %110 = arith.addf %109, %108 : vector<2x16xf32>
      %111 = arith.divf %109, %110 : vector<2x16xf32>
      %112 = vector.extract_strided_slice %92 {offsets = [0, 32], sizes = [2, 16], strides = [1, 1]} : vector<2x48xf32> to vector<2x16xf32>
      %113 = vector.extract_strided_slice %95 {offsets = [0, 32], sizes = [2, 16], strides = [1, 1]} : vector<2x48xf32> to vector<2x16xf32>
      %114 = arith.mulf %103, %113 : vector<2x16xf32>
      %115 = arith.addf %112, %114 : vector<2x16xf32>
      %116 = math.tanh %115 : vector<2x16xf32>
      %cst_97 = arith.constant 1.000000e+00 : f32
      %117 = vector.broadcast %cst_97 : f32 to vector<2x16xf32>
      %118 = arith.subf %117, %111 : vector<2x16xf32>
      %119 = arith.mulf %118, %116 : vector<2x16xf32>
      %120 = arith.mulf %111, %arg20 : vector<2x16xf32>
      %121 = arith.addf %119, %120 : vector<2x16xf32>
      %122 = vector.broadcast %arg19 : i32 to vector<2x1xi32>
      %123 = arith.cmpi slt, %122, %0 : vector<2x1xi32>
      %124 = vector.shape_cast %123 : vector<2x1xi1> to vector<2x1xi1>
      %125 = vector.broadcast %124 : vector<2x1xi1> to vector<2x16xi1>
      %126 = arith.select %125, %121, %arg20 : vector<2x16xi1>, vector<2x16xf32>
      scf.yield %126 : vector<2x16xf32>
    }
    %c8_i32_64 = arith.constant 8 : i32
    %c1_65 = arith.constant 1 : index
    %c0_66 = arith.constant 0 : index
    %c0_67 = arith.constant 0 : index
    %64 = vector.load %arg7[%c1_65, %c0_66, %c0_67] : memref<2x32x48xf32, #tpu.memory_space<vmem>>, vector<1x32x48xf32>
    %65 = vector.shape_cast %64 : vector<1x32x48xf32> to vector<32x48xf32>
    %c1_68 = arith.constant 1 : index
    %c0_69 = arith.constant 0 : index
    %c0_70 = arith.constant 0 : index
    %66 = vector.load %arg8[%c1_68, %c0_69, %c0_70] : memref<2x16x48xf32, #tpu.memory_space<vmem>>, vector<1x16x48xf32>
    %67 = vector.shape_cast %66 : vector<1x16x48xf32> to vector<16x48xf32>
    %c1_71 = arith.constant 1 : index
    %c0_72 = arith.constant 0 : index
    %c0_73 = arith.constant 0 : index
    %68 = vector.load %arg9[%c1_71, %c0_72, %c0_73] : memref<2x1x48xf32, #tpu.memory_space<vmem>>, vector<1x1x48xf32>
    %69 = vector.shape_cast %68 : vector<1x1x48xf32> to vector<1x48xf32>
    %c1_74 = arith.constant 1 : index
    %c0_75 = arith.constant 0 : index
    %c0_76 = arith.constant 0 : index
    %70 = vector.load %arg10[%c1_74, %c0_75, %c0_76] : memref<2x1x48xf32, #tpu.memory_space<vmem>>, vector<1x1x48xf32>
    %71 = vector.shape_cast %70 : vector<1x1x48xf32> to vector<1x48xf32>
    %cst_77 = arith.constant 0.000000e+00 : f32
    %72 = vector.broadcast %cst_77 : f32 to vector<2x16xf32>
    %c0_i32_78 = arith.constant 0 : i32
    %c8_i32_79 = arith.constant 8 : i32
    %73 = arith.addi %c0_i32_78, %c8_i32_79 : i32
    %c1_i32_80 = arith.constant 1 : i32
    %74 = scf.for %arg19 = %c0_i32_78 to %73 step %c1_i32_80 iter_args(%arg20 = %72) -> (vector<2x16xf32>)  : i32 {
      %c7_i32 = arith.constant 7 : i32
      %87 = arith.subi %c7_i32, %arg19 : i32
      %88 = arith.index_cast %87 : i32 to index
      %c0_91 = arith.constant 0 : index
      %c0_92 = arith.constant 0 : index
      %89 = vector.load %arg18[%88, %c0_91, %c0_92] : memref<8x2x32xf32, #tpu.memory_space<vmem>>, vector<1x2x32xf32>
      %90 = vector.shape_cast %89 : vector<1x2x32xf32> to vector<2x32xf32>
      %cst_93 = arith.constant dense<0.000000e+00> : vector<2x48xf32>
      %91 = tpu.matmul %90, %65, %cst_93 {dimension_numbers = #tpu.dot_dimension_numbers<[1], [0], [0], [1], [0, 0, 1, 1], [], []>, precision = #tpu.contract_precision<fp32>} : vector<2x32xf32>, vector<32x48xf32>, vector<2x48xf32> -> vector<2x48xf32>
      %92 = vector.broadcast %69 : vector<1x48xf32> to vector<2x48xf32>
      %93 = arith.addf %91, %92 : vector<2x48xf32>
      %cst_94 = arith.constant dense<0.000000e+00> : vector<2x48xf32>
      %94 = tpu.matmul %arg20, %67, %cst_94 {dimension_numbers = #tpu.dot_dimension_numbers<[1], [0], [0], [1], [0, 0, 1, 1], [], []>, precision = #tpu.contract_precision<fp32>} : vector<2x16xf32>, vector<16x48xf32>, vector<2x48xf32> -> vector<2x48xf32>
      %95 = vector.broadcast %71 : vector<1x48xf32> to vector<2x48xf32>
      %96 = arith.addf %94, %95 : vector<2x48xf32>
      %97 = vector.extract_strided_slice %93 {offsets = [0, 0], sizes = [2, 16], strides = [1, 1]} : vector<2x48xf32> to vector<2x16xf32>
      %98 = vector.extract_strided_slice %96 {offsets = [0, 0], sizes = [2, 16], strides = [1, 1]} : vector<2x48xf32> to vector<2x16xf32>
      %99 = arith.addf %97, %98 : vector<2x16xf32>
      %100 = arith.negf %99 : vector<2x16xf32>
      %101 = math.exp %100 : vector<2x16xf32>
      %cst_95 = arith.constant 1.000000e+00 : f32
      %102 = vector.broadcast %cst_95 : f32 to vector<2x16xf32>
      %103 = arith.addf %102, %101 : vector<2x16xf32>
      %104 = arith.divf %102, %103 : vector<2x16xf32>
      %105 = vector.extract_strided_slice %93 {offsets = [0, 16], sizes = [2, 16], strides = [1, 1]} : vector<2x48xf32> to vector<2x16xf32>
      %106 = vector.extract_strided_slice %96 {offsets = [0, 16], sizes = [2, 16], strides = [1, 1]} : vector<2x48xf32> to vector<2x16xf32>
      %107 = arith.addf %105, %106 : vector<2x16xf32>
      %108 = arith.negf %107 : vector<2x16xf32>
      %109 = math.exp %108 : vector<2x16xf32>
      %cst_96 = arith.constant 1.000000e+00 : f32
      %110 = vector.broadcast %cst_96 : f32 to vector<2x16xf32>
      %111 = arith.addf %110, %109 : vector<2x16xf32>
      %112 = arith.divf %110, %111 : vector<2x16xf32>
      %113 = vector.extract_strided_slice %93 {offsets = [0, 32], sizes = [2, 16], strides = [1, 1]} : vector<2x48xf32> to vector<2x16xf32>
      %114 = vector.extract_strided_slice %96 {offsets = [0, 32], sizes = [2, 16], strides = [1, 1]} : vector<2x48xf32> to vector<2x16xf32>
      %115 = arith.mulf %104, %114 : vector<2x16xf32>
      %116 = arith.addf %113, %115 : vector<2x16xf32>
      %117 = math.tanh %116 : vector<2x16xf32>
      %cst_97 = arith.constant 1.000000e+00 : f32
      %118 = vector.broadcast %cst_97 : f32 to vector<2x16xf32>
      %119 = arith.subf %118, %112 : vector<2x16xf32>
      %120 = arith.mulf %119, %117 : vector<2x16xf32>
      %121 = arith.mulf %112, %arg20 : vector<2x16xf32>
      %122 = arith.addf %120, %121 : vector<2x16xf32>
      %123 = vector.broadcast %87 : i32 to vector<2x1xi32>
      %124 = arith.cmpi slt, %123, %0 : vector<2x1xi32>
      %125 = vector.shape_cast %124 : vector<2x1xi1> to vector<2x1xi1>
      %126 = vector.broadcast %125 : vector<2x1xi1> to vector<2x16xi1>
      %127 = arith.select %126, %122, %arg20 : vector<2x16xi1>, vector<2x16xf32>
      scf.yield %127 : vector<2x16xf32>
    }
    %c8_i32_81 = arith.constant 8 : i32
    %75 = tpu.concatenate %11, %63, %22, %74 in 1 : vector<2x16xf32>, vector<2x16xf32>, vector<2x16xf32>, vector<2x16xf32> -> vector<2x64xf32>
    %c0_82 = arith.constant 0 : index
    %c0_83 = arith.constant 0 : index
    %76 = vector.load %arg13[%c0_82, %c0_83] : memref<64x32xf32, #tpu.memory_space<vmem>>, vector<64x32xf32>
    %cst_84 = arith.constant dense<0.000000e+00> : vector<2x32xf32>
    %77 = tpu.matmul %75, %76, %cst_84 {dimension_numbers = #tpu.dot_dimension_numbers<[1], [0], [0], [1], [0, 0, 1, 1], [], []>, precision = #tpu.contract_precision<fp32>} : vector<2x64xf32>, vector<64x32xf32>, vector<2x32xf32> -> vector<2x32xf32>
    %c0_85 = arith.constant 0 : index
    %c0_86 = arith.constant 0 : index
    %78 = vector.load %arg14[%c0_85, %c0_86] : memref<1x32xf32, #tpu.memory_space<vmem>>, vector<1x32xf32>
    %79 = vector.broadcast %78 : vector<1x32xf32> to vector<2x32xf32>
    %80 = arith.addf %77, %79 : vector<2x32xf32>
    %cst_87 = arith.constant 0.000000e+00 : f32
    %81 = vector.broadcast %cst_87 : f32 to vector<2x32xf32>
    %82 = arith.cmpf oge, %80, %81 : vector<2x32xf32>
    %cst_88 = arith.constant 0.00999999977 : f32
    %83 = vector.broadcast %cst_88 : f32 to vector<2x32xf32>
    %84 = arith.mulf %83, %80 : vector<2x32xf32>
    %85 = arith.select %82, %80, %84 : vector<2x32xi1>, vector<2x32xf32>
    %c0_89 = arith.constant 0 : index
    %c0_90 = arith.constant 0 : index
    %86 = vector.load %arg15[%c0_89, %c0_90] : memref<2x32xf32, #tpu.memory_space<vmem>>, vector<2x32xf32>
    tpu.vector_store %arg15[%c0_89, %c0_90], %85 {strides = array<i32>} : memref<2x32xf32, #tpu.memory_space<vmem>>, vector<2x32xf32>,
    return
  }
  func.func @transform_0(%arg0: i32) -> (i32, i32, i32) {
    %c0_i32 = arith.constant 0 : i32
    %c0_i32_0 = arith.constant 0 : i32
    %c0_i32_1 = arith.constant 0 : i32
    return %c0_i32, %arg0, %c0_i32_0 : i32, i32, i32
  }
  func.func @transform_1(%arg0: i32) -> (i32, i32) {
    %c0_i32 = arith.constant 0 : i32
    %c0_i32_0 = arith.constant 0 : i32
    return %arg0, %c0_i32 : i32, i32
  }
  func.func @transform_2(%arg0: i32) -> (i32, i32, i32) {
    %c0_i32 = arith.constant 0 : i32
    %c0_i32_0 = arith.constant 0 : i32
    %c0_i32_1 = arith.constant 0 : i32
    %c0_i32_2 = arith.constant 0 : i32
    return %c0_i32, %c0_i32_0, %c0_i32_1 : i32, i32, i32
  }
  func.func @transform_3(%arg0: i32) -> (i32, i32, i32) {
    %c0_i32 = arith.constant 0 : i32
    %c0_i32_0 = arith.constant 0 : i32
    %c0_i32_1 = arith.constant 0 : i32
    %c0_i32_2 = arith.constant 0 : i32
    return %c0_i32, %c0_i32_0, %c0_i32_1 : i32, i32, i32
  }
  func.func @transform_4(%arg0: i32) -> (i32, i32, i32) {
    %c0_i32 = arith.constant 0 : i32
    %c0_i32_0 = arith.constant 0 : i32
    %c0_i32_1 = arith.constant 0 : i32
    %c0_i32_2 = arith.constant 0 : i32
    return %c0_i32, %c0_i32_0, %c0_i32_1 : i32, i32, i32
  }
  func.func @transform_5(%arg0: i32) -> (i32, i32, i32) {
    %c0_i32 = arith.constant 0 : i32
    %c0_i32_0 = arith.constant 0 : i32
    %c0_i32_1 = arith.constant 0 : i32
    %c0_i32_2 = arith.constant 0 : i32
    return %c0_i32, %c0_i32_0, %c0_i32_1 : i32, i32, i32
  }
  func.func @transform_6(%arg0: i32) -> (i32, i32, i32) {
    %c0_i32 = arith.constant 0 : i32
    %c0_i32_0 = arith.constant 0 : i32
    %c0_i32_1 = arith.constant 0 : i32
    %c0_i32_2 = arith.constant 0 : i32
    return %c0_i32, %c0_i32_0, %c0_i32_1 : i32, i32, i32
  }
  func.func @transform_7(%arg0: i32) -> (i32, i32, i32) {
    %c0_i32 = arith.constant 0 : i32
    %c0_i32_0 = arith.constant 0 : i32
    %c0_i32_1 = arith.constant 0 : i32
    %c0_i32_2 = arith.constant 0 : i32
    return %c0_i32, %c0_i32_0, %c0_i32_1 : i32, i32, i32
  }
  func.func @transform_8(%arg0: i32) -> (i32, i32, i32) {
    %c0_i32 = arith.constant 0 : i32
    %c0_i32_0 = arith.constant 0 : i32
    %c0_i32_1 = arith.constant 0 : i32
    %c0_i32_2 = arith.constant 0 : i32
    return %c0_i32, %c0_i32_0, %c0_i32_1 : i32, i32, i32
  }
  func.func @transform_9(%arg0: i32) -> (i32, i32, i32) {
    %c0_i32 = arith.constant 0 : i32
    %c0_i32_0 = arith.constant 0 : i32
    %c0_i32_1 = arith.constant 0 : i32
    %c0_i32_2 = arith.constant 0 : i32
    return %c0_i32, %c0_i32_0, %c0_i32_1 : i32, i32, i32
  }
  func.func @transform_10(%arg0: i32) -> (i32, i32) {
    %c0_i32 = arith.constant 0 : i32
    %c0_i32_0 = arith.constant 0 : i32
    %c0_i32_1 = arith.constant 0 : i32
    return %c0_i32, %c0_i32_0 : i32, i32
  }
  func.func @transform_11(%arg0: i32) -> (i32, i32) {
    %c0_i32 = arith.constant 0 : i32
    %c0_i32_0 = arith.constant 0 : i32
    %c0_i32_1 = arith.constant 0 : i32
    return %c0_i32, %c0_i32_0 : i32, i32
  }
  func.func @transform_12(%arg0: i32) -> (i32, i32) {
    %c0_i32 = arith.constant 0 : i32
    %c0_i32_0 = arith.constant 0 : i32
    %c0_i32_1 = arith.constant 0 : i32
    return %c0_i32, %c0_i32_0 : i32, i32
  }
  func.func @transform_13(%arg0: i32) -> (i32, i32) {
    %c0_i32 = arith.constant 0 : i32
    %c0_i32_0 = arith.constant 0 : i32
    %c0_i32_1 = arith.constant 0 : i32
    return %c0_i32, %c0_i32_0 : i32, i32
  }
  func.func @transform_14(%arg0: i32) -> (i32, i32) {
    %c0_i32 = arith.constant 0 : i32
    %c0_i32_0 = arith.constant 0 : i32
    return %arg0, %c0_i32 : i32, i32
  }
}

</mosaic_0001>

<llo_original>
// kernel: tpu_custom_call.1
$region0: #{tpu_custom_call.1}
  #allocation0 [shape = 'u32[]', space=smem, size = 0x4, offset = 0x4, fixed_abs, tag = 'smem constant byte address 0x4 - core index']
  #allocation1 [shape = 'u32[144,128]{1,0:T(1,128)}', space=vmem, size = 0x12000, scoped, tag = 'internal scratch']
  #allocation2 [shape = 'f32[8,2,16]{2,1,0:T(2,128)}', space=vmem, size = 0x2000, scoped, tag = 'scratch operand']
  #allocation3 [shape = 'f32[8,2,16]{2,1,0:T(2,128)}', space=vmem, size = 0x2000, scoped, tag = 'scratch operand']
  #allocation4 [shape = 'f32[8,2,32]{2,1,0:T(2,128)}', space=vmem, size = 0x2000, scoped, tag = 'scratch operand']
  %s0 = inlined_call_operand.vmem [shape: f32[8,2,16], index: 0, kind: input, shape index: {}]
  %s1 = inlined_call_operand.vmem [shape: s32[2,1], index: 1, kind: input, shape index: {}]
  %s2 = inlined_call_operand.vmem [shape: f32[2,16,48], index: 2, kind: input, shape index: {}]
  %s3 = inlined_call_operand.hbm [shape: f32[2,16,48], index: 3, kind: input, shape index: {}]
  %s4 = inlined_call_operand.hbm [shape: f32[2,1,48], index: 4, kind: input, shape index: {}]
  %s5 = inlined_call_operand.hbm [shape: f32[2,1,48], index: 5, kind: input, shape index: {}]
  %s6 = inlined_call_operand.vmem [shape: f32[2,32,48], index: 6, kind: input, shape index: {}]
  %s7 = inlined_call_operand.hbm [shape: f32[2,16,48], index: 7, kind: input, shape index: {}]
  %s8 = inlined_call_operand.hbm [shape: f32[2,1,48], index: 8, kind: input, shape index: {}]
  %s9 = inlined_call_operand.hbm [shape: f32[2,1,48], index: 9, kind: input, shape index: {}]
  %s10 = inlined_call_operand.vmem [shape: f32[1,32], index: 10, kind: input, shape index: {}]
  %s11 = inlined_call_operand.hbm [shape: f32[1,32], index: 11, kind: input, shape index: {}]
  %s12 = inlined_call_operand.vmem [shape: f32[64,32], index: 12, kind: input, shape index: {}]
  %s13 = inlined_call_operand.vmem [shape: f32[1,32], index: 13, kind: input, shape index: {}]
  %s14 = inlined_call_operand.hbm [shape: f32[2,32], index: 14, kind: output, shape index: {}]
  %s15 = sld [smem:[#allocation0]]
  $region122: #{tpu_custom_call.1} parent=0
    _
  %s17 = ssub.s32 1, %s15
  %s18 = scalar_select 0, %s17, %s15
  $region1: #{tpu_custom_call.1} parent=0
    #allocation5 [shape = 'u8[16384]{0}', space=vmem, size = 0x4000, scoped, tag = 'input window, operand 3, single buffered']
    #allocation6 [shape = 's32[1]{0}', space=sflag, size = 0x4, scoped, tag = 'scoped memory for tpu_custom_call.1']
    #allocation7 [shape = 's32[1]{0}', space=sflag, size = 0x4, scoped, tag = 'scoped memory for tpu_custom_call.1']
    #allocation8 [shape = 'u8[1024]{0}', space=vmem, size = 0x400, scoped, tag = 'input window, operand 4, single buffered']
    #allocation9 [shape = 's32[1]{0}', space=sflag, size = 0x4, scoped, tag = 'scoped memory for tpu_custom_call.1']
    #allocation10 [shape = 'u8[1024]{0}', space=vmem, size = 0x400, scoped, tag = 'input window, operand 5, single buffered']
    #allocation11 [shape = 'u8[16384]{0}', space=vmem, size = 0x4000, scoped, tag = 'input window, operand 7, single buffered']
    #allocation12 [shape = 's32[1]{0}', space=sflag, size = 0x4, scoped, tag = 'scoped memory for tpu_custom_call.1']
    #allocation13 [shape = 'u8[1024]{0}', space=vmem, size = 0x400, scoped, tag = 'input window, operand 8, single buffered']
    #allocation14 [shape = 'u8[1024]{0}', space=vmem, size = 0x400, scoped, tag = 'input window, operand 9, single buffered']
    #allocation15 [shape = 's32[1]{0}', space=sflag, size = 0x4, scoped, tag = 'scoped memory for tpu_custom_call.1']
    #allocation16 [shape = 'u8[512]{0}', space=vmem, size = 0x400, scoped, tag = 'input window, operand 11, single buffered']
    #allocation17 [shape = 'u8[1024]{0}', space=vmem, size = 0x400, scoped, tag = 'output window, operand 0, single buffered']
    %19 = vsyncpa [#allocation6], 0
    %20 = vsyncpa [#allocation9], 0
    %21 = vsyncpa [#allocation12], 0
    %22 = vsyncpa [#allocation15], 0
    %23 = vsyncpa [#allocation7], 0
    // Predicated region
    $region2: #{tpu_custom_call.1} parent=1 // pred_check
      _
    $region3: #{tpu_custom_call.1} parent=1 // pred_check_branch
      %25 = sbr.rel (0) target = $region5
    $region4: #{tpu_custom_call.1} parent=1 // pred_region
      _
    $region5: #{tpu_custom_call.1} parent=1 // pred_fallthru
      _
    // Predicated region
    $region6: #{tpu_custom_call.1} parent=1 // pred_check
      _
    $region7: #{tpu_custom_call.1} parent=1 // pred_check_branch
      %27 = sbr.rel (0) target = $region9
    $region8: #{tpu_custom_call.1} parent=1 // pred_region
      _
    $region9: #{tpu_custom_call.1} parent=1 // pred_fallthru
      _
    // Predicated region
    $region10: #{tpu_custom_call.1} parent=1 // pred_check
      _
    $region11: #{tpu_custom_call.1} parent=1 // pred_check_branch
      %29 = sbr.rel (0) target = $region13
    $region12: #{tpu_custom_call.1} parent=1 // pred_region
      _
    $region13: #{tpu_custom_call.1} parent=1 // pred_fallthru
      _
    // Predicated region
    $region14: #{tpu_custom_call.1} parent=1 // pred_check
      _
    $region15: #{tpu_custom_call.1} parent=1 // pred_check_branch
      %31 = sbr.rel (0) target = $region17
    $region16: #{tpu_custom_call.1} parent=1 // pred_region
      %s33 = ssub.s32 512, 512
      %34 = vsyncadd [#allocation6], %s33
      %s35 = sshll.u32 [#allocation5], 4
      %s36 = int_to_ptr.vmem [resolvable:$true] %s35
      %41 = dma.hbm_to_vmem [thread:$0]  %s3, 512, %s36, [#allocation6], 128, 128, 8
    $region17: #{tpu_custom_call.1} parent=1 // pred_fallthru
      _
    // Predicated region
    $region18: #{tpu_custom_call.1} parent=1 // pred_check
      _
    $region19: #{tpu_custom_call.1} parent=1 // pred_check_branch
      %43 = sbr.rel (0) target = $region21
    $region20: #{tpu_custom_call.1} parent=1 // pred_region
      %s45 = ssub.s32 32, 32
      %46 = vsyncadd [#allocation9], %s45
      %s47 = sshll.u32 [#allocation8], 4
      %s48 = int_to_ptr.vmem [resolvable:$true] %s47
      %53 = dma.hbm_to_vmem [thread:$0]  %s4, 32, %s48, [#allocation9], 16, 16, 1
    $region21: #{tpu_custom_call.1} parent=1 // pred_fallthru
      _
    // Predicated region
    $region22: #{tpu_custom_call.1} parent=1 // pred_check
      _
    $region23: #{tpu_custom_call.1} parent=1 // pred_check_branch
      %55 = sbr.rel (0) target = $region25
    $region24: #{tpu_custom_call.1} parent=1 // pred_region
      %s57 = ssub.s32 32, 32
      %58 = vsyncadd [#allocation9], %s57
      %s59 = sshll.u32 [#allocation10], 4
      %s60 = int_to_ptr.vmem [resolvable:$true] %s59
      %65 = dma.hbm_to_vmem [thread:$0]  %s5, 32, %s60, [#allocation9], 16, 16, 1
    $region25: #{tpu_custom_call.1} parent=1 // pred_fallthru
      _
    // Predicated region
    $region26: #{tpu_custom_call.1} parent=1 // pred_check
      _
    $region27: #{tpu_custom_call.1} parent=1 // pred_check_branch
      %67 = sbr.rel (0) target = $region29
    $region28: #{tpu_custom_call.1} parent=1 // pred_region
      _
    $region29: #{tpu_custom_call.1} parent=1 // pred_fallthru
      _
    // Predicated region
    $region30: #{tpu_custom_call.1} parent=1 // pred_check
      _
    $region31: #{tpu_custom_call.1} parent=1 // pred_check_branch
      %69 = sbr.rel (0) target = $region33
    $region32: #{tpu_custom_call.1} parent=1 // pred_region
      %s71 = ssub.s32 512, 512
      %72 = vsyncadd [#allocation12], %s71
      %s73 = sshll.u32 [#allocation11], 4
      %s74 = int_to_ptr.vmem [resolvable:$true] %s73
      %79 = dma.hbm_to_vmem [thread:$0]  %s7, 512, %s74, [#allocation12], 128, 128, 8
    $region33: #{tpu_custom_call.1} parent=1 // pred_fallthru
      _
    // Predicated region
    $region34: #{tpu_custom_call.1} parent=1 // pred_check
      _
    $region35: #{tpu_custom_call.1} parent=1 // pred_check_branch
      %81 = sbr.rel (0) target = $region37
    $region36: #{tpu_custom_call.1} parent=1 // pred_region
      %s83 = ssub.s32 32, 32
      %84 = vsyncadd [#allocation12], %s83
      %s85 = sshll.u32 [#allocation13], 4
      %s86 = int_to_ptr.vmem [resolvable:$true] %s85
      %91 = dma.hbm_to_vmem [thread:$0]  %s8, 32, %s86, [#allocation12], 16, 16, 1
    $region37: #{tpu_custom_call.1} parent=1 // pred_fallthru
      _
    // Predicated region
    $region38: #{tpu_custom_call.1} parent=1 // pred_check
      _
    $region39: #{tpu_custom_call.1} parent=1 // pred_check_branch
      %93 = sbr.rel (0) target = $region41
    $region40: #{tpu_custom_call.1} parent=1 // pred_region
      %s95 = ssub.s32 32, 32
      %96 = vsyncadd [#allocation15], %s95
      %s97 = sshll.u32 [#allocation14], 4
      %s98 = int_to_ptr.vmem [resolvable:$true] %s97
      %103 = dma.hbm_to_vmem [thread:$0]  %s9, 32, %s98, [#allocation15], 16, 16, 1
    $region41: #{tpu_custom_call.1} parent=1 // pred_fallthru
      _
    // Predicated region
    $region42: #{tpu_custom_call.1} parent=1 // pred_check
      _
    $region43: #{tpu_custom_call.1} parent=1 // pred_check_branch
      %105 = sbr.rel (0) target = $region45
    $region44: #{tpu_custom_call.1} parent=1 // pred_region
      _
    $region45: #{tpu_custom_call.1} parent=1 // pred_fallthru
      _
    // Predicated region
    $region46: #{tpu_custom_call.1} parent=1 // pred_check
      _
    $region47: #{tpu_custom_call.1} parent=1 // pred_check_branch
      %107 = sbr.rel (0) target = $region49
    $region48: #{tpu_custom_call.1} parent=1 // pred_region
      %s109 = ssub.s32 16, 16
      %110 = vsyncadd [#allocation15], %s109
      %s112 = sshll.u32 [#allocation16], 4
      %s113 = int_to_ptr.vmem [resolvable:$true] %s112
      %115 = dma.hbm_to_vmem [thread:$0]  %s11, 16, %s113, [#allocation15]
    $region49: #{tpu_custom_call.1} parent=1 // pred_fallthru
      _
    // Predicated region
    $region50: #{tpu_custom_call.1} parent=1 // pred_check
      _
    $region51: #{tpu_custom_call.1} parent=1 // pred_check_branch
      %117 = sbr.rel (0) target = $region53
    $region52: #{tpu_custom_call.1} parent=1 // pred_region
      _
    $region53: #{tpu_custom_call.1} parent=1 // pred_fallthru
      _
    // Predicated region
    $region54: #{tpu_custom_call.1} parent=1 // pred_check
      _
    $region55: #{tpu_custom_call.1} parent=1 // pred_check_branch
      %119 = sbr.rel (0) target = $region57
    $region56: #{tpu_custom_call.1} parent=1 // pred_region
      _
    $region57: #{tpu_custom_call.1} parent=1 // pred_fallthru
      _
    // Predicated region
    $region58: #{tpu_custom_call.1} parent=1 // pred_check
      _
    $region59: #{tpu_custom_call.1} parent=1 // pred_check_branch
      %121 = sbr.rel (0) target = $region61
    $region60: #{tpu_custom_call.1} parent=1 // pred_region
      %122 = dma.done [#allocation6], 512
    $region61: #{tpu_custom_call.1} parent=1 // pred_fallthru
      _
    // Predicated region
    $region62: #{tpu_custom_call.1} parent=1 // pred_check
      _
    $region63: #{tpu_custom_call.1} parent=1 // pred_check_branch
      %124 = sbr.rel (0) target = $region65
    $region64: #{tpu_custom_call.1} parent=1 // pred_region
      %125 = dma.done [#allocation9], 32
    $region65: #{tpu_custom_call.1} parent=1 // pred_fallthru
      _
    // Predicated region
    $region66: #{tpu_custom_call.1} parent=1 // pred_check
      _
    $region67: #{tpu_custom_call.1} parent=1 // pred_check_branch
      %127 = sbr.rel (0) target = $region69
    $region68: #{tpu_custom_call.1} parent=1 // pred_region
      %128 = dma.done [#allocation9], 32
    $region69: #{tpu_custom_call.1} parent=1 // pred_fallthru
      _
    // Predicated region
    $region70: #{tpu_custom_call.1} parent=1 // pred_check
      _
    $region71: #{tpu_custom_call.1} parent=1 // pred_check_branch
      %130 = sbr.rel (0) target = $region73
    $region72: #{tpu_custom_call.1} parent=1 // pred_region
      %131 = dma.done [#allocation12], 512
    $region73: #{tpu_custom_call.1} parent=1 // pred_fallthru
      _
    // Predicated region
    $region74: #{tpu_custom_call.1} parent=1 // pred_check
      _
    $region75: #{tpu_custom_call.1} parent=1 // pred_check_branch
      %133 = sbr.rel (0) target = $region77
    $region76: #{tpu_custom_call.1} parent=1 // pred_region
      %134 = dma.done [#allocation12], 32
    $region77: #{tpu_custom_call.1} parent=1 // pred_fallthru
      _
    // Predicated region
    $region78: #{tpu_custom_call.1} parent=1 // pred_check
      _
    $region79: #{tpu_custom_call.1} parent=1 // pred_check_branch
      %136 = sbr.rel (0) target = $region81
    $region80: #{tpu_custom_call.1} parent=1 // pred_region
      %137 = dma.done [#allocation15], 32
    $region81: #{tpu_custom_call.1} parent=1 // pred_fallthru
      _
    // Predicated region
    $region82: #{tpu_custom_call.1} parent=1 // pred_check
      _
    $region83: #{tpu_custom_call.1} parent=1 // pred_check_branch
      %139 = sbr.rel (0) target = $region85
    $region84: #{tpu_custom_call.1} parent=1 // pred_region
      %140 = dma.done [#allocation15], 16
    $region85: #{tpu_custom_call.1} parent=1 // pred_fallthru
      _
    %v141 = vld [vmem:[%s1] sm:$0x3]
    %v142 = vld [vmem:[%s2] sm:$0xff]
    %v143 = vld [vmem:[%s2 + $0x8] sm:$0xff]
    %v144 = vld [vmem:[#allocation5] sm:$0xff]
    %v145 = vld [vmem:[#allocation5 + $0x8] sm:$0xff]
    %v146 = vld [vmem:[#allocation8] sm:$0x1]
    %v147 = vld [vmem:[#allocation10] sm:$0x1]
    loop: start=0, step=1, limit=8
    $region86: #{tpu_custom_call.1} parent=1 // loop_pre_header
      _
    $region87: #{tpu_custom_call.1} parent=1 // loop_header
      %s149 = sphi 0, %s153
      %p150 = scmp.ge.s32.totalorder %s149, 8
      %v154 = vphi 0.0, %v1138
    $region88: #{tpu_custom_call.1} parent=1 // loop_header_branch
      %152 = sbr.rel (%p150) target = $region92
    $region89: #{tpu_custom_call.1} parent=1 // loop_body
      %s155 = smul.u32 %s149, 2
      %s156 = scalar_lea.vmem %s0, %s155
      %v157 = vld [vmem:[%s156] sm:$0x3]
      %v159 = vlaneseq
      %v160 = vshrl.u32 %v159, 7
      %v161 = vsub.s32 0, %v160
      %v162 = vrot.slane %v146, %v161
      %vm164 = vcmask 130048
      %v166 = vsel %vm164, %v157, 0
      %168 = vmatprep.subr.mxu0 0.0
      %v169 = vand.u32 %v142, 4294901760
      %170 = vmatpush1.msra.mxu0 %v169
      %171 = vmatprep.subr.mxu0 0.0
      %v172 = vand.u32 %v143, 4294901760
      %173 = vmatpush1.msra.mxu0 %v172
      %174 = vmatprep.subr.mxu0 0.0
      %175 = vmatpush1.msra.mxu0 0.0
      %176 = vmatprep.subr.mxu0 0.0
      %177 = vmatpush1.msra.mxu0 0.0
      %178 = vmatprep.subr.mxu0 0.0
      %179 = vmatpush1.msra.mxu0 0.0
      %180 = vmatprep.subr.mxu0 0.0
      %181 = vmatpush1.msra.mxu0 0.0
      %182 = vmatprep.subr.mxu0 0.0
      %183 = vmatpush1.msra.mxu0 0.0
      %184 = vmatprep.subr.mxu0 0.0
      %185 = vmatpush1.msra.mxu0 0.0
      %186 = vmatprep.subr.mxu0 0.0
      %187 = vmatpush1.msra.mxu0 0.0
      %188 = vmatprep.subr.mxu0 0.0
      %189 = vmatpush1.msra.mxu0 0.0
      %190 = vmatprep.subr.mxu0 0.0
      %191 = vmatpush1.msra.mxu0 0.0
      %192 = vmatprep.subr.mxu0 0.0
      %193 = vmatpush1.msra.mxu0 0.0
      %194 = vmatprep.subr.mxu0 0.0
      %195 = vmatpush1.msra.mxu0 0.0
      %196 = vmatprep.subr.mxu0 0.0
      %197 = vmatpush1.msra.mxu0 0.0
      %198 = vmatprep.subr.mxu0 0.0
      %199 = vmatpush1.msra.mxu0 0.0
      %200 = vmatprep.subr.mxu0 0.0
      %201 = vmatpush1.msra.mxu0 0.0
      %202 = vmatprep.subr.mxu0 0.0
      %203 = vmatpush1.msra.mxu0 0.0
      %204 = vmatprep.subr.mxu0 0.0
      %205 = vmatpush1.msra.mxu0 0.0
      %206 = vmatprep.subr.mxu0 0.0
      %207 = vmatpush1.msra.mxu0 0.0
      %208 = vmatprep.subr.mxu0 0.0
      %209 = vmatpush1.msra.mxu0 0.0
      %210 = vmatprep.subr.mxu0 0.0
      %211 = vmatpush1.msra.mxu0 0.0
      %212 = vmatprep.subr.mxu0 0.0
      %213 = vmatpush1.msra.mxu0 0.0
      %214 = vmatprep.subr.mxu0 0.0
      %215 = vmatpush1.msra.mxu0 0.0
      %216 = vmatprep.subr.mxu0 0.0
      %217 = vmatpush1.msra.mxu0 0.0
      %218 = vmatprep.subr.mxu0 0.0
      %219 = vmatpush1.msra.mxu0 0.0
      %220 = vmatprep.subr.mxu0 0.0
      %221 = vmatpush1.msra.mxu0 0.0
      %222 = vmatprep.subr.mxu0 0.0
      %223 = vmatpush1.msra.mxu0 0.0
      %224 = vmatprep.subr.mxu0 0.0
      %225 = vmatpush1.msra.mxu0 0.0
      %226 = vmatprep.subr.mxu0 0.0
      %227 = vmatpush1.msra.mxu0 0.0
      %228 = vmatprep.subr.mxu0 0.0
      %229 = vmatpush1.msra.mxu0 0.0
      %230 = vmatprep.subr.mxu0 0.0
      %231 = vmatpush1.msra.mxu0 0.0
      %232 = vmatprep.subr.mxu0 0.0
      %233 = vmatpush1.msra.mxu0 0.0
      %234 = vmatprep.mubr.f32.mxu0 0.0
      %v235 = vand.u32 %v166, 4294901760
      %v236 = vsub.f32 %v166, %v235
      %v237 = vand.u32 %v236, 4294901760
      %v238 = vsub.f32 %v236, %v237
      %v239 = vand.u32 %v238, 4294901760
      %240 = vmatmul.mubr.f32.gmra.mrb[0].mxu0 %v239
      %v241 = vpop.f32.mrb[0].mxu0
      %v242 = vadd.f32 %v162, %v241
      %v243 = vpop.f32.mrb[0].mxu0
      %244 = vdwg.mxu0
      %245 = vmatprep.subr.mxu0 0.0
      %v246 = vand.u32 %v142, 4294901760
      %v247 = vsub.f32 %v142, %v246
      %v248 = vand.u32 %v247, 4294901760
      %v249 = vsub.f32 %v247, %v248
      %v250 = vand.u32 %v249, 4294901760
      %251 = vmatpush1.msra.mxu0 %v250
      %252 = vmatprep.subr.mxu0 0.0
      %v253 = vand.u32 %v143, 4294901760
      %v254 = vsub.f32 %v143, %v253
      %v255 = vand.u32 %v254, 4294901760
      %v256 = vsub.f32 %v254, %v255
      %v257 = vand.u32 %v256, 4294901760
      %258 = vmatpush1.msra.mxu0 %v257
      %259 = vmatprep.subr.mxu0 0.0
      %260 = vmatpush1.msra.mxu0 0.0
      %261 = vmatprep.subr.mxu0 0.0
      %262 = vmatpush1.msra.mxu0 0.0
      %263 = vmatprep.subr.mxu0 0.0
      %264 = vmatpush1.msra.mxu0 0.0
      %265 = vmatprep.subr.mxu0 0.0
      %266 = vmatpush1.msra.mxu0 0.0
      %267 = vmatprep.subr.mxu0 0.0
      %268 = vmatpush1.msra.mxu0 0.0
      %269 = vmatprep.subr.mxu0 0.0
      %270 = vmatpush1.msra.mxu0 0.0
      %271 = vmatprep.subr.mxu0 0.0
      %272 = vmatpush1.msra.mxu0 0.0
      %273 = vmatprep.subr.mxu0 0.0
      %274 = vmatpush1.msra.mxu0 0.0
      %275 = vmatprep.subr.mxu0 0.0
      %276 = vmatpush1.msra.mxu0 0.0
      %277 = vmatprep.subr.mxu0 0.0
      %278 = vmatpush1.msra.mxu0 0.0
      %279 = vmatprep.subr.mxu0 0.0
      %280 = vmatpush1.msra.mxu0 0.0
      %281 = vmatprep.subr.mxu0 0.0
      %282 = vmatpush1.msra.mxu0 0.0
      %283 = vmatprep.subr.mxu0 0.0
      %284 = vmatpush1.msra.mxu0 0.0
      %285 = vmatprep.subr.mxu0 0.0
      %286 = vmatpush1.msra.mxu0 0.0
      %287 = vmatprep.subr.mxu0 0.0
      %288 = vmatpush1.msra.mxu0 0.0
      %289 = vmatprep.subr.mxu0 0.0
      %290 = vmatpush1.msra.mxu0 0.0
      %291 = vmatprep.subr.mxu0 0.0
      %292 = vmatpush1.msra.mxu0 0.0
      %293 = vmatprep.subr.mxu0 0.0
      %294 = vmatpush1.msra.mxu0 0.0
      %295 = vmatprep.subr.mxu0 0.0
      %296 = vmatpush1.msra.mxu0 0.0
      %297 = vmatprep.subr.mxu0 0.0
      %298 = vmatpush1.msra.mxu0 0.0
      %299 = vmatprep.subr.mxu0 0.0
      %300 = vmatpush1.msra.mxu0 0.0
      %301 = vmatprep.subr.mxu0 0.0
      %302 = vmatpush1.msra.mxu0 0.0
      %303 = vmatprep.subr.mxu0 0.0
      %304 = vmatpush1.msra.mxu0 0.0
      %305 = vmatprep.subr.mxu0 0.0
      %306 = vmatpush1.msra.mxu0 0.0
      %307 = vmatprep.subr.mxu0 0.0
      %308 = vmatpush1.msra.mxu0 0.0
      %309 = vmatprep.subr.mxu0 0.0
      %310 = vmatpush1.msra.mxu0 0.0
      %311 = vmatprep.subr.mxu0 0.0
      %312 = vmatpush1.msra.mxu0 0.0
      %313 = vmatprep.subr.mxu0 0.0
      %314 = vmatpush1.msra.mxu0 0.0
      %315 = vmatprep.subr.mxu0 0.0
      %316 = vmatpush1.msra.mxu0 0.0
      %317 = vmatprep.subr.mxu0 0.0
      %318 = vmatpush1.msra.mxu0 0.0
      %319 = vmatprep.mubr.f32.mxu0 0.0
      %v320 = vand.u32 %v166, 4294901760
      %321 = vmatmul.mubr.f32.gmra.mrb[0].mxu0 %v320
      %v322 = vpop.f32.mrb[0].mxu0
      %v323 = vadd.f32 %v242, %v322
      %v324 = vpop.f32.mrb[0].mxu0
      %325 = vdwg.mxu0
      %326 = vmatprep.subr.mxu0 0.0
      %v327 = vand.u32 %v142, 4294901760
      %v328 = vsub.f32 %v142, %v327
      %329 = vmatpush1.msra.mxu0 %v328
      %330 = vmatprep.subr.mxu0 0.0
      %v331 = vand.u32 %v143, 4294901760
      %v332 = vsub.f32 %v143, %v331
      %333 = vmatpush1.msra.mxu0 %v332
      %334 = vmatprep.subr.mxu0 0.0
      %335 = vmatpush1.msra.mxu0 0.0
      %336 = vmatprep.subr.mxu0 0.0
      %337 = vmatpush1.msra.mxu0 0.0
      %338 = vmatprep.subr.mxu0 0.0
      %339 = vmatpush1.msra.mxu0 0.0
      %340 = vmatprep.subr.mxu0 0.0
      %341 = vmatpush1.msra.mxu0 0.0
      %342 = vmatprep.subr.mxu0 0.0
      %343 = vmatpush1.msra.mxu0 0.0
      %344 = vmatprep.subr.mxu0 0.0
      %345 = vmatpush1.msra.mxu0 0.0
      %346 = vmatprep.subr.mxu0 0.0
      %347 = vmatpush1.msra.mxu0 0.0
      %348 = vmatprep.subr.mxu0 0.0
      %349 = vmatpush1.msra.mxu0 0.0
      %350 = vmatprep.subr.mxu0 0.0
      %351 = vmatpush1.msra.mxu0 0.0
      %352 = vmatprep.subr.mxu0 0.0
      %353 = vmatpush1.msra.mxu0 0.0
      %354 = vmatprep.subr.mxu0 0.0
      %355 = vmatpush1.msra.mxu0 0.0
      %356 = vmatprep.subr.mxu0 0.0
      %357 = vmatpush1.msra.mxu0 0.0
      %358 = vmatprep.subr.mxu0 0.0
      %359 = vmatpush1.msra.mxu0 0.0
      %360 = vmatprep.subr.mxu0 0.0
      %361 = vmatpush1.msra.mxu0 0.0
      %362 = vmatprep.subr.mxu0 0.0
      %363 = vmatpush1.msra.mxu0 0.0
      %364 = vmatprep.subr.mxu0 0.0
      %365 = vmatpush1.msra.mxu0 0.0
      %366 = vmatprep.subr.mxu0 0.0
      %367 = vmatpush1.msra.mxu0 0.0
      %368 = vmatprep.subr.mxu0 0.0
      %369 = vmatpush1.msra.mxu0 0.0
      %370 = vmatprep.subr.mxu0 0.0
      %371 = vmatpush1.msra.mxu0 0.0
      %372 = vmatprep.subr.mxu0 0.0
      %373 = vmatpush1.msra.mxu0 0.0
      %374 = vmatprep.subr.mxu0 0.0
      %375 = vmatpush1.msra.mxu0 0.0
      %376 = vmatprep.subr.mxu0 0.0
      %377 = vmatpush1.msra.mxu0 0.0
      %378 = vmatprep.subr.mxu0 0.0
      %379 = vmatpush1.msra.mxu0 0.0
      %380 = vmatprep.subr.mxu0 0.0
      %381 = vmatpush1.msra.mxu0 0.0
      %382 = vmatprep.subr.mxu0 0.0
      %383 = vmatpush1.msra.mxu0 0.0
      %384 = vmatprep.subr.mxu0 0.0
      %385 = vmatpush1.msra.mxu0 0.0
      %386 = vmatprep.subr.mxu0 0.0
      %387 = vmatpush1.msra.mxu0 0.0
      %388 = vmatprep.subr.mxu0 0.0
      %389 = vmatpush1.msra.mxu0 0.0
      %390 = vmatprep.subr.mxu0 0.0
      %391 = vmatpush1.msra.mxu0 0.0
      %392 = vmatprep.subr.mxu0 0.0
      %393 = vmatpush1.msra.mxu0 0.0
      %394 = vmatprep.mubr.f32.mxu0 0.0
      %v395 = vand.u32 %v166, 4294901760
      %v396 = vsub.f32 %v166, %v395
      %397 = vmatmul.mubr.f32.gmra.mrb[0].mxu0 %v396
      %v398 = vpop.f32.mrb[0].mxu0
      %v399 = vadd.f32 %v323, %v398
      %v400 = vpop.f32.mrb[0].mxu0
      %401 = vdwg.mxu0
      %402 = vmatprep.subr.mxu0 0.0
      %v403 = vand.u32 %v142, 4294901760
      %404 = vmatpush1.msra.mxu0 %v403
      %405 = vmatprep.subr.mxu0 0.0
      %v406 = vand.u32 %v143, 4294901760
      %407 = vmatpush1.msra.mxu0 %v406
      %408 = vmatprep.subr.mxu0 0.0
      %409 = vmatpush1.msra.mxu0 0.0
      %410 = vmatprep.subr.mxu0 0.0
      %411 = vmatpush1.msra.mxu0 0.0
      %412 = vmatprep.subr.mxu0 0.0
      %413 = vmatpush1.msra.mxu0 0.0
      %414 = vmatprep.subr.mxu0 0.0
      %415 = vmatpush1.msra.mxu0 0.0
      %416 = vmatprep.subr.mxu0 0.0
      %417 = vmatpush1.msra.mxu0 0.0
      %418 = vmatprep.subr.mxu0 0.0
      %419 = vmatpush1.msra.mxu0 0.0
      %420 = vmatprep.subr.mxu0 0.0
      %421 = vmatpush1.msra.mxu0 0.0
      %422 = vmatprep.subr.mxu0 0.0
      %423 = vmatpush1.msra.mxu0 0.0
      %424 = vmatprep.subr.mxu0 0.0
      %425 = vmatpush1.msra.mxu0 0.0
      %426 = vmatprep.subr.mxu0 0.0
      %427 = vmatpush1.msra.mxu0 0.0
      %428 = vmatprep.subr.mxu0 0.0
      %429 = vmatpush1.msra.mxu0 0.0
      %430 = vmatprep.subr.mxu0 0.0
      %431 = vmatpush1.msra.mxu0 0.0
      %432 = vmatprep.subr.mxu0 0.0
      %433 = vmatpush1.msra.mxu0 0.0
      %434 = vmatprep.subr.mxu0 0.0
      %435 = vmatpush1.msra.mxu0 0.0
      %436 = vmatprep.subr.mxu0 0.0
      %437 = vmatpush1.msra.mxu0 0.0
      %438 = vmatprep.subr.mxu0 0.0
      %439 = vmatpush1.msra.mxu0 0.0
      %440 = vmatprep.subr.mxu0 0.0
      %441 = vmatpush1.msra.mxu0 0.0
      %442 = vmatprep.subr.mxu0 0.0
      %443 = vmatpush1.msra.mxu0 0.0
      %444 = vmatprep.subr.mxu0 0.0
      %445 = vmatpush1.msra.mxu0 0.0
      %446 = vmatprep.subr.mxu0 0.0
      %447 = vmatpush1.msra.mxu0 0.0
      %448 = vmatprep.subr.mxu0 0.0
      %449 = vmatpush1.msra.mxu0 0.0
      %450 = vmatprep.subr.mxu0 0.0
      %451 = vmatpush1.msra.mxu0 0.0
      %452 = vmatprep.subr.mxu0 0.0
      %453 = vmatpush1.msra.mxu0 0.0
      %454 = vmatprep.subr.mxu0 0.0
      %455 = vmatpush1.msra.mxu0 0.0
      %456 = vmatprep.subr.mxu0 0.0
      %457 = vmatpush1.msra.mxu0 0.0
      %458 = vmatprep.subr.mxu0 0.0
      %459 = vmatpush1.msra.mxu0 0.0
      %460 = vmatprep.subr.mxu0 0.0
      %461 = vmatpush1.msra.mxu0 0.0
      %462 = vmatprep.subr.mxu0 0.0
      %463 = vmatpush1.msra.mxu0 0.0
      %464 = vmatprep.subr.mxu0 0.0
      %465 = vmatpush1.msra.mxu0 0.0
      %466 = vmatprep.subr.mxu0 0.0
      %467 = vmatpush1.msra.mxu0 0.0
      %468 = vmatprep.mubr.f32.mxu0 0.0
      %v469 = vand.u32 %v166, 4294901760
      %v470 = vsub.f32 %v166, %v469
      %v471 = vand.u32 %v470, 4294901760
      %472 = vmatmul.mubr.f32.gmra.mrb[0].mxu0 %v471
      %v473 = vpop.f32.mrb[0].mxu0
      %v474 = vadd.f32 %v399, %v473
      %v475 = vpop.f32.mrb[0].mxu0
      %476 = vdwg.mxu0
      %477 = vmatprep.subr.mxu0 0.0
      %v478 = vand.u32 %v142, 4294901760
      %v479 = vsub.f32 %v142, %v478
      %v480 = vand.u32 %v479, 4294901760
      %481 = vmatpush1.msra.mxu0 %v480
      %482 = vmatprep.subr.mxu0 0.0
      %v483 = vand.u32 %v143, 4294901760
      %v484 = vsub.f32 %v143, %v483
      %v485 = vand.u32 %v484, 4294901760
      %486 = vmatpush1.msra.mxu0 %v485
      %487 = vmatprep.subr.mxu0 0.0
      %488 = vmatpush1.msra.mxu0 0.0
      %489 = vmatprep.subr.mxu0 0.0
      %490 = vmatpush1.msra.mxu0 0.0
      %491 = vmatprep.subr.mxu0 0.0
      %492 = vmatpush1.msra.mxu0 0.0
      %493 = vmatprep.subr.mxu0 0.0
      %494 = vmatpush1.msra.mxu0 0.0
      %495 = vmatprep.subr.mxu0 0.0
      %496 = vmatpush1.msra.mxu0 0.0
      %497 = vmatprep.subr.mxu0 0.0
      %498 = vmatpush1.msra.mxu0 0.0
      %499 = vmatprep.subr.mxu0 0.0
      %500 = vmatpush1.msra.mxu0 0.0
      %501 = vmatprep.subr.mxu0 0.0
      %502 = vmatpush1.msra.mxu0 0.0
      %503 = vmatprep.subr.mxu0 0.0
      %504 = vmatpush1.msra.mxu0 0.0
      %505 = vmatprep.subr.mxu0 0.0
      %506 = vmatpush1.msra.mxu0 0.0
      %507 = vmatprep.subr.mxu0 0.0
      %508 = vmatpush1.msra.mxu0 0.0
      %509 = vmatprep.subr.mxu0 0.0
      %510 = vmatpush1.msra.mxu0 0.0
      %511 = vmatprep.subr.mxu0 0.0
      %512 = vmatpush1.msra.mxu0 0.0
      %513 = vmatprep.subr.mxu0 0.0
      %514 = vmatpush1.msra.mxu0 0.0
      %515 = vmatprep.subr.mxu0 0.0
      %516 = vmatpush1.msra.mxu0 0.0
      %517 = vmatprep.subr.mxu0 0.0
      %518 = vmatpush1.msra.mxu0 0.0
      %519 = vmatprep.subr.mxu0 0.0
      %520 = vmatpush1.msra.mxu0 0.0
      %521 = vmatprep.subr.mxu0 0.0
      %522 = vmatpush1.msra.mxu0 0.0
      %523 = vmatprep.subr.mxu0 0.0
      %524 = vmatpush1.msra.mxu0 0.0
      %525 = vmatprep.subr.mxu0 0.0
      %526 = vmatpush1.msra.mxu0 0.0
      %527 = vmatprep.subr.mxu0 0.0
      %528 = vmatpush1.msra.mxu0 0.0
      %529 = vmatprep.subr.mxu0 0.0
      %530 = vmatpush1.msra.mxu0 0.0
      %531 = vmatprep.subr.mxu0 0.0
      %532 = vmatpush1.msra.mxu0 0.0
      %533 = vmatprep.subr.mxu0 0.0
      %534 = vmatpush1.msra.mxu0 0.0
      %535 = vmatprep.subr.mxu0 0.0
      %536 = vmatpush1.msra.mxu0 0.0
      %537 = vmatprep.subr.mxu0 0.0
      %538 = vmatpush1.msra.mxu0 0.0
      %539 = vmatprep.subr.mxu0 0.0
      %540 = vmatpush1.msra.mxu0 0.0
      %541 = vmatprep.subr.mxu0 0.0
      %542 = vmatpush1.msra.mxu0 0.0
      %543 = vmatprep.subr.mxu0 0.0
      %544 = vmatpush1.msra.mxu0 0.0
      %545 = vmatprep.subr.mxu0 0.0
      %546 = vmatpush1.msra.mxu0 0.0
      %547 = vmatprep.mubr.f32.mxu0 0.0
      %v548 = vand.u32 %v166, 4294901760
      %549 = vmatmul.mubr.f32.gmra.mrb[0].mxu0 %v548
      %v550 = vpop.f32.mrb[0].mxu0
      %v551 = vadd.f32 %v474, %v550
      %v552 = vpop.f32.mrb[0].mxu0
      %553 = vdwg.mxu0
      %554 = vmatprep.subr.mxu0 0.0
      %v555 = vand.u32 %v142, 4294901760
      %556 = vmatpush1.msra.mxu0 %v555
      %557 = vmatprep.subr.mxu0 0.0
      %v558 = vand.u32 %v143, 4294901760
      %559 = vmatpush1.msra.mxu0 %v558
      %560 = vmatprep.subr.mxu0 0.0
      %561 = vmatpush1.msra.mxu0 0.0
      %562 = vmatprep.subr.mxu0 0.0
      %563 = vmatpush1.msra.mxu0 0.0
      %564 = vmatprep.subr.mxu0 0.0
      %565 = vmatpush1.msra.mxu0 0.0
      %566 = vmatprep.subr.mxu0 0.0
      %567 = vmatpush1.msra.mxu0 0.0
      %568 = vmatprep.subr.mxu0 0.0
      %569 = vmatpush1.msra.mxu0 0.0
      %570 = vmatprep.subr.mxu0 0.0
      %571 = vmatpush1.msra.mxu0 0.0
      %572 = vmatprep.subr.mxu0 0.0
      %573 = vmatpush1.msra.mxu0 0.0
      %574 = vmatprep.subr.mxu0 0.0
      %575 = vmatpush1.msra.mxu0 0.0
      %576 = vmatprep.subr.mxu0 0.0
      %577 = vmatpush1.msra.mxu0 0.0
      %578 = vmatprep.subr.mxu0 0.0
      %579 = vmatpush1.msra.mxu0 0.0
      %580 = vmatprep.subr.mxu0 0.0
      %581 = vmatpush1.msra.mxu0 0.0
      %582 = vmatprep.subr.mxu0 0.0
      %583 = vmatpush1.msra.mxu0 0.0
      %584 = vmatprep.subr.mxu0 0.0
      %585 = vmatpush1.msra.mxu0 0.0
      %586 = vmatprep.subr.mxu0 0.0
      %587 = vmatpush1.msra.mxu0 0.0
      %588 = vmatprep.subr.mxu0 0.0
      %589 = vmatpush1.msra.mxu0 0.0
      %590 = vmatprep.subr.mxu0 0.0
      %591 = vmatpush1.msra.mxu0 0.0
      %592 = vmatprep.subr.mxu0 0.0
      %593 = vmatpush1.msra.mxu0 0.0
      %594 = vmatprep.subr.mxu0 0.0
      %595 = vmatpush1.msra.mxu0 0.0
      %596 = vmatprep.subr.mxu0 0.0
      %597 = vmatpush1.msra.mxu0 0.0
      %598 = vmatprep.subr.mxu0 0.0
      %599 = vmatpush1.msra.mxu0 0.0
      %600 = vmatprep.subr.mxu0 0.0
      %601 = vmatpush1.msra.mxu0 0.0
      %602 = vmatprep.subr.mxu0 0.0
      %603 = vmatpush1.msra.mxu0 0.0
      %604 = vmatprep.subr.mxu0 0.0
      %605 = vmatpush1.msra.mxu0 0.0
      %606 = vmatprep.subr.mxu0 0.0
      %607 = vmatpush1.msra.mxu0 0.0
      %608 = vmatprep.subr.mxu0 0.0
      %609 = vmatpush1.msra.mxu0 0.0
      %610 = vmatprep.subr.mxu0 0.0
      %611 = vmatpush1.msra.mxu0 0.0
      %612 = vmatprep.subr.mxu0 0.0
      %613 = vmatpush1.msra.mxu0 0.0
      %614 = vmatprep.subr.mxu0 0.0
      %615 = vmatpush1.msra.mxu0 0.0
      %616 = vmatprep.subr.mxu0 0.0
      %617 = vmatpush1.msra.mxu0 0.0
      %618 = vmatprep.subr.mxu0 0.0
      %619 = vmatpush1.msra.mxu0 0.0
      %620 = vmatprep.mubr.f32.mxu0 0.0
      %v621 = vand.u32 %v166, 4294901760
      %622 = vmatmul.mubr.f32.gmra.mrb[0].mxu0 %v621
      %v623 = vpop.f32.mrb[0].mxu0
      %v624 = vadd.f32 %v551, %v623
      %v625 = vpop.f32.mrb[0].mxu0
      %626 = vdwg.mxu0
      %v628 = vlaneseq
      %v629 = vshrl.u32 %v628, 7
      %v630 = vsub.s32 0, %v629
      %v631 = vrot.slane %v147, %v630
      %634 = vrot.lane.b32.xlu0 %v154, 112
      %v635 = vpop.permute.xlu0 %634
      %v636 = vsel %vm164, %v635, 0
      %638 = vmatprep.subr.mxu0 0.0
      %v639 = vand.u32 %v144, 4294901760
      %640 = vmatpush1.msra.mxu0 %v639
      %641 = vmatprep.subr.mxu0 0.0
      %v642 = vand.u32 %v145, 4294901760
      %643 = vmatpush1.msra.mxu0 %v642
      %644 = vmatprep.subr.mxu0 0.0
      %645 = vmatpush1.msra.mxu0 0.0
      %646 = vmatprep.subr.mxu0 0.0
      %647 = vmatpush1.msra.mxu0 0.0
      %648 = vmatprep.subr.mxu0 0.0
      %649 = vmatpush1.msra.mxu0 0.0
      %650 = vmatprep.subr.mxu0 0.0
      %651 = vmatpush1.msra.mxu0 0.0
      %652 = vmatprep.subr.mxu0 0.0
      %653 = vmatpush1.msra.mxu0 0.0
      %654 = vmatprep.subr.mxu0 0.0
      %655 = vmatpush1.msra.mxu0 0.0
      %656 = vmatprep.subr.mxu0 0.0
      %657 = vmatpush1.msra.mxu0 0.0
      %658 = vmatprep.subr.mxu0 0.0
      %659 = vmatpush1.msra.mxu0 0.0
      %660 = vmatprep.subr.mxu0 0.0
      %661 = vmatpush1.msra.mxu0 0.0
      %662 = vmatprep.subr.mxu0 0.0
      %663 = vmatpush1.msra.mxu0 0.0
      %664 = vmatprep.subr.mxu0 0.0
      %665 = vmatpush1.msra.mxu0 0.0
      %666 = vmatprep.subr.mxu0 0.0
      %667 = vmatpush1.msra.mxu0 0.0
      %668 = vmatprep.subr.mxu0 0.0
      %669 = vmatpush1.msra.mxu0 0.0
      %670 = vmatprep.subr.mxu0 0.0
      %671 = vmatpush1.msra.mxu0 0.0
      %672 = vmatprep.subr.mxu0 0.0
      %673 = vmatpush1.msra.mxu0 0.0
      %674 = vmatprep.subr.mxu0 0.0
      %675 = vmatpush1.msra.mxu0 0.0
      %676 = vmatprep.subr.mxu0 0.0
      %677 = vmatpush1.msra.mxu0 0.0
      %678 = vmatprep.subr.mxu0 0.0
      %679 = vmatpush1.msra.mxu0 0.0
      %680 = vmatprep.subr.mxu0 0.0
      %681 = vmatpush1.msra.mxu0 0.0
      %682 = vmatprep.subr.mxu0 0.0
      %683 = vmatpush1.msra.mxu0 0.0
      %684 = vmatprep.subr.mxu0 0.0
      %685 = vmatpush1.msra.mxu0 0.0
      %686 = vmatprep.subr.mxu0 0.0
      %687 = vmatpush1.msra.mxu0 0.0
      %688 = vmatprep.subr.mxu0 0.0
      %689 = vmatpush1.msra.mxu0 0.0
      %690 = vmatprep.subr.mxu0 0.0
      %691 = vmatpush1.msra.mxu0 0.0
      %692 = vmatprep.subr.mxu0 0.0
      %693 = vmatpush1.msra.mxu0 0.0
      %694 = vmatprep.subr.mxu0 0.0
      %695 = vmatpush1.msra.mxu0 0.0
      %696 = vmatprep.subr.mxu0 0.0
      %697 = vmatpush1.msra.mxu0 0.0
      %698 = vmatprep.subr.mxu0 0.0
      %699 = vmatpush1.msra.mxu0 0.0
      %700 = vmatprep.subr.mxu0 0.0
      %701 = vmatpush1.msra.mxu0 0.0
      %702 = vmatprep.subr.mxu0 0.0
      %703 = vmatpush1.msra.mxu0 0.0
      %704 = vmatprep.mubr.f32.mxu0 0.0
      %v705 = vand.u32 %v636, 4294901760
      %v706 = vsub.f32 %v636, %v705
      %v707 = vand.u32 %v706, 4294901760
      %v708 = vsub.f32 %v706, %v707
      %v709 = vand.u32 %v708, 4294901760
      %710 = vmatmul.mubr.f32.gmra.mrb[0].mxu0 %v709
      %v711 = vpop.f32.mrb[0].mxu0
      %v712 = vadd.f32 %v631, %v711
      %v713 = vpop.f32.mrb[0].mxu0
      %714 = vdwg.mxu0
      %715 = vmatprep.subr.mxu0 0.0
      %v716 = vand.u32 %v144, 4294901760
      %v717 = vsub.f32 %v144, %v716
      %v718 = vand.u32 %v717, 4294901760
      %v719 = vsub.f32 %v717, %v718
      %v720 = vand.u32 %v719, 4294901760
      %721 = vmatpush1.msra.mxu0 %v720
      %722 = vmatprep.subr.mxu0 0.0
      %v723 = vand.u32 %v145, 4294901760
      %v724 = vsub.f32 %v145, %v723
      %v725 = vand.u32 %v724, 4294901760
      %v726 = vsub.f32 %v724, %v725
      %v727 = vand.u32 %v726, 4294901760
      %728 = vmatpush1.msra.mxu0 %v727
      %729 = vmatprep.subr.mxu0 0.0
      %730 = vmatpush1.msra.mxu0 0.0
      %731 = vmatprep.subr.mxu0 0.0
      %732 = vmatpush1.msra.mxu0 0.0
      %733 = vmatprep.subr.mxu0 0.0
      %734 = vmatpush1.msra.mxu0 0.0
      %735 = vmatprep.subr.mxu0 0.0
      %736 = vmatpush1.msra.mxu0 0.0
      %737 = vmatprep.subr.mxu0 0.0
      %738 = vmatpush1.msra.mxu0 0.0
      %739 = vmatprep.subr.mxu0 0.0
      %740 = vmatpush1.msra.mxu0 0.0
      %741 = vmatprep.subr.mxu0 0.0
      %742 = vmatpush1.msra.mxu0 0.0
      %743 = vmatprep.subr.mxu0 0.0
      %744 = vmatpush1.msra.mxu0 0.0
      %745 = vmatprep.subr.mxu0 0.0
      %746 = vmatpush1.msra.mxu0 0.0
      %747 = vmatprep.subr.mxu0 0.0
      %748 = vmatpush1.msra.mxu0 0.0
      %749 = vmatprep.subr.mxu0 0.0
      %750 = vmatpush1.msra.mxu0 0.0
      %751 = vmatprep.subr.mxu0 0.0
      %752 = vmatpush1.msra.mxu0 0.0
      %753 = vmatprep.subr.mxu0 0.0
      %754 = vmatpush1.msra.mxu0 0.0
      %755 = vmatprep.subr.mxu0 0.0
      %756 = vmatpush1.msra.mxu0 0.0
      %757 = vmatprep.subr.mxu0 0.0
      %758 = vmatpush1.msra.mxu0 0.0
      %759 = vmatprep.subr.mxu0 0.0
      %760 = vmatpush1.msra.mxu0 0.0
      %761 = vmatprep.subr.mxu0 0.0
      %762 = vmatpush1.msra.mxu0 0.0
      %763 = vmatprep.subr.mxu0 0.0
      %764 = vmatpush1.msra.mxu0 0.0
      %765 = vmatprep.subr.mxu0 0.0
      %766 = vmatpush1.msra.mxu0 0.0
      %767 = vmatprep.subr.mxu0 0.0
      %768 = vmatpush1.msra.mxu0 0.0
      %769 = vmatprep.subr.mxu0 0.0
      %770 = vmatpush1.msra.mxu0 0.0
      %771 = vmatprep.subr.mxu0 0.0
      %772 = vmatpush1.msra.mxu0 0.0
      %773 = vmatprep.subr.mxu0 0.0
      %774 = vmatpush1.msra.mxu0 0.0
      %775 = vmatprep.subr.mxu0 0.0
      %776 = vmatpush1.msra.mxu0 0.0
      %777 = vmatprep.subr.mxu0 0.0
      %778 = vmatpush1.msra.mxu0 0.0
      %779 = vmatprep.subr.mxu0 0.0
      %780 = vmatpush1.msra.mxu0 0.0
      %781 = vmatprep.subr.mxu0 0.0
      %782 = vmatpush1.msra.mxu0 0.0
      %783 = vmatprep.subr.mxu0 0.0
      %784 = vmatpush1.msra.mxu0 0.0
      %785 = vmatprep.subr.mxu0 0.0
      %786 = vmatpush1.msra.mxu0 0.0
      %787 = vmatprep.subr.mxu0 0.0
      %788 = vmatpush1.msra.mxu0 0.0
      %789 = vmatprep.mubr.f32.mxu0 0.0
      %v790 = vand.u32 %v636, 4294901760
      %791 = vmatmul.mubr.f32.gmra.mrb[0].mxu0 %v790
      %v792 = vpop.f32.mrb[0].mxu0
      %v793 = vadd.f32 %v712, %v792
      %v794 = vpop.f32.mrb[0].mxu0
      %795 = vdwg.mxu0
      %796 = vmatprep.subr.mxu0 0.0
      %v797 = vand.u32 %v144, 4294901760
      %v798 = vsub.f32 %v144, %v797
      %799 = vmatpush1.msra.mxu0 %v798
      %800 = vmatprep.subr.mxu0 0.0
      %v801 = vand.u32 %v145, 4294901760
      %v802 = vsub.f32 %v145, %v801
      %803 = vmatpush1.msra.mxu0 %v802
      %804 = vmatprep.subr.mxu0 0.0
      %805 = vmatpush1.msra.mxu0 0.0
      %806 = vmatprep.subr.mxu0 0.0
      %807 = vmatpush1.msra.mxu0 0.0
      %808 = vmatprep.subr.mxu0 0.0
      %809 = vmatpush1.msra.mxu0 0.0
      %810 = vmatprep.subr.mxu0 0.0
      %811 = vmatpush1.msra.mxu0 0.0
      %812 = vmatprep.subr.mxu0 0.0
      %813 = vmatpush1.msra.mxu0 0.0
      %814 = vmatprep.subr.mxu0 0.0
      %815 = vmatpush1.msra.mxu0 0.0
      %816 = vmatprep.subr.mxu0 0.0
      %817 = vmatpush1.msra.mxu0 0.0
      %818 = vmatprep.subr.mxu0 0.0
      %819 = vmatpush1.msra.mxu0 0.0
      %820 = vmatprep.subr.mxu0 0.0
      %821 = vmatpush1.msra.mxu0 0.0
      %822 = vmatprep.subr.mxu0 0.0
      %823 = vmatpush1.msra.mxu0 0.0
      %824 = vmatprep.subr.mxu0 0.0
      %825 = vmatpush1.msra.mxu0 0.0
      %826 = vmatprep.subr.mxu0 0.0
      %827 = vmatpush1.msra.mxu0 0.0
      %828 = vmatprep.subr.mxu0 0.0
      %829 = vmatpush1.msra.mxu0 0.0
      %830 = vmatprep.subr.mxu0 0.0
      %831 = vmatpush1.msra.mxu0 0.0
      %832 = vmatprep.subr.mxu0 0.0
      %833 = vmatpush1.msra.mxu0 0.0
      %834 = vmatprep.subr.mxu0 0.0
      %835 = vmatpush1.msra.mxu0 0.0
      %836 = vmatprep.subr.mxu0 0.0
      %837 = vmatpush1.msra.mxu0 0.0
      %838 = vmatprep.subr.mxu0 0.0
      %839 = vmatpush1.msra.mxu0 0.0
      %840 = vmatprep.subr.mxu0 0.0
      %841 = vmatpush1.msra.mxu0 0.0
      %842 = vmatprep.subr.mxu0 0.0
      %843 = vmatpush1.msra.mxu0 0.0
      %844 = vmatprep.subr.mxu0 0.0
      %845 = vmatpush1.msra.mxu0 0.0
      %846 = vmatprep.subr.mxu0 0.0
      %847 = vmatpush1.msra.mxu0 0.0
      %848 = vmatprep.subr.mxu0 0.0
      %849 = vmatpush1.msra.mxu0 0.0
      %850 = vmatprep.subr.mxu0 0.0
      %851 = vmatpush1.msra.mxu0 0.0
      %852 = vmatprep.subr.mxu0 0.0
      %853 = vmatpush1.msra.mxu0 0.0
      %854 = vmatprep.subr.mxu0 0.0
      %855 = vmatpush1.msra.mxu0 0.0
      %856 = vmatprep.subr.mxu0 0.0
      %857 = vmatpush1.msra.mxu0 0.0
      %858 = vmatprep.subr.mxu0 0.0
      %859 = vmatpush1.msra.mxu0 0.0
      %860 = vmatprep.subr.mxu0 0.0
      %861 = vmatpush1.msra.mxu0 0.0
      %862 = vmatprep.subr.mxu0 0.0
      %863 = vmatpush1.msra.mxu0 0.0
      %864 = vmatprep.mubr.f32.mxu0 0.0
      %v865 = vand.u32 %v636, 4294901760
      %v866 = vsub.f32 %v636, %v865
      %867 = vmatmul.mubr.f32.gmra.mrb[0].mxu0 %v866
      %v868 = vpop.f32.mrb[0].mxu0
      %v869 = vadd.f32 %v793, %v868
      %v870 = vpop.f32.mrb[0].mxu0
      %871 = vdwg.mxu0
      %872 = vmatprep.subr.mxu0 0.0
      %v873 = vand.u32 %v144, 4294901760
      %874 = vmatpush1.msra.mxu0 %v873
      %875 = vmatprep.subr.mxu0 0.0
      %v876 = vand.u32 %v145, 4294901760
      %877 = vmatpush1.msra.mxu0 %v876
      %878 = vmatprep.subr.mxu0 0.0
      %879 = vmatpush1.msra.mxu0 0.0
      %880 = vmatprep.subr.mxu0 0.0
      %881 = vmatpush1.msra.mxu0 0.0
      %882 = vmatprep.subr.mxu0 0.0
      %883 = vmatpush1.msra.mxu0 0.0
      %884 = vmatprep.subr.mxu0 0.0
      %885 = vmatpush1.msra.mxu0 0.0
      %886 = vmatprep.subr.mxu0 0.0
      %887 = vmatpush1.msra.mxu0 0.0
      %888 = vmatprep.subr.mxu0 0.0
      %889 = vmatpush1.msra.mxu0 0.0
      %890 = vmatprep.subr.mxu0 0.0
      %891 = vmatpush1.msra.mxu0 0.0
      %892 = vmatprep.subr.mxu0 0.0
      %893 = vmatpush1.msra.mxu0 0.0
      %894 = vmatprep.subr.mxu0 0.0
      %895 = vmatpush1.msra.mxu0 0.0
      %896 = vmatprep.subr.mxu0 0.0
      %897 = vmatpush1.msra.mxu0 0.0
      %898 = vmatprep.subr.mxu0 0.0
      %899 = vmatpush1.msra.mxu0 0.0
      %900 = vmatprep.subr.mxu0 0.0
      %901 = vmatpush1.msra.mxu0 0.0
      %902 = vmatprep.subr.mxu0 0.0
      %903 = vmatpush1.msra.mxu0 0.0
      %904 = vmatprep.subr.mxu0 0.0
      %905 = vmatpush1.msra.mxu0 0.0
      %906 = vmatprep.subr.mxu0 0.0
      %907 = vmatpush1.msra.mxu0 0.0
      %908 = vmatprep.subr.mxu0 0.0
      %909 = vmatpush1.msra.mxu0 0.0
      %910 = vmatprep.subr.mxu0 0.0
      %911 = vmatpush1.msra.mxu0 0.0
      %912 = vmatprep.subr.mxu0 0.0
      %913 = vmatpush1.msra.mxu0 0.0
      %914 = vmatprep.subr.mxu0 0.0
      %915 = vmatpush1.msra.mxu0 0.0
      %916 = vmatprep.subr.mxu0 0.0
      %917 = vmatpush1.msra.mxu0 0.0
      %918 = vmatprep.subr.mxu0 0.0
      %919 = vmatpush1.msra.mxu0 0.0
      %920 = vmatprep.subr.mxu0 0.0
      %921 = vmatpush1.msra.mxu0 0.0
      %922 = vmatprep.subr.mxu0 0.0
      %923 = vmatpush1.msra.mxu0 0.0
      %924 = vmatprep.subr.mxu0 0.0
      %925 = vmatpush1.msra.mxu0 0.0
      %926 = vmatprep.subr.mxu0 0.0
      %927 = vmatpush1.msra.mxu0 0.0
      %928 = vmatprep.subr.mxu0 0.0
      %929 = vmatpush1.msra.mxu0 0.0
      %930 = vmatprep.subr.mxu0 0.0
      %931 = vmatpush1.msra.mxu0 0.0
      %932 = vmatprep.subr.mxu0 0.0
      %933 = vmatpush1.msra.mxu0 0.0
      %934 = vmatprep.subr.mxu0 0.0
      %935 = vmatpush1.msra.mxu0 0.0
      %936 = vmatprep.subr.mxu0 0.0
      %937 = vmatpush1.msra.mxu0 0.0
      %938 = vmatprep.mubr.f32.mxu0 0.0
      %v939 = vand.u32 %v636, 4294901760
      %v940 = vsub.f32 %v636, %v939
      %v941 = vand.u32 %v940, 4294901760
      %942 = vmatmul.mubr.f32.gmra.mrb[0].mxu0 %v941
      %v943 = vpop.f32.mrb[0].mxu0
      %v944 = vadd.f32 %v869, %v943
      %v945 = vpop.f32.mrb[0].mxu0
      %946 = vdwg.mxu0
      %947 = vmatprep.subr.mxu0 0.0
      %v948 = vand.u32 %v144, 4294901760
      %v949 = vsub.f32 %v144, %v948
      %v950 = vand.u32 %v949, 4294901760
      %951 = vmatpush1.msra.mxu0 %v950
      %952 = vmatprep.subr.mxu0 0.0
      %v953 = vand.u32 %v145, 4294901760
      %v954 = vsub.f32 %v145, %v953
      %v955 = vand.u32 %v954, 4294901760
      %956 = vmatpush1.msra.mxu0 %v955
      %957 = vmatprep.subr.mxu0 0.0
      %958 = vmatpush1.msra.mxu0 0.0
      %959 = vmatprep.subr.mxu0 0.0
      %960 = vmatpush1.msra.mxu0 0.0
      %961 = vmatprep.subr.mxu0 0.0
      %962 = vmatpush1.msra.mxu0 0.0
      %963 = vmatprep.subr.mxu0 0.0
      %964 = vmatpush1.msra.mxu0 0.0
      %965 = vmatprep.subr.mxu0 0.0
      %966 = vmatpush1.msra.mxu0 0.0
      %967 = vmatprep.subr.mxu0 0.0
      %968 = vmatpush1.msra.mxu0 0.0
      %969 = vmatprep.subr.mxu0 0.0
      %970 = vmatpush1.msra.mxu0 0.0
      %971 = vmatprep.subr.mxu0 0.0
      %972 = vmatpush1.msra.mxu0 0.0
      %973 = vmatprep.subr.mxu0 0.0
      %974 = vmatpush1.msra.mxu0 0.0
      %975 = vmatprep.subr.mxu0 0.0
      %976 = vmatpush1.msra.mxu0 0.0
      %977 = vmatprep.subr.mxu0 0.0
      %978 = vmatpush1.msra.mxu0 0.0
      %979 = vmatprep.subr.mxu0 0.0
      %980 = vmatpush1.msra.mxu0 0.0
      %981 = vmatprep.subr.mxu0 0.0
      %982 = vmatpush1.msra.mxu0 0.0
      %983 = vmatprep.subr.mxu0 0.0
      %984 = vmatpush1.msra.mxu0 0.0
      %985 = vmatprep.subr.mxu0 0.0
      %986 = vmatpush1.msra.mxu0 0.0
      %987 = vmatprep.subr.mxu0 0.0
      %988 = vmatpush1.msra.mxu0 0.0
      %989 = vmatprep.subr.mxu0 0.0
      %990 = vmatpush1.msra.mxu0 0.0
      %991 = vmatprep.subr.mxu0 0.0
      %992 = vmatpush1.msra.mxu0 0.0
      %993 = vmatprep.subr.mxu0 0.0
      %994 = vmatpush1.msra.mxu0 0.0
      %995 = vmatprep.subr.mxu0 0.0
      %996 = vmatpush1.msra.mxu0 0.0
      %997 = vmatprep.subr.mxu0 0.0
      %998 = vmatpush1.msra.mxu0 0.0
      %999 = vmatprep.subr.mxu0 0.0
      %1000 = vmatpush1.msra.mxu0 0.0
      %1001 = vmatprep.subr.mxu0 0.0
      %1002 = vmatpush1.msra.mxu0 0.0
      %1003 = vmatprep.subr.mxu0 0.0
      %1004 = vmatpush1.msra.mxu0 0.0
      %1005 = vmatprep.subr.mxu0 0.0
      %1006 = vmatpush1.msra.mxu0 0.0
      %1007 = vmatprep.subr.mxu0 0.0
      %1008 = vmatpush1.msra.mxu0 0.0
      %1009 = vmatprep.subr.mxu0 0.0
      %1010 = vmatpush1.msra.mxu0 0.0
      %1011 = vmatprep.subr.mxu0 0.0
      %1012 = vmatpush1.msra.mxu0 0.0
      %1013 = vmatprep.subr.mxu0 0.0
      %1014 = vmatpush1.msra.mxu0 0.0
      %1015 = vmatprep.subr.mxu0 0.0
      %1016 = vmatpush1.msra.mxu0 0.0
      %1017 = vmatprep.mubr.f32.mxu0 0.0
      %v1018 = vand.u32 %v636, 4294901760
      %1019 = vmatmul.mubr.f32.gmra.mrb[0].mxu0 %v1018
      %v1020 = vpop.f32.mrb[0].mxu0
      %v1021 = vadd.f32 %v944, %v1020
      %v1022 = vpop.f32.mrb[0].mxu0
      %1023 = vdwg.mxu0
      %1024 = vmatprep.subr.mxu0 0.0
      %v1025 = vand.u32 %v144, 4294901760
      %1026 = vmatpush1.msra.mxu0 %v1025
      %1027 = vmatprep.subr.mxu0 0.0
      %v1028 = vand.u32 %v145, 4294901760
      %1029 = vmatpush1.msra.mxu0 %v1028
      %1030 = vmatprep.subr.mxu0 0.0
      %1031 = vmatpush1.msra.mxu0 0.0
      %1032 = vmatprep.subr.mxu0 0.0
      %1033 = vmatpush1.msra.mxu0 0.0
      %1034 = vmatprep.subr.mxu0 0.0
      %1035 = vmatpush1.msra.mxu0 0.0
      %1036 = vmatprep.subr.mxu0 0.0
      %1037 = vmatpush1.msra.mxu0 0.0
      %1038 = vmatprep.subr.mxu0 0.0
      %1039 = vmatpush1.msra.mxu0 0.0
      %1040 = vmatprep.subr.mxu0 0.0
      %1041 = vmatpush1.msra.mxu0 0.0
      %1042 = vmatprep.subr.mxu0 0.0
      %1043 = vmatpush1.msra.mxu0 0.0
      %1044 = vmatprep.subr.mxu0 0.0
      %1045 = vmatpush1.msra.mxu0 0.0
      %1046 = vmatprep.subr.mxu0 0.0
      %1047 = vmatpush1.msra.mxu0 0.0
      %1048 = vmatprep.subr.mxu0 0.0
      %1049 = vmatpush1.msra.mxu0 0.0
      %1050 = vmatprep.subr.mxu0 0.0
      %1051 = vmatpush1.msra.mxu0 0.0
      %1052 = vmatprep.subr.mxu0 0.0
      %1053 = vmatpush1.msra.mxu0 0.0
      %1054 = vmatprep.subr.mxu0 0.0
      %1055 = vmatpush1.msra.mxu0 0.0
      %1056 = vmatprep.subr.mxu0 0.0
      %1057 = vmatpush1.msra.mxu0 0.0
      %1058 = vmatprep.subr.mxu0 0.0
      %1059 = vmatpush1.msra.mxu0 0.0
      %1060 = vmatprep.subr.mxu0 0.0
      %1061 = vmatpush1.msra.mxu0 0.0
      %1062 = vmatprep.subr.mxu0 0.0
      %1063 = vmatpush1.msra.mxu0 0.0
      %1064 = vmatprep.subr.mxu0 0.0
      %1065 = vmatpush1.msra.mxu0 0.0
      %1066 = vmatprep.subr.mxu0 0.0
      %1067 = vmatpush1.msra.mxu0 0.0
      %1068 = vmatprep.subr.mxu0 0.0
      %1069 = vmatpush1.msra.mxu0 0.0
      %1070 = vmatprep.subr.mxu0 0.0
      %1071 = vmatpush1.msra.mxu0 0.0
      %1072 = vmatprep.subr.mxu0 0.0
      %1073 = vmatpush1.msra.mxu0 0.0
      %1074 = vmatprep.subr.mxu0 0.0
      %1075 = vmatpush1.msra.mxu0 0.0
      %1076 = vmatprep.subr.mxu0 0.0
      %1077 = vmatpush1.msra.mxu0 0.0
      %1078 = vmatprep.subr.mxu0 0.0
      %1079 = vmatpush1.msra.mxu0 0.0
      %1080 = vmatprep.subr.mxu0 0.0
      %1081 = vmatpush1.msra.mxu0 0.0
      %1082 = vmatprep.subr.mxu0 0.0
      %1083 = vmatpush1.msra.mxu0 0.0
      %1084 = vmatprep.subr.mxu0 0.0
      %1085 = vmatpush1.msra.mxu0 0.0
      %1086 = vmatprep.subr.mxu0 0.0
      %1087 = vmatpush1.msra.mxu0 0.0
      %1088 = vmatprep.subr.mxu0 0.0
      %1089 = vmatpush1.msra.mxu0 0.0
      %1090 = vmatprep.mubr.f32.mxu0 0.0
      %v1091 = vand.u32 %v636, 4294901760
      %1092 = vmatmul.mubr.f32.gmra.mrb[0].mxu0 %v1091
      %v1093 = vpop.f32.mrb[0].mxu0
      %v1094 = vadd.f32 %v1021, %v1093
      %v1095 = vpop.f32.mrb[0].mxu0
      %1096 = vdwg.mxu0
      %v1097 = vadd.f32 %v624, %v1094
      %v1098 = vxor.u32 %v1097, 2147483648
      %v1099 = vmul.f32 %v1098, 1.442695
      %v1100 = vpow.pop %v1099
      %v1101 = vadd.f32 %v1100, 1.0
      %v1102 = vrcp.pop %v1101
      %v1103 = vmul.f32 1.0, %v1102
      %1105 = vrot.lane.b32.xlu0 %v1094, 96
      %v1106 = vpop.permute.xlu0 %1105
      %v1108 = vmul.f32 %v1103, %v1106
      %1110 = vrot.lane.b32.xlu0 %v1108, 32
      %v1111 = vpop.permute.xlu0 %1110
      %v1113 = vadd.f32 %v624, %v1111
      %v1114 = vtanh.pop %v1113
      %v1115 = vsub.f32 1.0, %v1103
      %1117 = vrot.lane.b32.xlu0 %v1114, 112
      %v1118 = vpop.permute.xlu0 %1117
      %v1120 = vmul.f32 %v1115, %v1118
      %v1121 = vmul.f32 %v1103, %v154
      %v1122 = vadd.f32 %v1120, %v1121
      %v1123 = vstv %s149
      %vm1124 = vcmp.lt.s32.totalorder %v1123, %v141
      %v1125 = vsel %vm1124, 1, 0
      %1126 = vset.pattern.permute.xlu0 0
      %1127 = vperm.xlu0 %1126, %v1125
      %v1128 = vpop.permute.xlu0 %1127
      %vm1129 = vcmp.eq.s32.totalorder %v1128, 1
      %v1130 = vsel %vm1129, %v1122, 0.0
      %1132 = vrot.lane.b32.xlu0 %v1130, 112
      %v1133 = vpop.permute.xlu0 %1132
      %s1135 = scalar_lea.vmem [#allocation2], %s155
      %vm1136 = vcmask 123904
      %1137 = vst.msk [vmem:[%s1135] sm:$0x3] %vm1136, %v1133
      %v1138 = vsel %vm1129, %v1122, %v154
    $region90: #{tpu_custom_call.1} parent=1 // loop_footer
      %s153 = sadd.s32 1, %s149
    $region91: #{tpu_custom_call.1} parent=1 // loop_footer_branch
      %148 = sbr.rel target = $region87
    $region92: #{tpu_custom_call.1} parent=1 // loop_exit
      _
    %s1139 = scalar_lea.vmem %s2, 16
    %v1140 = vld [vmem:[%s1139] sm:$0xff]
    %v1141 = vld [vmem:[%s1139 + $0x8] sm:$0xff]
    %s1142 = scalar_lea.vmem [#allocation5], 16
    %v1143 = vld [vmem:[%s1142] sm:$0xff]
    %v1144 = vld [vmem:[%s1142 + $0x8] sm:$0xff]
    %s1145 = scalar_lea.vmem [#allocation8], 1
    %v1146 = vld [vmem:[%s1145] sm:$0x1]
    %s1147 = scalar_lea.vmem [#allocation10], 1
    %v1148 = vld [vmem:[%s1147] sm:$0x1]
    loop: start=0, step=1, limit=8
    $region93: #{tpu_custom_call.1} parent=1 // loop_pre_header
      _
    $region94: #{tpu_custom_call.1} parent=1 // loop_header
      %s1150 = sphi 0, %s1154
      %p1151 = scmp.ge.s32.totalorder %s1150, 8
      %v1155 = vphi 0.0, %v2140
    $region95: #{tpu_custom_call.1} parent=1 // loop_header_branch
      %1153 = sbr.rel (%p1151) target = $region99
    $region96: #{tpu_custom_call.1} parent=1 // loop_body
      %s1156 = ssub.s32 7, %s1150
      %s1157 = smul.u32 %s1156, 2
      %s1158 = scalar_lea.vmem %s0, %s1157
      %v1159 = vld [vmem:[%s1158] sm:$0x3]
      %v1161 = vlaneseq
      %v1162 = vshrl.u32 %v1161, 7
      %v1163 = vsub.s32 0, %v1162
      %v1164 = vrot.slane %v1146, %v1163
      %vm1166 = vcmask 130048
      %v1168 = vsel %vm1166, %v1159, 0
      %1170 = vmatprep.subr.mxu0 0.0
      %v1171 = vand.u32 %v1140, 4294901760
      %1172 = vmatpush1.msra.mxu0 %v1171
      %1173 = vmatprep.subr.mxu0 0.0
      %v1174 = vand.u32 %v1141, 4294901760
      %1175 = vmatpush1.msra.mxu0 %v1174
      %1176 = vmatprep.subr.mxu0 0.0
      %1177 = vmatpush1.msra.mxu0 0.0
      %1178 = vmatprep.subr.mxu0 0.0
      %1179 = vmatpush1.msra.mxu0 0.0
      %1180 = vmatprep.subr.mxu0 0.0
      %1181 = vmatpush1.msra.mxu0 0.0
      %1182 = vmatprep.subr.mxu0 0.0
      %1183 = vmatpush1.msra.mxu0 0.0
      %1184 = vmatprep.subr.mxu0 0.0
      %1185 = vmatpush1.msra.mxu0 0.0
      %1186 = vmatprep.subr.mxu0 0.0
      %1187 = vmatpush1.msra.mxu0 0.0
      %1188 = vmatprep.subr.mxu0 0.0
      %1189 = vmatpush1.msra.mxu0 0.0
      %1190 = vmatprep.subr.mxu0 0.0
      %1191 = vmatpush1.msra.mxu0 0.0
      %1192 = vmatprep.subr.mxu0 0.0
      %1193 = vmatpush1.msra.mxu0 0.0
      %1194 = vmatprep.subr.mxu0 0.0
      %1195 = vmatpush1.msra.mxu0 0.0
      %1196 = vmatprep.subr.mxu0 0.0
      %1197 = vmatpush1.msra.mxu0 0.0
      %1198 = vmatprep.subr.mxu0 0.0
      %1199 = vmatpush1.msra.mxu0 0.0
      %1200 = vmatprep.subr.mxu0 0.0
      %1201 = vmatpush1.msra.mxu0 0.0
      %1202 = vmatprep.subr.mxu0 0.0
      %1203 = vmatpush1.msra.mxu0 0.0
      %1204 = vmatprep.subr.mxu0 0.0
      %1205 = vmatpush1.msra.mxu0 0.0
      %1206 = vmatprep.subr.mxu0 0.0
      %1207 = vmatpush1.msra.mxu0 0.0
      %1208 = vmatprep.subr.mxu0 0.0
      %1209 = vmatpush1.msra.mxu0 0.0
      %1210 = vmatprep.subr.mxu0 0.0
      %1211 = vmatpush1.msra.mxu0 0.0
      %1212 = vmatprep.subr.mxu0 0.0
      %1213 = vmatpush1.msra.mxu0 0.0
      %1214 = vmatprep.subr.mxu0 0.0
      %1215 = vmatpush1.msra.mxu0 0.0
      %1216 = vmatprep.subr.mxu0 0.0
      %1217 = vmatpush1.msra.mxu0 0.0
      %1218 = vmatprep.subr.mxu0 0.0
      %1219 = vmatpush1.msra.mxu0 0.0
      %1220 = vmatprep.subr.mxu0 0.0
      %1221 = vmatpush1.msra.mxu0 0.0
      %1222 = vmatprep.subr.mxu0 0.0
      %1223 = vmatpush1.msra.mxu0 0.0
      %1224 = vmatprep.subr.mxu0 0.0
      %1225 = vmatpush1.msra.mxu0 0.0
      %1226 = vmatprep.subr.mxu0 0.0
      %1227 = vmatpush1.msra.mxu0 0.0
      %1228 = vmatprep.subr.mxu0 0.0
      %1229 = vmatpush1.msra.mxu0 0.0
      %1230 = vmatprep.subr.mxu0 0.0
      %1231 = vmatpush1.msra.mxu0 0.0
      %1232 = vmatprep.subr.mxu0 0.0
      %1233 = vmatpush1.msra.mxu0 0.0
      %1234 = vmatprep.subr.mxu0 0.0
      %1235 = vmatpush1.msra.mxu0 0.0
      %1236 = vmatprep.mubr.f32.mxu0 0.0
      %v1237 = vand.u32 %v1168, 4294901760
      %v1238 = vsub.f32 %v1168, %v1237
      %v1239 = vand.u32 %v1238, 4294901760
      %v1240 = vsub.f32 %v1238, %v1239
      %v1241 = vand.u32 %v1240, 4294901760
      %1242 = vmatmul.mubr.f32.gmra.mrb[0].mxu0 %v1241
      %v1243 = vpop.f32.mrb[0].mxu0
      %v1244 = vadd.f32 %v1164, %v1243
      %v1245 = vpop.f32.mrb[0].mxu0
      %1246 = vdwg.mxu0
      %1247 = vmatprep.subr.mxu0 0.0
      %v1248 = vand.u32 %v1140, 4294901760
      %v1249 = vsub.f32 %v1140, %v1248
      %v1250 = vand.u32 %v1249, 4294901760
      %v1251 = vsub.f32 %v1249, %v1250
      %v1252 = vand.u32 %v1251, 4294901760
      %1253 = vmatpush1.msra.mxu0 %v1252
      %1254 = vmatprep.subr.mxu0 0.0
      %v1255 = vand.u32 %v1141, 4294901760
      %v1256 = vsub.f32 %v1141, %v1255
      %v1257 = vand.u32 %v1256, 4294901760
      %v1258 = vsub.f32 %v1256, %v1257
      %v1259 = vand.u32 %v1258, 4294901760
      %1260 = vmatpush1.msra.mxu0 %v1259
      %1261 = vmatprep.subr.mxu0 0.0
      %1262 = vmatpush1.msra.mxu0 0.0
      %1263 = vmatprep.subr.mxu0 0.0
      %1264 = vmatpush1.msra.mxu0 0.0
      %1265 = vmatprep.subr.mxu0 0.0
      %1266 = vmatpush1.msra.mxu0 0.0
      %1267 = vmatprep.subr.mxu0 0.0
      %1268 = vmatpush1.msra.mxu0 0.0
      %1269 = vmatprep.subr.mxu0 0.0
      %1270 = vmatpush1.msra.mxu0 0.0
      %1271 = vmatprep.subr.mxu0 0.0
      %1272 = vmatpush1.msra.mxu0 0.0
      %1273 = vmatprep.subr.mxu0 0.0
      %1274 = vmatpush1.msra.mxu0 0.0
      %1275 = vmatprep.subr.mxu0 0.0
      %1276 = vmatpush1.msra.mxu0 0.0
      %1277 = vmatprep.subr.mxu0 0.0
      %1278 = vmatpush1.msra.mxu0 0.0
      %1279 = vmatprep.subr.mxu0 0.0
      %1280 = vmatpush1.msra.mxu0 0.0
      %1281 = vmatprep.subr.mxu0 0.0
      %1282 = vmatpush1.msra.mxu0 0.0
      %1283 = vmatprep.subr.mxu0 0.0
      %1284 = vmatpush1.msra.mxu0 0.0
      %1285 = vmatprep.subr.mxu0 0.0
      %1286 = vmatpush1.msra.mxu0 0.0
      %1287 = vmatprep.subr.mxu0 0.0
      %1288 = vmatpush1.msra.mxu0 0.0
      %1289 = vmatprep.subr.mxu0 0.0
      %1290 = vmatpush1.msra.mxu0 0.0
      %1291 = vmatprep.subr.mxu0 0.0
      %1292 = vmatpush1.msra.mxu0 0.0
      %1293 = vmatprep.subr.mxu0 0.0
      %1294 = vmatpush1.msra.mxu0 0.0
      %1295 = vmatprep.subr.mxu0 0.0
      %1296 = vmatpush1.msra.mxu0 0.0
      %1297 = vmatprep.subr.mxu0 0.0
      %1298 = vmatpush1.msra.mxu0 0.0
      %1299 = vmatprep.subr.mxu0 0.0
      %1300 = vmatpush1.msra.mxu0 0.0
      %1301 = vmatprep.subr.mxu0 0.0
      %1302 = vmatpush1.msra.mxu0 0.0
      %1303 = vmatprep.subr.mxu0 0.0
      %1304 = vmatpush1.msra.mxu0 0.0
      %1305 = vmatprep.subr.mxu0 0.0
      %1306 = vmatpush1.msra.mxu0 0.0
      %1307 = vmatprep.subr.mxu0 0.0
      %1308 = vmatpush1.msra.mxu0 0.0
      %1309 = vmatprep.subr.mxu0 0.0
      %1310 = vmatpush1.msra.mxu0 0.0
      %1311 = vmatprep.subr.mxu0 0.0
      %1312 = vmatpush1.msra.mxu0 0.0
      %1313 = vmatprep.subr.mxu0 0.0
      %1314 = vmatpush1.msra.mxu0 0.0
      %1315 = vmatprep.subr.mxu0 0.0
      %1316 = vmatpush1.msra.mxu0 0.0
      %1317 = vmatprep.subr.mxu0 0.0
      %1318 = vmatpush1.msra.mxu0 0.0
      %1319 = vmatprep.subr.mxu0 0.0
      %1320 = vmatpush1.msra.mxu0 0.0
      %1321 = vmatprep.mubr.f32.mxu0 0.0
      %v1322 = vand.u32 %v1168, 4294901760
      %1323 = vmatmul.mubr.f32.gmra.mrb[0].mxu0 %v1322
      %v1324 = vpop.f32.mrb[0].mxu0
      %v1325 = vadd.f32 %v1244, %v1324
      %v1326 = vpop.f32.mrb[0].mxu0
      %1327 = vdwg.mxu0
      %1328 = vmatprep.subr.mxu0 0.0
      %v1329 = vand.u32 %v1140, 4294901760
      %v1330 = vsub.f32 %v1140, %v1329
      %1331 = vmatpush1.msra.mxu0 %v1330
      %1332 = vmatprep.subr.mxu0 0.0
      %v1333 = vand.u32 %v1141, 4294901760
      %v1334 = vsub.f32 %v1141, %v1333
      %1335 = vmatpush1.msra.mxu0 %v1334
      %1336 = vmatprep.subr.mxu0 0.0
      %1337 = vmatpush1.msra.mxu0 0.0
      %1338 = vmatprep.subr.mxu0 0.0
      %1339 = vmatpush1.msra.mxu0 0.0
      %1340 = vmatprep.subr.mxu0 0.0
      %1341 = vmatpush1.msra.mxu0 0.0
      %1342 = vmatprep.subr.mxu0 0.0
      %1343 = vmatpush1.msra.mxu0 0.0
      %1344 = vmatprep.subr.mxu0 0.0
      %1345 = vmatpush1.msra.mxu0 0.0
      %1346 = vmatprep.subr.mxu0 0.0
      %1347 = vmatpush1.msra.mxu0 0.0
      %1348 = vmatprep.subr.mxu0 0.0
      %1349 = vmatpush1.msra.mxu0 0.0
      %1350 = vmatprep.subr.mxu0 0.0
      %1351 = vmatpush1.msra.mxu0 0.0
      %1352 = vmatprep.subr.mxu0 0.0
      %1353 = vmatpush1.msra.mxu0 0.0
      %1354 = vmatprep.subr.mxu0 0.0
      %1355 = vmatpush1.msra.mxu0 0.0
      %1356 = vmatprep.subr.mxu0 0.0
      %1357 = vmatpush1.msra.mxu0 0.0
      %1358 = vmatprep.subr.mxu0 0.0
      %1359 = vmatpush1.msra.mxu0 0.0
      %1360 = vmatprep.subr.mxu0 0.0
      %1361 = vmatpush1.msra.mxu0 0.0
      %1362 = vmatprep.subr.mxu0 0.0
      %1363 = vmatpush1.msra.mxu0 0.0
      %1364 = vmatprep.subr.mxu0 0.0
      %1365 = vmatpush1.msra.mxu0 0.0
      %1366 = vmatprep.subr.mxu0 0.0
      %1367 = vmatpush1.msra.mxu0 0.0
      %1368 = vmatprep.subr.mxu0 0.0
      %1369 = vmatpush1.msra.mxu0 0.0
      %1370 = vmatprep.subr.mxu0 0.0
      %1371 = vmatpush1.msra.mxu0 0.0
      %1372 = vmatprep.subr.mxu0 0.0
      %1373 = vmatpush1.msra.mxu0 0.0
      %1374 = vmatprep.subr.mxu0 0.0
      %1375 = vmatpush1.msra.mxu0 0.0
      %1376 = vmatprep.subr.mxu0 0.0
      %1377 = vmatpush1.msra.mxu0 0.0
      %1378 = vmatprep.subr.mxu0 0.0
      %1379 = vmatpush1.msra.mxu0 0.0
      %1380 = vmatprep.subr.mxu0 0.0
      %1381 = vmatpush1.msra.mxu0 0.0
      %1382 = vmatprep.subr.mxu0 0.0
      %1383 = vmatpush1.msra.mxu0 0.0
      %1384 = vmatprep.subr.mxu0 0.0
      %1385 = vmatpush1.msra.mxu0 0.0
      %1386 = vmatprep.subr.mxu0 0.0
      %1387 = vmatpush1.msra.mxu0 0.0
      %1388 = vmatprep.subr.mxu0 0.0
      %1389 = vmatpush1.msra.mxu0 0.0
      %1390 = vmatprep.subr.mxu0 0.0
      %1391 = vmatpush1.msra.mxu0 0.0
      %1392 = vmatprep.subr.mxu0 0.0
      %1393 = vmatpush1.msra.mxu0 0.0
      %1394 = vmatprep.subr.mxu0 0.0
      %1395 = vmatpush1.msra.mxu0 0.0
      %1396 = vmatprep.mubr.f32.mxu0 0.0
      %v1397 = vand.u32 %v1168, 4294901760
      %v1398 = vsub.f32 %v1168, %v1397
      %1399 = vmatmul.mubr.f32.gmra.mrb[0].mxu0 %v1398
      %v1400 = vpop.f32.mrb[0].mxu0
      %v1401 = vadd.f32 %v1325, %v1400
      %v1402 = vpop.f32.mrb[0].mxu0
      %1403 = vdwg.mxu0
      %1404 = vmatprep.subr.mxu0 0.0
      %v1405 = vand.u32 %v1140, 4294901760
      %1406 = vmatpush1.msra.mxu0 %v1405
      %1407 = vmatprep.subr.mxu0 0.0
      %v1408 = vand.u32 %v1141, 4294901760
      %1409 = vmatpush1.msra.mxu0 %v1408
      %1410 = vmatprep.subr.mxu0 0.0
      %1411 = vmatpush1.msra.mxu0 0.0
      %1412 = vmatprep.subr.mxu0 0.0
      %1413 = vmatpush1.msra.mxu0 0.0
      %1414 = vmatprep.subr.mxu0 0.0
      %1415 = vmatpush1.msra.mxu0 0.0
      %1416 = vmatprep.subr.mxu0 0.0
      %1417 = vmatpush1.msra.mxu0 0.0
      %1418 = vmatprep.subr.mxu0 0.0
      %1419 = vmatpush1.msra.mxu0 0.0
      %1420 = vmatprep.subr.mxu0 0.0
      %1421 = vmatpush1.msra.mxu0 0.0
      %1422 = vmatprep.subr.mxu0 0.0
      %1423 = vmatpush1.msra.mxu0 0.0
      %1424 = vmatprep.subr.mxu0 0.0
      %1425 = vmatpush1.msra.mxu0 0.0
      %1426 = vmatprep.subr.mxu0 0.0
      %1427 = vmatpush1.msra.mxu0 0.0
      %1428 = vmatprep.subr.mxu0 0.0
      %1429 = vmatpush1.msra.mxu0 0.0
      %1430 = vmatprep.subr.mxu0 0.0
      %1431 = vmatpush1.msra.mxu0 0.0
      %1432 = vmatprep.subr.mxu0 0.0
      %1433 = vmatpush1.msra.mxu0 0.0
      %1434 = vmatprep.subr.mxu0 0.0
      %1435 = vmatpush1.msra.mxu0 0.0
      %1436 = vmatprep.subr.mxu0 0.0
      %1437 = vmatpush1.msra.mxu0 0.0
      %1438 = vmatprep.subr.mxu0 0.0
      %1439 = vmatpush1.msra.mxu0 0.0
      %1440 = vmatprep.subr.mxu0 0.0
      %1441 = vmatpush1.msra.mxu0 0.0
      %1442 = vmatprep.subr.mxu0 0.0
      %1443 = vmatpush1.msra.mxu0 0.0
      %1444 = vmatprep.subr.mxu0 0.0
      %1445 = vmatpush1.msra.mxu0 0.0
      %1446 = vmatprep.subr.mxu0 0.0
      %1447 = vmatpush1.msra.mxu0 0.0
      %1448 = vmatprep.subr.mxu0 0.0
      %1449 = vmatpush1.msra.mxu0 0.0
      %1450 = vmatprep.subr.mxu0 0.0
      %1451 = vmatpush1.msra.mxu0 0.0
      %1452 = vmatprep.subr.mxu0 0.0
      %1453 = vmatpush1.msra.mxu0 0.0
      %1454 = vmatprep.subr.mxu0 0.0
      %1455 = vmatpush1.msra.mxu0 0.0
      %1456 = vmatprep.subr.mxu0 0.0
      %1457 = vmatpush1.msra.mxu0 0.0
      %1458 = vmatprep.subr.mxu0 0.0
      %1459 = vmatpush1.msra.mxu0 0.0
      %1460 = vmatprep.subr.mxu0 0.0
      %1461 = vmatpush1.msra.mxu0 0.0
      %1462 = vmatprep.subr.mxu0 0.0
      %1463 = vmatpush1.msra.mxu0 0.0
      %1464 = vmatprep.subr.mxu0 0.0
      %1465 = vmatpush1.msra.mxu0 0.0
      %1466 = vmatprep.subr.mxu0 0.0
      %1467 = vmatpush1.msra.mxu0 0.0
      %1468 = vmatprep.subr.mxu0 0.0
      %1469 = vmatpush1.msra.mxu0 0.0
      %1470 = vmatprep.mubr.f32.mxu0 0.0
      %v1471 = vand.u32 %v1168, 4294901760
      %v1472 = vsub.f32 %v1168, %v1471
      %v1473 = vand.u32 %v1472, 4294901760
      %1474 = vmatmul.mubr.f32.gmra.mrb[0].mxu0 %v1473
      %v1475 = vpop.f32.mrb[0].mxu0
      %v1476 = vadd.f32 %v1401, %v1475
      %v1477 = vpop.f32.mrb[0].mxu0
      %1478 = vdwg.mxu0
      %1479 = vmatprep.subr.mxu0 0.0
      %v1480 = vand.u32 %v1140, 4294901760
      %v1481 = vsub.f32 %v1140, %v1480
      %v1482 = vand.u32 %v1481, 4294901760
      %1483 = vmatpush1.msra.mxu0 %v1482
      %1484 = vmatprep.subr.mxu0 0.0
      %v1485 = vand.u32 %v1141, 4294901760
      %v1486 = vsub.f32 %v1141, %v1485
      %v1487 = vand.u32 %v1486, 4294901760
      %1488 = vmatpush1.msra.mxu0 %v1487
      %1489 = vmatprep.subr.mxu0 0.0
      %1490 = vmatpush1.msra.mxu0 0.0
      %1491 = vmatprep.subr.mxu0 0.0
      %1492 = vmatpush1.msra.mxu0 0.0
      %1493 = vmatprep.subr.mxu0 0.0
      %1494 = vmatpush1.msra.mxu0 0.0
      %1495 = vmatprep.subr.mxu0 0.0
      %1496 = vmatpush1.msra.mxu0 0.0
      %1497 = vmatprep.subr.mxu0 0.0
      %1498 = vmatpush1.msra.mxu0 0.0
      %1499 = vmatprep.subr.mxu0 0.0
      %1500 = vmatpush1.msra.mxu0 0.0
      %1501 = vmatprep.subr.mxu0 0.0
      %1502 = vmatpush1.msra.mxu0 0.0
      %1503 = vmatprep.subr.mxu0 0.0
      %1504 = vmatpush1.msra.mxu0 0.0
      %1505 = vmatprep.subr.mxu0 0.0
      %1506 = vmatpush1.msra.mxu0 0.0
      %1507 = vmatprep.subr.mxu0 0.0
      %1508 = vmatpush1.msra.mxu0 0.0
      %1509 = vmatprep.subr.mxu0 0.0
      %1510 = vmatpush1.msra.mxu0 0.0
      %1511 = vmatprep.subr.mxu0 0.0
      %1512 = vmatpush1.msra.mxu0 0.0
      %1513 = vmatprep.subr.mxu0 0.0
      %1514 = vmatpush1.msra.mxu0 0.0
      %1515 = vmatprep.subr.mxu0 0.0
      %1516 = vmatpush1.msra.mxu0 0.0
      %1517 = vmatprep.subr.mxu0 0.0
      %1518 = vmatpush1.msra.mxu0 0.0
      %1519 = vmatprep.subr.mxu0 0.0
      %1520 = vmatpush1.msra.mxu0 0.0
      %1521 = vmatprep.subr.mxu0 0.0
      %1522 = vmatpush1.msra.mxu0 0.0
      %1523 = vmatprep.subr.mxu0 0.0
      %1524 = vmatpush1.msra.mxu0 0.0
      %1525 = vmatprep.subr.mxu0 0.0
      %1526 = vmatpush1.msra.mxu0 0.0
      %1527 = vmatprep.subr.mxu0 0.0
      %1528 = vmatpush1.msra.mxu0 0.0
      %1529 = vmatprep.subr.mxu0 0.0
      %1530 = vmatpush1.msra.mxu0 0.0
      %1531 = vmatprep.subr.mxu0 0.0
      %1532 = vmatpush1.msra.mxu0 0.0
      %1533 = vmatprep.subr.mxu0 0.0
      %1534 = vmatpush1.msra.mxu0 0.0
      %1535 = vmatprep.subr.mxu0 0.0
      %1536 = vmatpush1.msra.mxu0 0.0
      %1537 = vmatprep.subr.mxu0 0.0
      %1538 = vmatpush1.msra.mxu0 0.0
      %1539 = vmatprep.subr.mxu0 0.0
      %1540 = vmatpush1.msra.mxu0 0.0
      %1541 = vmatprep.subr.mxu0 0.0
      %1542 = vmatpush1.msra.mxu0 0.0
      %1543 = vmatprep.subr.mxu0 0.0
      %1544 = vmatpush1.msra.mxu0 0.0
      %1545 = vmatprep.subr.mxu0 0.0
      %1546 = vmatpush1.msra.mxu0 0.0
      %1547 = vmatprep.subr.mxu0 0.0
      %1548 = vmatpush1.msra.mxu0 0.0
      %1549 = vmatprep.mubr.f32.mxu0 0.0
      %v1550 = vand.u32 %v1168, 4294901760
      %1551 = vmatmul.mubr.f32.gmra.mrb[0].mxu0 %v1550
      %v1552 = vpop.f32.mrb[0].mxu0
      %v1553 = vadd.f32 %v1476, %v1552
      %v1554 = vpop.f32.mrb[0].mxu0
      %1555 = vdwg.mxu0
      %1556 = vmatprep.subr.mxu0 0.0
      %v1557 = vand.u32 %v1140, 4294901760
      %1558 = vmatpush1.msra.mxu0 %v1557
      %1559 = vmatprep.subr.mxu0 0.0
      %v1560 = vand.u32 %v1141, 4294901760
      %1561 = vmatpush1.msra.mxu0 %v1560
      %1562 = vmatprep.subr.mxu0 0.0
      %1563 = vmatpush1.msra.mxu0 0.0
      %1564 = vmatprep.subr.mxu0 0.0
      %1565 = vmatpush1.msra.mxu0 0.0
      %1566 = vmatprep.subr.mxu0 0.0
      %1567 = vmatpush1.msra.mxu0 0.0
      %1568 = vmatprep.subr.mxu0 0.0
      %1569 = vmatpush1.msra.mxu0 0.0
      %1570 = vmatprep.subr.mxu0 0.0
      %1571 = vmatpush1.msra.mxu0 0.0
      %1572 = vmatprep.subr.mxu0 0.0
      %1573 = vmatpush1.msra.mxu0 0.0
      %1574 = vmatprep.subr.mxu0 0.0
      %1575 = vmatpush1.msra.mxu0 0.0
      %1576 = vmatprep.subr.mxu0 0.0
      %1577 = vmatpush1.msra.mxu0 0.0
      %1578 = vmatprep.subr.mxu0 0.0
      %1579 = vmatpush1.msra.mxu0 0.0
      %1580 = vmatprep.subr.mxu0 0.0
      %1581 = vmatpush1.msra.mxu0 0.0
      %1582 = vmatprep.subr.mxu0 0.0
      %1583 = vmatpush1.msra.mxu0 0.0
      %1584 = vmatprep.subr.mxu0 0.0
      %1585 = vmatpush1.msra.mxu0 0.0
      %1586 = vmatprep.subr.mxu0 0.0
      %1587 = vmatpush1.msra.mxu0 0.0
      %1588 = vmatprep.subr.mxu0 0.0
      %1589 = vmatpush1.msra.mxu0 0.0
      %1590 = vmatprep.subr.mxu0 0.0
      %1591 = vmatpush1.msra.mxu0 0.0
      %1592 = vmatprep.subr.mxu0 0.0
      %1593 = vmatpush1.msra.mxu0 0.0
      %1594 = vmatprep.subr.mxu0 0.0
      %1595 = vmatpush1.msra.mxu0 0.0
      %1596 = vmatprep.subr.mxu0 0.0
      %1597 = vmatpush1.msra.mxu0 0.0
      %1598 = vmatprep.subr.mxu0 0.0
      %1599 = vmatpush1.msra.mxu0 0.0
      %1600 = vmatprep.subr.mxu0 0.0
      %1601 = vmatpush1.msra.mxu0 0.0
      %1602 = vmatprep.subr.mxu0 0.0
      %1603 = vmatpush1.msra.mxu0 0.0
      %1604 = vmatprep.subr.mxu0 0.0
      %1605 = vmatpush1.msra.mxu0 0.0
      %1606 = vmatprep.subr.mxu0 0.0
      %1607 = vmatpush1.msra.mxu0 0.0
      %1608 = vmatprep.subr.mxu0 0.0
      %1609 = vmatpush1.msra.mxu0 0.0
      %1610 = vmatprep.subr.mxu0 0.0
      %1611 = vmatpush1.msra.mxu0 0.0
      %1612 = vmatprep.subr.mxu0 0.0
      %1613 = vmatpush1.msra.mxu0 0.0
      %1614 = vmatprep.subr.mxu0 0.0
      %1615 = vmatpush1.msra.mxu0 0.0
      %1616 = vmatprep.subr.mxu0 0.0
      %1617 = vmatpush1.msra.mxu0 0.0
      %1618 = vmatprep.subr.mxu0 0.0
      %1619 = vmatpush1.msra.mxu0 0.0
      %1620 = vmatprep.subr.mxu0 0.0
      %1621 = vmatpush1.msra.mxu0 0.0
      %1622 = vmatprep.mubr.f32.mxu0 0.0
      %v1623 = vand.u32 %v1168, 4294901760
      %1624 = vmatmul.mubr.f32.gmra.mrb[0].mxu0 %v1623
      %v1625 = vpop.f32.mrb[0].mxu0
      %v1626 = vadd.f32 %v1553, %v1625
      %v1627 = vpop.f32.mrb[0].mxu0
      %1628 = vdwg.mxu0
      %v1630 = vlaneseq
      %v1631 = vshrl.u32 %v1630, 7
      %v1632 = vsub.s32 0, %v1631
      %v1633 = vrot.slane %v1148, %v1632
      %1636 = vrot.lane.b32.xlu0 %v1155, 112
      %v1637 = vpop.permute.xlu0 %1636
      %v1638 = vsel %vm1166, %v1637, 0
      %1640 = vmatprep.subr.mxu0 0.0
      %v1641 = vand.u32 %v1143, 4294901760
      %1642 = vmatpush1.msra.mxu0 %v1641
      %1643 = vmatprep.subr.mxu0 0.0
      %v1644 = vand.u32 %v1144, 4294901760
      %1645 = vmatpush1.msra.mxu0 %v1644
      %1646 = vmatprep.subr.mxu0 0.0
      %1647 = vmatpush1.msra.mxu0 0.0
      %1648 = vmatprep.subr.mxu0 0.0
      %1649 = vmatpush1.msra.mxu0 0.0
      %1650 = vmatprep.subr.mxu0 0.0
      %1651 = vmatpush1.msra.mxu0 0.0
      %1652 = vmatprep.subr.mxu0 0.0
      %1653 = vmatpush1.msra.mxu0 0.0
      %1654 = vmatprep.subr.mxu0 0.0
      %1655 = vmatpush1.msra.mxu0 0.0
      %1656 = vmatprep.subr.mxu0 0.0
      %1657 = vmatpush1.msra.mxu0 0.0
      %1658 = vmatprep.subr.mxu0 0.0
      %1659 = vmatpush1.msra.mxu0 0.0
      %1660 = vmatprep.subr.mxu0 0.0
      %1661 = vmatpush1.msra.mxu0 0.0
      %1662 = vmatprep.subr.mxu0 0.0
      %1663 = vmatpush1.msra.mxu0 0.0
      %1664 = vmatprep.subr.mxu0 0.0
      %1665 = vmatpush1.msra.mxu0 0.0
      %1666 = vmatprep.subr.mxu0 0.0
      %1667 = vmatpush1.msra.mxu0 0.0
      %1668 = vmatprep.subr.mxu0 0.0
      %1669 = vmatpush1.msra.mxu0 0.0
      %1670 = vmatprep.subr.mxu0 0.0
      %1671 = vmatpush1.msra.mxu0 0.0
      %1672 = vmatprep.subr.mxu0 0.0
      %1673 = vmatpush1.msra.mxu0 0.0
      %1674 = vmatprep.subr.mxu0 0.0
      %1675 = vmatpush1.msra.mxu0 0.0
      %1676 = vmatprep.subr.mxu0 0.0
      %1677 = vmatpush1.msra.mxu0 0.0
      %1678 = vmatprep.subr.mxu0 0.0
      %1679 = vmatpush1.msra.mxu0 0.0
      %1680 = vmatprep.subr.mxu0 0.0
      %1681 = vmatpush1.msra.mxu0 0.0
      %1682 = vmatprep.subr.mxu0 0.0
      %1683 = vmatpush1.msra.mxu0 0.0
      %1684 = vmatprep.subr.mxu0 0.0
      %1685 = vmatpush1.msra.mxu0 0.0
      %1686 = vmatprep.subr.mxu0 0.0
      %1687 = vmatpush1.msra.mxu0 0.0
      %1688 = vmatprep.subr.mxu0 0.0
      %1689 = vmatpush1.msra.mxu0 0.0
      %1690 = vmatprep.subr.mxu0 0.0
      %1691 = vmatpush1.msra.mxu0 0.0
      %1692 = vmatprep.subr.mxu0 0.0
      %1693 = vmatpush1.msra.mxu0 0.0
      %1694 = vmatprep.subr.mxu0 0.0
      %1695 = vmatpush1.msra.mxu0 0.0
      %1696 = vmatprep.subr.mxu0 0.0
      %1697 = vmatpush1.msra.mxu0 0.0
      %1698 = vmatprep.subr.mxu0 0.0
      %1699 = vmatpush1.msra.mxu0 0.0
      %1700 = vmatprep.subr.mxu0 0.0
      %1701 = vmatpush1.msra.mxu0 0.0
      %1702 = vmatprep.subr.mxu0 0.0
      %1703 = vmatpush1.msra.mxu0 0.0
      %1704 = vmatprep.subr.mxu0 0.0
      %1705 = vmatpush1.msra.mxu0 0.0
      %1706 = vmatprep.mubr.f32.mxu0 0.0
      %v1707 = vand.u32 %v1638, 4294901760
      %v1708 = vsub.f32 %v1638, %v1707
      %v1709 = vand.u32 %v1708, 4294901760
      %v1710 = vsub.f32 %v1708, %v1709
      %v1711 = vand.u32 %v1710, 4294901760
      %1712 = vmatmul.mubr.f32.gmra.mrb[0].mxu0 %v1711
      %v1713 = vpop.f32.mrb[0].mxu0
      %v1714 = vadd.f32 %v1633, %v1713
      %v1715 = vpop.f32.mrb[0].mxu0
      %1716 = vdwg.mxu0
      %1717 = vmatprep.subr.mxu0 0.0
      %v1718 = vand.u32 %v1143, 4294901760
      %v1719 = vsub.f32 %v1143, %v1718
      %v1720 = vand.u32 %v1719, 4294901760
      %v1721 = vsub.f32 %v1719, %v1720
      %v1722 = vand.u32 %v1721, 4294901760
      %1723 = vmatpush1.msra.mxu0 %v1722
      %1724 = vmatprep.subr.mxu0 0.0
      %v1725 = vand.u32 %v1144, 4294901760
      %v1726 = vsub.f32 %v1144, %v1725
      %v1727 = vand.u32 %v1726, 4294901760
      %v1728 = vsub.f32 %v1726, %v1727
      %v1729 = vand.u32 %v1728, 4294901760
      %1730 = vmatpush1.msra.mxu0 %v1729
      %1731 = vmatprep.subr.mxu0 0.0
      %1732 = vmatpush1.msra.mxu0 0.0
      %1733 = vmatprep.subr.mxu0 0.0
      %1734 = vmatpush1.msra.mxu0 0.0
      %1735 = vmatprep.subr.mxu0 0.0
      %1736 = vmatpush1.msra.mxu0 0.0
      %1737 = vmatprep.subr.mxu0 0.0
      %1738 = vmatpush1.msra.mxu0 0.0
      %1739 = vmatprep.subr.mxu0 0.0
      %1740 = vmatpush1.msra.mxu0 0.0
      %1741 = vmatprep.subr.mxu0 0.0
      %1742 = vmatpush1.msra.mxu0 0.0
      %1743 = vmatprep.subr.mxu0 0.0
      %1744 = vmatpush1.msra.mxu0 0.0
      %1745 = vmatprep.subr.mxu0 0.0
      %1746 = vmatpush1.msra.mxu0 0.0
      %1747 = vmatprep.subr.mxu0 0.0
      %1748 = vmatpush1.msra.mxu0 0.0
      %1749 = vmatprep.subr.mxu0 0.0
      %1750 = vmatpush1.msra.mxu0 0.0
      %1751 = vmatprep.subr.mxu0 0.0
      %1752 = vmatpush1.msra.mxu0 0.0
      %1753 = vmatprep.subr.mxu0 0.0
      %1754 = vmatpush1.msra.mxu0 0.0
      %1755 = vmatprep.subr.mxu0 0.0
      %1756 = vmatpush1.msra.mxu0 0.0
      %1757 = vmatprep.subr.mxu0 0.0
      %1758 = vmatpush1.msra.mxu0 0.0
      %1759 = vmatprep.subr.mxu0 0.0
      %1760 = vmatpush1.msra.mxu0 0.0
      %1761 = vmatprep.subr.mxu0 0.0
      %1762 = vmatpush1.msra.mxu0 0.0
      %1763 = vmatprep.subr.mxu0 0.0
      %1764 = vmatpush1.msra.mxu0 0.0
      %1765 = vmatprep.subr.mxu0 0.0
      %1766 = vmatpush1.msra.mxu0 0.0
      %1767 = vmatprep.subr.mxu0 0.0
      %1768 = vmatpush1.msra.mxu0 0.0
      %1769 = vmatprep.subr.mxu0 0.0
      %1770 = vmatpush1.msra.mxu0 0.0
      %1771 = vmatprep.subr.mxu0 0.0
      %1772 = vmatpush1.msra.mxu0 0.0
      %1773 = vmatprep.subr.mxu0 0.0
      %1774 = vmatpush1.msra.mxu0 0.0
      %1775 = vmatprep.subr.mxu0 0.0
      %1776 = vmatpush1.msra.mxu0 0.0
      %1777 = vmatprep.subr.mxu0 0.0
      %1778 = vmatpush1.msra.mxu0 0.0
      %1779 = vmatprep.subr.mxu0 0.0
      %1780 = vmatpush1.msra.mxu0 0.0
      %1781 = vmatprep.subr.mxu0 0.0
      %1782 = vmatpush1.msra.mxu0 0.0
      %1783 = vmatprep.subr.mxu0 0.0
      %1784 = vmatpush1.msra.mxu0 0.0
      %1785 = vmatprep.subr.mxu0 0.0
      %1786 = vmatpush1.msra.mxu0 0.0
      %1787 = vmatprep.subr.mxu0 0.0
      %1788 = vmatpush1.msra.mxu0 0.0
      %1789 = vmatprep.subr.mxu0 0.0
      %1790 = vmatpush1.msra.mxu0 0.0
      %1791 = vmatprep.mubr.f32.mxu0 0.0
      %v1792 = vand.u32 %v1638, 4294901760
      %1793 = vmatmul.mubr.f32.gmra.mrb[0].mxu0 %v1792
      %v1794 = vpop.f32.mrb[0].mxu0
      %v1795 = vadd.f32 %v1714, %v1794
      %v1796 = vpop.f32.mrb[0].mxu0
      %1797 = vdwg.mxu0
      %1798 = vmatprep.subr.mxu0 0.0
      %v1799 = vand.u32 %v1143, 4294901760
      %v1800 = vsub.f32 %v1143, %v1799
      %1801 = vmatpush1.msra.mxu0 %v1800
      %1802 = vmatprep.subr.mxu0 0.0
      %v1803 = vand.u32 %v1144, 4294901760
      %v1804 = vsub.f32 %v1144, %v1803
      %1805 = vmatpush1.msra.mxu0 %v1804
      %1806 = vmatprep.subr.mxu0 0.0
      %1807 = vmatpush1.msra.mxu0 0.0
      %1808 = vmatprep.subr.mxu0 0.0
      %1809 = vmatpush1.msra.mxu0 0.0
      %1810 = vmatprep.subr.mxu0 0.0
      %1811 = vmatpush1.msra.mxu0 0.0
      %1812 = vmatprep.subr.mxu0 0.0
      %1813 = vmatpush1.msra.mxu0 0.0
      %1814 = vmatprep.subr.mxu0 0.0
      %1815 = vmatpush1.msra.mxu0 0.0
      %1816 = vmatprep.subr.mxu0 0.0
      %1817 = vmatpush1.msra.mxu0 0.0
      %1818 = vmatprep.subr.mxu0 0.0
      %1819 = vmatpush1.msra.mxu0 0.0
      %1820 = vmatprep.subr.mxu0 0.0
      %1821 = vmatpush1.msra.mxu0 0.0
      %1822 = vmatprep.subr.mxu0 0.0
      %1823 = vmatpush1.msra.mxu0 0.0
      %1824 = vmatprep.subr.mxu0 0.0
      %1825 = vmatpush1.msra.mxu0 0.0
      %1826 = vmatprep.subr.mxu0 0.0
      %1827 = vmatpush1.msra.mxu0 0.0
      %1828 = vmatprep.subr.mxu0 0.0
      %1829 = vmatpush1.msra.mxu0 0.0
      %1830 = vmatprep.subr.mxu0 0.0
      %1831 = vmatpush1.msra.mxu0 0.0
      %1832 = vmatprep.subr.mxu0 0.0
      %1833 = vmatpush1.msra.mxu0 0.0
      %1834 = vmatprep.subr.mxu0 0.0
      %1835 = vmatpush1.msra.mxu0 0.0
      %1836 = vmatprep.subr.mxu0 0.0
      %1837 = vmatpush1.msra.mxu0 0.0
      %1838 = vmatprep.subr.mxu0 0.0
      %1839 = vmatpush1.msra.mxu0 0.0
      %1840 = vmatprep.subr.mxu0 0.0
      %1841 = vmatpush1.msra.mxu0 0.0
      %1842 = vmatprep.subr.mxu0 0.0
      %1843 = vmatpush1.msra.mxu0 0.0
      %1844 = vmatprep.subr.mxu0 0.0
      %1845 = vmatpush1.msra.mxu0 0.0
      %1846 = vmatprep.subr.mxu0 0.0
      %1847 = vmatpush1.msra.mxu0 0.0
      %1848 = vmatprep.subr.mxu0 0.0
      %1849 = vmatpush1.msra.mxu0 0.0
      %1850 = vmatprep.subr.mxu0 0.0
      %1851 = vmatpush1.msra.mxu0 0.0
      %1852 = vmatprep.subr.mxu0 0.0
      %1853 = vmatpush1.msra.mxu0 0.0
      %1854 = vmatprep.subr.mxu0 0.0
      %1855 = vmatpush1.msra.mxu0 0.0
      %1856 = vmatprep.subr.mxu0 0.0
      %1857 = vmatpush1.msra.mxu0 0.0
      %1858 = vmatprep.subr.mxu0 0.0
      %1859 = vmatpush1.msra.mxu0 0.0
      %1860 = vmatprep.subr.mxu0 0.0
      %1861 = vmatpush1.msra.mxu0 0.0
      %1862 = vmatprep.subr.mxu0 0.0
      %1863 = vmatpush1.msra.mxu0 0.0
      %1864 = vmatprep.subr.mxu0 0.0
      %1865 = vmatpush1.msra.mxu0 0.0
      %1866 = vmatprep.mubr.f32.mxu0 0.0
      %v1867 = vand.u32 %v1638, 4294901760
      %v1868 = vsub.f32 %v1638, %v1867
      %1869 = vmatmul.mubr.f32.gmra.mrb[0].mxu0 %v1868
      %v1870 = vpop.f32.mrb[0].mxu0
      %v1871 = vadd.f32 %v1795, %v1870
      %v1872 = vpop.f32.mrb[0].mxu0
      %1873 = vdwg.mxu0
      %1874 = vmatprep.subr.mxu0 0.0
      %v1875 = vand.u32 %v1143, 4294901760
      %1876 = vmatpush1.msra.mxu0 %v1875
      %1877 = vmatprep.subr.mxu0 0.0
      %v1878 = vand.u32 %v1144, 4294901760
      %1879 = vmatpush1.msra.mxu0 %v1878
      %1880 = vmatprep.subr.mxu0 0.0
      %1881 = vmatpush1.msra.mxu0 0.0
      %1882 = vmatprep.subr.mxu0 0.0
      %1883 = vmatpush1.msra.mxu0 0.0
      %1884 = vmatprep.subr.mxu0 0.0
      %1885 = vmatpush1.msra.mxu0 0.0
      %1886 = vmatprep.subr.mxu0 0.0
      %1887 = vmatpush1.msra.mxu0 0.0
      %1888 = vmatprep.subr.mxu0 0.0
      %1889 = vmatpush1.msra.mxu0 0.0
      %1890 = vmatprep.subr.mxu0 0.0
      %1891 = vmatpush1.msra.mxu0 0.0
      %1892 = vmatprep.subr.mxu0 0.0
      %1893 = vmatpush1.msra.mxu0 0.0
      %1894 = vmatprep.subr.mxu0 0.0
      %1895 = vmatpush1.msra.mxu0 0.0
      %1896 = vmatprep.subr.mxu0 0.0
      %1897 = vmatpush1.msra.mxu0 0.0
      %1898 = vmatprep.subr.mxu0 0.0
      %1899 = vmatpush1.msra.mxu0 0.0
      %1900 = vmatprep.subr.mxu0 0.0
      %1901 = vmatpush1.msra.mxu0 0.0
      %1902 = vmatprep.subr.mxu0 0.0
      %1903 = vmatpush1.msra.mxu0 0.0
      %1904 = vmatprep.subr.mxu0 0.0
      %1905 = vmatpush1.msra.mxu0 0.0
      %1906 = vmatprep.subr.mxu0 0.0
      %1907 = vmatpush1.msra.mxu0 0.0
      %1908 = vmatprep.subr.mxu0 0.0
      %1909 = vmatpush1.msra.mxu0 0.0
      %1910 = vmatprep.subr.mxu0 0.0
      %1911 = vmatpush1.msra.mxu0 0.0
      %1912 = vmatprep.subr.mxu0 0.0
      %1913 = vmatpush1.msra.mxu0 0.0
      %1914 = vmatprep.subr.mxu0 0.0
      %1915 = vmatpush1.msra.mxu0 0.0
      %1916 = vmatprep.subr.mxu0 0.0
      %1917 = vmatpush1.msra.mxu0 0.0
      %1918 = vmatprep.subr.mxu0 0.0
      %1919 = vmatpush1.msra.mxu0 0.0
      %1920 = vmatprep.subr.mxu0 0.0
      %1921 = vmatpush1.msra.mxu0 0.0
      %1922 = vmatprep.subr.mxu0 0.0
      %1923 = vmatpush1.msra.mxu0 0.0
      %1924 = vmatprep.subr.mxu0 0.0
      %1925 = vmatpush1.msra.mxu0 0.0
      %1926 = vmatprep.subr.mxu0 0.0
      %1927 = vmatpush1.msra.mxu0 0.0
      %1928 = vmatprep.subr.mxu0 0.0
      %1929 = vmatpush1.msra.mxu0 0.0
      %1930 = vmatprep.subr.mxu0 0.0
      %1931 = vmatpush1.msra.mxu0 0.0
      %1932 = vmatprep.subr.mxu0 0.0
      %1933 = vmatpush1.msra.mxu0 0.0
      %1934 = vmatprep.subr.mxu0 0.0
      %1935 = vmatpush1.msra.mxu0 0.0
      %1936 = vmatprep.subr.mxu0 0.0
      %1937 = vmatpush1.msra.mxu0 0.0
      %1938 = vmatprep.subr.mxu0 0.0
      %1939 = vmatpush1.msra.mxu0 0.0
      %1940 = vmatprep.mubr.f32.mxu0 0.0
      %v1941 = vand.u32 %v1638, 4294901760
      %v1942 = vsub.f32 %v1638, %v1941
      %v1943 = vand.u32 %v1942, 4294901760
      %1944 = vmatmul.mubr.f32.gmra.mrb[0].mxu0 %v1943
      %v1945 = vpop.f32.mrb[0].mxu0
      %v1946 = vadd.f32 %v1871, %v1945
      %v1947 = vpop.f32.mrb[0].mxu0
      %1948 = vdwg.mxu0
      %1949 = vmatprep.subr.mxu0 0.0
      %v1950 = vand.u32 %v1143, 4294901760
      %v1951 = vsub.f32 %v1143, %v1950
      %v1952 = vand.u32 %v1951, 4294901760
      %1953 = vmatpush1.msra.mxu0 %v1952
      %1954 = vmatprep.subr.mxu0 0.0
      %v1955 = vand.u32 %v1144, 4294901760
      %v1956 = vsub.f32 %v1144, %v1955
      %v1957 = vand.u32 %v1956, 4294901760
      %1958 = vmatpush1.msra.mxu0 %v1957
      %1959 = vmatprep.subr.mxu0 0.0
      %1960 = vmatpush1.msra.mxu0 0.0
      %1961 = vmatprep.subr.mxu0 0.0
      %1962 = vmatpush1.msra.mxu0 0.0
      %1963 = vmatprep.subr.mxu0 0.0
      %1964 = vmatpush1.msra.mxu0 0.0
      %1965 = vmatprep.subr.mxu0 0.0
      %1966 = vmatpush1.msra.mxu0 0.0
      %1967 = vmatprep.subr.mxu0 0.0
      %1968 = vmatpush1.msra.mxu0 0.0
      %1969 = vmatprep.subr.mxu0 0.0
      %1970 = vmatpush1.msra.mxu0 0.0
      %1971 = vmatprep.subr.mxu0 0.0
      %1972 = vmatpush1.msra.mxu0 0.0
      %1973 = vmatprep.subr.mxu0 0.0
      %1974 = vmatpush1.msra.mxu0 0.0
      %1975 = vmatprep.subr.mxu0 0.0
      %1976 = vmatpush1.msra.mxu0 0.0
      %1977 = vmatprep.subr.mxu0 0.0
      %1978 = vmatpush1.msra.mxu0 0.0
      %1979 = vmatprep.subr.mxu0 0.0
      %1980 = vmatpush1.msra.mxu0 0.0
      %1981 = vmatprep.subr.mxu0 0.0
      %1982 = vmatpush1.msra.mxu0 0.0
      %1983 = vmatprep.subr.mxu0 0.0
      %1984 = vmatpush1.msra.mxu0 0.0
      %1985 = vmatprep.subr.mxu0 0.0
      %1986 = vmatpush1.msra.mxu0 0.0
      %1987 = vmatprep.subr.mxu0 0.0
      %1988 = vmatpush1.msra.mxu0 0.0
      %1989 = vmatprep.subr.mxu0 0.0
      %1990 = vmatpush1.msra.mxu0 0.0
      %1991 = vmatprep.subr.mxu0 0.0
      %1992 = vmatpush1.msra.mxu0 0.0
      %1993 = vmatprep.subr.mxu0 0.0
      %1994 = vmatpush1.msra.mxu0 0.0
      %1995 = vmatprep.subr.mxu0 0.0
      %1996 = vmatpush1.msra.mxu0 0.0
      %1997 = vmatprep.subr.mxu0 0.0
      %1998 = vmatpush1.msra.mxu0 0.0
      %1999 = vmatprep.subr.mxu0 0.0
      %2000 = vmatpush1.msra.mxu0 0.0
      %2001 = vmatprep.subr.mxu0 0.0
      %2002 = vmatpush1.msra.mxu0 0.0
      %2003 = vmatprep.subr.mxu0 0.0
      %2004 = vmatpush1.msra.mxu0 0.0
      %2005 = vmatprep.subr.mxu0 0.0
      %2006 = vmatpush1.msra.mxu0 0.0
      %2007 = vmatprep.subr.mxu0 0.0
      %2008 = vmatpush1.msra.mxu0 0.0
      %2009 = vmatprep.subr.mxu0 0.0
      %2010 = vmatpush1.msra.mxu0 0.0
      %2011 = vmatprep.subr.mxu0 0.0
      %2012 = vmatpush1.msra.mxu0 0.0
      %2013 = vmatprep.subr.mxu0 0.0
      %2014 = vmatpush1.msra.mxu0 0.0
      %2015 = vmatprep.subr.mxu0 0.0
      %2016 = vmatpush1.msra.mxu0 0.0
      %2017 = vmatprep.subr.mxu0 0.0
      %2018 = vmatpush1.msra.mxu0 0.0
      %2019 = vmatprep.mubr.f32.mxu0 0.0
      %v2020 = vand.u32 %v1638, 4294901760
      %2021 = vmatmul.mubr.f32.gmra.mrb[0].mxu0 %v2020
      %v2022 = vpop.f32.mrb[0].mxu0
      %v2023 = vadd.f32 %v1946, %v2022
      %v2024 = vpop.f32.mrb[0].mxu0
      %2025 = vdwg.mxu0
      %2026 = vmatprep.subr.mxu0 0.0
      %v2027 = vand.u32 %v1143, 4294901760
      %2028 = vmatpush1.msra.mxu0 %v2027
      %2029 = vmatprep.subr.mxu0 0.0
      %v2030 = vand.u32 %v1144, 4294901760
      %2031 = vmatpush1.msra.mxu0 %v2030
      %2032 = vmatprep.subr.mxu0 0.0
      %2033 = vmatpush1.msra.mxu0 0.0
      %2034 = vmatprep.subr.mxu0 0.0
      %2035 = vmatpush1.msra.mxu0 0.0
      %2036 = vmatprep.subr.mxu0 0.0
      %2037 = vmatpush1.msra.mxu0 0.0
      %2038 = vmatprep.subr.mxu0 0.0
      %2039 = vmatpush1.msra.mxu0 0.0
      %2040 = vmatprep.subr.mxu0 0.0
      %2041 = vmatpush1.msra.mxu0 0.0
      %2042 = vmatprep.subr.mxu0 0.0
      %2043 = vmatpush1.msra.mxu0 0.0
      %2044 = vmatprep.subr.mxu0 0.0
      %2045 = vmatpush1.msra.mxu0 0.0
      %2046 = vmatprep.subr.mxu0 0.0
      %2047 = vmatpush1.msra.mxu0 0.0
      %2048 = vmatprep.subr.mxu0 0.0
      %2049 = vmatpush1.msra.mxu0 0.0
      %2050 = vmatprep.subr.mxu0 0.0
      %2051 = vmatpush1.msra.mxu0 0.0
      %2052 = vmatprep.subr.mxu0 0.0
      %2053 = vmatpush1.msra.mxu0 0.0
      %2054 = vmatprep.subr.mxu0 0.0
      %2055 = vmatpush1.msra.mxu0 0.0
      %2056 = vmatprep.subr.mxu0 0.0
      %2057 = vmatpush1.msra.mxu0 0.0
      %2058 = vmatprep.subr.mxu0 0.0
      %2059 = vmatpush1.msra.mxu0 0.0
      %2060 = vmatprep.subr.mxu0 0.0
      %2061 = vmatpush1.msra.mxu0 0.0
      %2062 = vmatprep.subr.mxu0 0.0
      %2063 = vmatpush1.msra.mxu0 0.0
      %2064 = vmatprep.subr.mxu0 0.0
      %2065 = vmatpush1.msra.mxu0 0.0
      %2066 = vmatprep.subr.mxu0 0.0
      %2067 = vmatpush1.msra.mxu0 0.0
      %2068 = vmatprep.subr.mxu0 0.0
      %2069 = vmatpush1.msra.mxu0 0.0
      %2070 = vmatprep.subr.mxu0 0.0
      %2071 = vmatpush1.msra.mxu0 0.0
      %2072 = vmatprep.subr.mxu0 0.0
      %2073 = vmatpush1.msra.mxu0 0.0
      %2074 = vmatprep.subr.mxu0 0.0
      %2075 = vmatpush1.msra.mxu0 0.0
      %2076 = vmatprep.subr.mxu0 0.0
      %2077 = vmatpush1.msra.mxu0 0.0
      %2078 = vmatprep.subr.mxu0 0.0
      %2079 = vmatpush1.msra.mxu0 0.0
      %2080 = vmatprep.subr.mxu0 0.0
      %2081 = vmatpush1.msra.mxu0 0.0
      %2082 = vmatprep.subr.mxu0 0.0
      %2083 = vmatpush1.msra.mxu0 0.0
      %2084 = vmatprep.subr.mxu0 0.0
      %2085 = vmatpush1.msra.mxu0 0.0
      %2086 = vmatprep.subr.mxu0 0.0
      %2087 = vmatpush1.msra.mxu0 0.0
      %2088 = vmatprep.subr.mxu0 0.0
      %2089 = vmatpush1.msra.mxu0 0.0
      %2090 = vmatprep.subr.mxu0 0.0
      %2091 = vmatpush1.msra.mxu0 0.0
      %2092 = vmatprep.mubr.f32.mxu0 0.0
      %v2093 = vand.u32 %v1638, 4294901760
      %2094 = vmatmul.mubr.f32.gmra.mrb[0].mxu0 %v2093
      %v2095 = vpop.f32.mrb[0].mxu0
      %v2096 = vadd.f32 %v2023, %v2095
      %v2097 = vpop.f32.mrb[0].mxu0
      %2098 = vdwg.mxu0
      %v2099 = vadd.f32 %v1626, %v2096
      %v2100 = vxor.u32 %v2099, 2147483648
      %v2101 = vmul.f32 %v2100, 1.442695
      %v2102 = vpow.pop %v2101
      %v2103 = vadd.f32 %v2102, 1.0
      %v2104 = vrcp.pop %v2103
      %v2105 = vmul.f32 1.0, %v2104
      %2107 = vrot.lane.b32.xlu0 %v2096, 96
      %v2108 = vpop.permute.xlu0 %2107
      %v2110 = vmul.f32 %v2105, %v2108
      %2112 = vrot.lane.b32.xlu0 %v2110, 32
      %v2113 = vpop.permute.xlu0 %2112
      %v2115 = vadd.f32 %v1626, %v2113
      %v2116 = vtanh.pop %v2115
      %v2117 = vsub.f32 1.0, %v2105
      %2119 = vrot.lane.b32.xlu0 %v2116, 112
      %v2120 = vpop.permute.xlu0 %2119
      %v2122 = vmul.f32 %v2117, %v2120
      %v2123 = vmul.f32 %v2105, %v1155
      %v2124 = vadd.f32 %v2122, %v2123
      %v2125 = vstv %s1156
      %vm2126 = vcmp.lt.s32.totalorder %v2125, %v141
      %v2127 = vsel %vm2126, 1, 0
      %2128 = vset.pattern.permute.xlu0 0
      %2129 = vperm.xlu0 %2128, %v2127
      %v2130 = vpop.permute.xlu0 %2129
      %vm2131 = vcmp.eq.s32.totalorder %v2130, 1
      %v2132 = vsel %vm2131, %v2124, 0.0
      %2134 = vrot.lane.b32.xlu0 %v2132, 112
      %v2135 = vpop.permute.xlu0 %2134
      %s2137 = scalar_lea.vmem [#allocation3], %s1157
      %vm2138 = vcmask 123904
      %2139 = vst.msk [vmem:[%s2137] sm:$0x3] %vm2138, %v2135
      %v2140 = vsel %vm2131, %v2124, %v1155
    $region97: #{tpu_custom_call.1} parent=1 // loop_footer
      %s1154 = sadd.s32 1, %s1150
    $region98: #{tpu_custom_call.1} parent=1 // loop_footer_branch
      %1149 = sbr.rel target = $region94
    $region99: #{tpu_custom_call.1} parent=1 // loop_exit
      _
    %v2141 = vld [vmem:[#allocation2] sm:$0x3]
    %v2142 = vld [vmem:[#allocation2 + $0x2] sm:$0x3]
    %v2143 = vld [vmem:[#allocation2 + $0x4] sm:$0x3]
    %v2144 = vld [vmem:[#allocation2 + $0x6] sm:$0x3]
    %v2145 = vld [vmem:[#allocation2 + $0x8] sm:$0x3]
    %v2146 = vld [vmem:[#allocation2 + $0xa] sm:$0x3]
    %v2147 = vld [vmem:[#allocation2 + $0xc] sm:$0x3]
    %v2148 = vld [vmem:[#allocation2 + $0xe] sm:$0x3]
    %v2149 = vld [vmem:[#allocation3] sm:$0x3]
    %v2150 = vld [vmem:[#allocation3 + $0x2] sm:$0x3]
    %v2151 = vld [vmem:[#allocation3 + $0x4] sm:$0x3]
    %v2152 = vld [vmem:[#allocation3 + $0x6] sm:$0x3]
    %v2153 = vld [vmem:[#allocation3 + $0x8] sm:$0x3]
    %v2154 = vld [vmem:[#allocation3 + $0xa] sm:$0x3]
    %v2155 = vld [vmem:[#allocation3 + $0xc] sm:$0x3]
    %v2156 = vld [vmem:[#allocation3 + $0xe] sm:$0x3]
    %2165 = vrot.lane.b32.xlu0 %v2149, 16
    %v2166 = vpop.permute.xlu0 %2165
    %2167 = vrot.lane.b32.xlu0 %v2150, 16
    %v2168 = vpop.permute.xlu0 %2167
    %2169 = vrot.lane.b32.xlu0 %v2151, 16
    %v2170 = vpop.permute.xlu0 %2169
    %2171 = vrot.lane.b32.xlu0 %v2152, 16
    %v2172 = vpop.permute.xlu0 %2171
    %2173 = vrot.lane.b32.xlu0 %v2153, 16
    %v2174 = vpop.permute.xlu0 %2173
    %2175 = vrot.lane.b32.xlu0 %v2154, 16
    %v2176 = vpop.permute.xlu0 %2175
    %2177 = vrot.lane.b32.xlu0 %v2155, 16
    %v2178 = vpop.permute.xlu0 %2177
    %2179 = vrot.lane.b32.xlu0 %v2156, 16
    %v2180 = vpop.permute.xlu0 %2179
    %vm2189 = vcmask 130048
    %v2190 = vsel %vm2189, %v2141, %v2166
    %v2191 = vsel %vm2189, %v2142, %v2168
    %v2192 = vsel %vm2189, %v2143, %v2170
    %v2193 = vsel %vm2189, %v2144, %v2172
    %v2194 = vsel %vm2189, %v2145, %v2174
    %v2195 = vsel %vm2189, %v2146, %v2176
    %v2196 = vsel %vm2189, %v2147, %v2178
    %v2197 = vsel %vm2189, %v2148, %v2180
    %vm2198 = vcmask 254976
    %v2199 = vsel %vm2198, %v2190, 0.0
    %2200 = vadd.xlane.f32.xlu0 %v2199
    %v2201 = vpop.xlane.xlu0 %2200
    %v2202 = vsel %vm2198, %v2191, 0.0
    %2203 = vadd.xlane.f32.xlu0 %v2202
    %v2204 = vpop.xlane.xlu0 %2203
    %v2205 = vsel %vm2198, %v2192, 0.0
    %2206 = vadd.xlane.f32.xlu0 %v2205
    %v2207 = vpop.xlane.xlu0 %2206
    %v2208 = vsel %vm2198, %v2193, 0.0
    %2209 = vadd.xlane.f32.xlu0 %v2208
    %v2210 = vpop.xlane.xlu0 %2209
    %v2211 = vsel %vm2198, %v2194, 0.0
    %2212 = vadd.xlane.f32.xlu0 %v2211
    %v2213 = vpop.xlane.xlu0 %2212
    %v2214 = vsel %vm2198, %v2195, 0.0
    %2215 = vadd.xlane.f32.xlu0 %v2214
    %v2216 = vpop.xlane.xlu0 %2215
    %v2217 = vsel %vm2198, %v2196, 0.0
    %2218 = vadd.xlane.f32.xlu0 %v2217
    %v2219 = vpop.xlane.xlu0 %2218
    %v2220 = vsel %vm2198, %v2197, 0.0
    %2221 = vadd.xlane.f32.xlu0 %v2220
    %v2222 = vpop.xlane.xlu0 %2221
    %v2223 = vrcp.pop 32.0
    %v2224 = vmul.f32 %v2201, %v2223
    %v2225 = vmul.f32 %v2204, %v2223
    %v2226 = vmul.f32 %v2207, %v2223
    %v2227 = vmul.f32 %v2210, %v2223
    %v2228 = vmul.f32 %v2213, %v2223
    %v2229 = vmul.f32 %v2216, %v2223
    %v2230 = vmul.f32 %v2219, %v2223
    %v2231 = vmul.f32 %v2222, %v2223
    %v2232 = vsub.f32 %v2190, %v2224
    %v2233 = vsub.f32 %v2191, %v2225
    %v2234 = vsub.f32 %v2192, %v2226
    %v2235 = vsub.f32 %v2193, %v2227
    %v2236 = vsub.f32 %v2194, %v2228
    %v2237 = vsub.f32 %v2195, %v2229
    %v2238 = vsub.f32 %v2196, %v2230
    %v2239 = vsub.f32 %v2197, %v2231
    %v2240 = vmul.f32 %v2232, %v2232
    %v2241 = vmul.f32 %v2233, %v2233
    %v2242 = vmul.f32 %v2234, %v2234
    %v2243 = vmul.f32 %v2235, %v2235
    %v2244 = vmul.f32 %v2236, %v2236
    %v2245 = vmul.f32 %v2237, %v2237
    %v2246 = vmul.f32 %v2238, %v2238
    %v2247 = vmul.f32 %v2239, %v2239
    %v2248 = vsel %vm2198, %v2240, 0.0
    %2249 = vadd.xlane.f32.xlu0 %v2248
    %v2250 = vpop.xlane.xlu0 %2249
    %v2251 = vsel %vm2198, %v2241, 0.0
    %2252 = vadd.xlane.f32.xlu0 %v2251
    %v2253 = vpop.xlane.xlu0 %2252
    %v2254 = vsel %vm2198, %v2242, 0.0
    %2255 = vadd.xlane.f32.xlu0 %v2254
    %v2256 = vpop.xlane.xlu0 %2255
    %v2257 = vsel %vm2198, %v2243, 0.0
    %2258 = vadd.xlane.f32.xlu0 %v2257
    %v2259 = vpop.xlane.xlu0 %2258
    %v2260 = vsel %vm2198, %v2244, 0.0
    %2261 = vadd.xlane.f32.xlu0 %v2260
    %v2262 = vpop.xlane.xlu0 %2261
    %v2263 = vsel %vm2198, %v2245, 0.0
    %2264 = vadd.xlane.f32.xlu0 %v2263
    %v2265 = vpop.xlane.xlu0 %2264
    %v2266 = vsel %vm2198, %v2246, 0.0
    %2267 = vadd.xlane.f32.xlu0 %v2266
    %v2268 = vpop.xlane.xlu0 %2267
    %v2269 = vsel %vm2198, %v2247, 0.0
    %2270 = vadd.xlane.f32.xlu0 %v2269
    %v2271 = vpop.xlane.xlu0 %2270
    %v2272 = vmul.f32 %v2250, %v2223
    %v2273 = vmul.f32 %v2253, %v2223
    %v2274 = vmul.f32 %v2256, %v2223
    %v2275 = vmul.f32 %v2259, %v2223
    %v2276 = vmul.f32 %v2262, %v2223
    %v2277 = vmul.f32 %v2265, %v2223
    %v2278 = vmul.f32 %v2268, %v2223
    %v2279 = vmul.f32 %v2271, %v2223
    %v2280 = vadd.f32 %v2272, 1e-05
    %v2281 = vadd.f32 %v2273, 1e-05
    %v2282 = vadd.f32 %v2274, 1e-05
    %v2283 = vadd.f32 %v2275, 1e-05
    %v2284 = vadd.f32 %v2276, 1e-05
    %v2285 = vadd.f32 %v2277, 1e-05
    %v2286 = vadd.f32 %v2278, 1e-05
    %v2287 = vadd.f32 %v2279, 1e-05
    %v2288 = vrsqrt.pop %v2280
    %v2289 = vrsqrt.pop %v2281
    %v2290 = vrsqrt.pop %v2282
    %v2291 = vrsqrt.pop %v2283
    %v2292 = vrsqrt.pop %v2284
    %v2293 = vrsqrt.pop %v2285
    %v2294 = vrsqrt.pop %v2286
    %v2295 = vrsqrt.pop %v2287
    %v2296 = vmul.f32 %v2232, %v2288
    %v2297 = vmul.f32 %v2233, %v2289
    %v2298 = vmul.f32 %v2234, %v2290
    %v2299 = vmul.f32 %v2235, %v2291
    %v2300 = vmul.f32 %v2236, %v2292
    %v2301 = vmul.f32 %v2237, %v2293
    %v2302 = vmul.f32 %v2238, %v2294
    %v2303 = vmul.f32 %v2239, %v2295
    %v2304 = vld [vmem:[%s10] sm:$0x1]
    %v2306 = vlaneseq
    %v2307 = vshrl.u32 %v2306, 7
    %v2308 = vsub.s32 0, %v2307
    %v2309 = vrot.slane %v2304, %v2308
    %v2311 = vmul.f32 %v2296, %v2309
    %v2312 = vmul.f32 %v2297, %v2309
    %v2313 = vmul.f32 %v2298, %v2309
    %v2314 = vmul.f32 %v2299, %v2309
    %v2315 = vmul.f32 %v2300, %v2309
    %v2316 = vmul.f32 %v2301, %v2309
    %v2317 = vmul.f32 %v2302, %v2309
    %v2318 = vmul.f32 %v2303, %v2309
    %v2319 = vld [vmem:[#allocation16] sm:$0x1]
    %v2321 = vlaneseq
    %v2322 = vshrl.u32 %v2321, 7
    %v2323 = vsub.s32 0, %v2322
    %v2324 = vrot.slane %v2319, %v2323
    %v2326 = vadd.f32 %v2311, %v2324
    %v2327 = vadd.f32 %v2312, %v2324
    %v2328 = vadd.f32 %v2313, %v2324
    %v2329 = vadd.f32 %v2314, %v2324
    %v2330 = vadd.f32 %v2315, %v2324
    %v2331 = vadd.f32 %v2316, %v2324
    %v2332 = vadd.f32 %v2317, %v2324
    %v2333 = vadd.f32 %v2318, %v2324
    %2334 = vst.msk [vmem:[#allocation4] sm:$0x3] %vm2198, %v2326
    %2335 = vst.msk [vmem:[#allocation4 + $0x2] sm:$0x3] %vm2198, %v2327
    %2336 = vst.msk [vmem:[#allocation4 + $0x4] sm:$0x3] %vm2198, %v2328
    %2337 = vst.msk [vmem:[#allocation4 + $0x6] sm:$0x3] %vm2198, %v2329
    %2338 = vst.msk [vmem:[#allocation4 + $0x8] sm:$0x3] %vm2198, %v2330
    %2339 = vst.msk [vmem:[#allocation4 + $0xa] sm:$0x3] %vm2198, %v2331
    %2340 = vst.msk [vmem:[#allocation4 + $0xc] sm:$0x3] %vm2198, %v2332
    %2341 = vst.msk [vmem:[#allocation4 + $0xe] sm:$0x3] %vm2198, %v2333
    %v2342 = vld [vmem:[%s6] sm:$0xff]
    %v2343 = vld [vmem:[%s6 + $0x8] sm:$0xff]
    %v2344 = vld [vmem:[%s6 + $0x10] sm:$0xff]
    %v2345 = vld [vmem:[%s6 + $0x18] sm:$0xff]
    %v2346 = vld [vmem:[#allocation11] sm:$0xff]
    %v2347 = vld [vmem:[#allocation11 + $0x8] sm:$0xff]
    %v2348 = vld [vmem:[#allocation13] sm:$0x1]
    %v2349 = vld [vmem:[#allocation14] sm:$0x1]
    loop: start=0, step=1, limit=8
    $region100: #{tpu_custom_call.1} parent=1 // loop_pre_header
      _
    $region101: #{tpu_custom_call.1} parent=1 // loop_header
      %s2351 = sphi 0, %s2355
      %p2352 = scmp.ge.s32.totalorder %s2351, 8
      %v2356 = vphi 0.0, %v3358
    $region102: #{tpu_custom_call.1} parent=1 // loop_header_branch
      %2354 = sbr.rel (%p2352) target = $region106
    $region103: #{tpu_custom_call.1} parent=1 // loop_body
      %s2357 = smul.u32 %s2351, 2
      %s2358 = scalar_lea.vmem [#allocation4], %s2357
      %v2359 = vld [vmem:[%s2358] sm:$0x3]
      %v2361 = vlaneseq
      %v2362 = vshrl.u32 %v2361, 7
      %v2363 = vsub.s32 0, %v2362
      %v2364 = vrot.slane %v2348, %v2363
      %vm2366 = vcmask 261120
      %v2368 = vsel %vm2366, %v2359, 0
      %2370 = vmatprep.subr.mxu0 0.0
      %v2371 = vand.u32 %v2342, 4294901760
      %2372 = vmatpush1.msra.mxu0 %v2371
      %2373 = vmatprep.subr.mxu0 0.0
      %v2374 = vand.u32 %v2343, 4294901760
      %2375 = vmatpush1.msra.mxu0 %v2374
      %2376 = vmatprep.subr.mxu0 0.0
      %v2377 = vand.u32 %v2344, 4294901760
      %2378 = vmatpush1.msra.mxu0 %v2377
      %2379 = vmatprep.subr.mxu0 0.0
      %v2380 = vand.u32 %v2345, 4294901760
      %2381 = vmatpush1.msra.mxu0 %v2380
      %2382 = vmatprep.subr.mxu0 0.0
      %2383 = vmatpush1.msra.mxu0 0.0
      %2384 = vmatprep.subr.mxu0 0.0
      %2385 = vmatpush1.msra.mxu0 0.0
      %2386 = vmatprep.subr.mxu0 0.0
      %2387 = vmatpush1.msra.mxu0 0.0
      %2388 = vmatprep.subr.mxu0 0.0
      %2389 = vmatpush1.msra.mxu0 0.0
      %2390 = vmatprep.subr.mxu0 0.0
      %2391 = vmatpush1.msra.mxu0 0.0
      %2392 = vmatprep.subr.mxu0 0.0
      %2393 = vmatpush1.msra.mxu0 0.0
      %2394 = vmatprep.subr.mxu0 0.0
      %2395 = vmatpush1.msra.mxu0 0.0
      %2396 = vmatprep.subr.mxu0 0.0
      %2397 = vmatpush1.msra.mxu0 0.0
      %2398 = vmatprep.subr.mxu0 0.0
      %2399 = vmatpush1.msra.mxu0 0.0
      %2400 = vmatprep.subr.mxu0 0.0
      %2401 = vmatpush1.msra.mxu0 0.0
      %2402 = vmatprep.subr.mxu0 0.0
      %2403 = vmatpush1.msra.mxu0 0.0
      %2404 = vmatprep.subr.mxu0 0.0
      %2405 = vmatpush1.msra.mxu0 0.0
      %2406 = vmatprep.subr.mxu0 0.0
      %2407 = vmatpush1.msra.mxu0 0.0
      %2408 = vmatprep.subr.mxu0 0.0
      %2409 = vmatpush1.msra.mxu0 0.0
      %2410 = vmatprep.subr.mxu0 0.0
      %2411 = vmatpush1.msra.mxu0 0.0
      %2412 = vmatprep.subr.mxu0 0.0
      %2413 = vmatpush1.msra.mxu0 0.0
      %2414 = vmatprep.subr.mxu0 0.0
      %2415 = vmatpush1.msra.mxu0 0.0
      %2416 = vmatprep.subr.mxu0 0.0
      %2417 = vmatpush1.msra.mxu0 0.0
      %2418 = vmatprep.subr.mxu0 0.0
      %2419 = vmatpush1.msra.mxu0 0.0
      %2420 = vmatprep.subr.mxu0 0.0
      %2421 = vmatpush1.msra.mxu0 0.0
      %2422 = vmatprep.subr.mxu0 0.0
      %2423 = vmatpush1.msra.mxu0 0.0
      %2424 = vmatprep.subr.mxu0 0.0
      %2425 = vmatpush1.msra.mxu0 0.0
      %2426 = vmatprep.subr.mxu0 0.0
      %2427 = vmatpush1.msra.mxu0 0.0
      %2428 = vmatprep.subr.mxu0 0.0
      %2429 = vmatpush1.msra.mxu0 0.0
      %2430 = vmatprep.subr.mxu0 0.0
      %2431 = vmatpush1.msra.mxu0 0.0
      %2432 = vmatprep.subr.mxu0 0.0
      %2433 = vmatpush1.msra.mxu0 0.0
      %2434 = vmatprep.subr.mxu0 0.0
      %2435 = vmatpush1.msra.mxu0 0.0
      %2436 = vmatprep.subr.mxu0 0.0
      %2437 = vmatpush1.msra.mxu0 0.0
      %2438 = vmatprep.mubr.f32.mxu0 0.0
      %v2439 = vand.u32 %v2368, 4294901760
      %v2440 = vsub.f32 %v2368, %v2439
      %v2441 = vand.u32 %v2440, 4294901760
      %v2442 = vsub.f32 %v2440, %v2441
      %v2443 = vand.u32 %v2442, 4294901760
      %2444 = vmatmul.mubr.f32.gmra.mrb[0].mxu0 %v2443
      %v2445 = vpop.f32.mrb[0].mxu0
      %v2446 = vadd.f32 %v2364, %v2445
      %v2447 = vpop.f32.mrb[0].mxu0
      %2448 = vdwg.mxu0
      %2449 = vmatprep.subr.mxu0 0.0
      %v2450 = vand.u32 %v2342, 4294901760
      %v2451 = vsub.f32 %v2342, %v2450
      %v2452 = vand.u32 %v2451, 4294901760
      %v2453 = vsub.f32 %v2451, %v2452
      %v2454 = vand.u32 %v2453, 4294901760
      %2455 = vmatpush1.msra.mxu0 %v2454
      %2456 = vmatprep.subr.mxu0 0.0
      %v2457 = vand.u32 %v2343, 4294901760
      %v2458 = vsub.f32 %v2343, %v2457
      %v2459 = vand.u32 %v2458, 4294901760
      %v2460 = vsub.f32 %v2458, %v2459
      %v2461 = vand.u32 %v2460, 4294901760
      %2462 = vmatpush1.msra.mxu0 %v2461
      %2463 = vmatprep.subr.mxu0 0.0
      %v2464 = vand.u32 %v2344, 4294901760
      %v2465 = vsub.f32 %v2344, %v2464
      %v2466 = vand.u32 %v2465, 4294901760
      %v2467 = vsub.f32 %v2465, %v2466
      %v2468 = vand.u32 %v2467, 4294901760
      %2469 = vmatpush1.msra.mxu0 %v2468
      %2470 = vmatprep.subr.mxu0 0.0
      %v2471 = vand.u32 %v2345, 4294901760
      %v2472 = vsub.f32 %v2345, %v2471
      %v2473 = vand.u32 %v2472, 4294901760
      %v2474 = vsub.f32 %v2472, %v2473
      %v2475 = vand.u32 %v2474, 4294901760
      %2476 = vmatpush1.msra.mxu0 %v2475
      %2477 = vmatprep.subr.mxu0 0.0
      %2478 = vmatpush1.msra.mxu0 0.0
      %2479 = vmatprep.subr.mxu0 0.0
      %2480 = vmatpush1.msra.mxu0 0.0
      %2481 = vmatprep.subr.mxu0 0.0
      %2482 = vmatpush1.msra.mxu0 0.0
      %2483 = vmatprep.subr.mxu0 0.0
      %2484 = vmatpush1.msra.mxu0 0.0
      %2485 = vmatprep.subr.mxu0 0.0
      %2486 = vmatpush1.msra.mxu0 0.0
      %2487 = vmatprep.subr.mxu0 0.0
      %2488 = vmatpush1.msra.mxu0 0.0
      %2489 = vmatprep.subr.mxu0 0.0
      %2490 = vmatpush1.msra.mxu0 0.0
      %2491 = vmatprep.subr.mxu0 0.0
      %2492 = vmatpush1.msra.mxu0 0.0
      %2493 = vmatprep.subr.mxu0 0.0
      %2494 = vmatpush1.msra.mxu0 0.0
      %2495 = vmatprep.subr.mxu0 0.0
      %2496 = vmatpush1.msra.mxu0 0.0
      %2497 = vmatprep.subr.mxu0 0.0
      %2498 = vmatpush1.msra.mxu0 0.0
      %2499 = vmatprep.subr.mxu0 0.0
      %2500 = vmatpush1.msra.mxu0 0.0
      %2501 = vmatprep.subr.mxu0 0.0
      %2502 = vmatpush1.msra.mxu0 0.0
      %2503 = vmatprep.subr.mxu0 0.0
      %2504 = vmatpush1.msra.mxu0 0.0
      %2505 = vmatprep.subr.mxu0 0.0
      %2506 = vmatpush1.msra.mxu0 0.0
      %2507 = vmatprep.subr.mxu0 0.0
      %2508 = vmatpush1.msra.mxu0 0.0
      %2509 = vmatprep.subr.mxu0 0.0
      %2510 = vmatpush1.msra.mxu0 0.0
      %2511 = vmatprep.subr.mxu0 0.0
      %2512 = vmatpush1.msra.mxu0 0.0
      %2513 = vmatprep.subr.mxu0 0.0
      %2514 = vmatpush1.msra.mxu0 0.0
      %2515 = vmatprep.subr.mxu0 0.0
      %2516 = vmatpush1.msra.mxu0 0.0
      %2517 = vmatprep.subr.mxu0 0.0
      %2518 = vmatpush1.msra.mxu0 0.0
      %2519 = vmatprep.subr.mxu0 0.0
      %2520 = vmatpush1.msra.mxu0 0.0
      %2521 = vmatprep.subr.mxu0 0.0
      %2522 = vmatpush1.msra.mxu0 0.0
      %2523 = vmatprep.subr.mxu0 0.0
      %2524 = vmatpush1.msra.mxu0 0.0
      %2525 = vmatprep.subr.mxu0 0.0
      %2526 = vmatpush1.msra.mxu0 0.0
      %2527 = vmatprep.subr.mxu0 0.0
      %2528 = vmatpush1.msra.mxu0 0.0
      %2529 = vmatprep.subr.mxu0 0.0
      %2530 = vmatpush1.msra.mxu0 0.0
      %2531 = vmatprep.subr.mxu0 0.0
      %2532 = vmatpush1.msra.mxu0 0.0
      %2533 = vmatprep.mubr.f32.mxu0 0.0
      %v2534 = vand.u32 %v2368, 4294901760
      %2535 = vmatmul.mubr.f32.gmra.mrb[0].mxu0 %v2534
      %v2536 = vpop.f32.mrb[0].mxu0
      %v2537 = vadd.f32 %v2446, %v2536
      %v2538 = vpop.f32.mrb[0].mxu0
      %2539 = vdwg.mxu0
      %2540 = vmatprep.subr.mxu0 0.0
      %v2541 = vand.u32 %v2342, 4294901760
      %v2542 = vsub.f32 %v2342, %v2541
      %2543 = vmatpush1.msra.mxu0 %v2542
      %2544 = vmatprep.subr.mxu0 0.0
      %v2545 = vand.u32 %v2343, 4294901760
      %v2546 = vsub.f32 %v2343, %v2545
      %2547 = vmatpush1.msra.mxu0 %v2546
      %2548 = vmatprep.subr.mxu0 0.0
      %v2549 = vand.u32 %v2344, 4294901760
      %v2550 = vsub.f32 %v2344, %v2549
      %2551 = vmatpush1.msra.mxu0 %v2550
      %2552 = vmatprep.subr.mxu0 0.0
      %v2553 = vand.u32 %v2345, 4294901760
      %v2554 = vsub.f32 %v2345, %v2553
      %2555 = vmatpush1.msra.mxu0 %v2554
      %2556 = vmatprep.subr.mxu0 0.0
      %2557 = vmatpush1.msra.mxu0 0.0
      %2558 = vmatprep.subr.mxu0 0.0
      %2559 = vmatpush1.msra.mxu0 0.0
      %2560 = vmatprep.subr.mxu0 0.0
      %2561 = vmatpush1.msra.mxu0 0.0
      %2562 = vmatprep.subr.mxu0 0.0
      %2563 = vmatpush1.msra.mxu0 0.0
      %2564 = vmatprep.subr.mxu0 0.0
      %2565 = vmatpush1.msra.mxu0 0.0
      %2566 = vmatprep.subr.mxu0 0.0
      %2567 = vmatpush1.msra.mxu0 0.0
      %2568 = vmatprep.subr.mxu0 0.0
      %2569 = vmatpush1.msra.mxu0 0.0
      %2570 = vmatprep.subr.mxu0 0.0
      %2571 = vmatpush1.msra.mxu0 0.0
      %2572 = vmatprep.subr.mxu0 0.0
      %2573 = vmatpush1.msra.mxu0 0.0
      %2574 = vmatprep.subr.mxu0 0.0
      %2575 = vmatpush1.msra.mxu0 0.0
      %2576 = vmatprep.subr.mxu0 0.0
      %2577 = vmatpush1.msra.mxu0 0.0
      %2578 = vmatprep.subr.mxu0 0.0
      %2579 = vmatpush1.msra.mxu0 0.0
      %2580 = vmatprep.subr.mxu0 0.0
      %2581 = vmatpush1.msra.mxu0 0.0
      %2582 = vmatprep.subr.mxu0 0.0
      %2583 = vmatpush1.msra.mxu0 0.0
      %2584 = vmatprep.subr.mxu0 0.0
      %2585 = vmatpush1.msra.mxu0 0.0
      %2586 = vmatprep.subr.mxu0 0.0
      %2587 = vmatpush1.msra.mxu0 0.0
      %2588 = vmatprep.subr.mxu0 0.0
      %2589 = vmatpush1.msra.mxu0 0.0
      %2590 = vmatprep.subr.mxu0 0.0
      %2591 = vmatpush1.msra.mxu0 0.0
      %2592 = vmatprep.subr.mxu0 0.0
      %2593 = vmatpush1.msra.mxu0 0.0
      %2594 = vmatprep.subr.mxu0 0.0
      %2595 = vmatpush1.msra.mxu0 0.0
      %2596 = vmatprep.subr.mxu0 0.0
      %2597 = vmatpush1.msra.mxu0 0.0
      %2598 = vmatprep.subr.mxu0 0.0
      %2599 = vmatpush1.msra.mxu0 0.0
      %2600 = vmatprep.subr.mxu0 0.0
      %2601 = vmatpush1.msra.mxu0 0.0
      %2602 = vmatprep.subr.mxu0 0.0
      %2603 = vmatpush1.msra.mxu0 0.0
      %2604 = vmatprep.subr.mxu0 0.0
      %2605 = vmatpush1.msra.mxu0 0.0
      %2606 = vmatprep.subr.mxu0 0.0
      %2607 = vmatpush1.msra.mxu0 0.0
      %2608 = vmatprep.subr.mxu0 0.0
      %2609 = vmatpush1.msra.mxu0 0.0
      %2610 = vmatprep.subr.mxu0 0.0
      %2611 = vmatpush1.msra.mxu0 0.0
      %2612 = vmatprep.mubr.f32.mxu0 0.0
      %v2613 = vand.u32 %v2368, 4294901760
      %v2614 = vsub.f32 %v2368, %v2613
      %2615 = vmatmul.mubr.f32.gmra.mrb[0].mxu0 %v2614
      %v2616 = vpop.f32.mrb[0].mxu0
      %v2617 = vadd.f32 %v2537, %v2616
      %v2618 = vpop.f32.mrb[0].mxu0
      %2619 = vdwg.mxu0
      %2620 = vmatprep.subr.mxu0 0.0
      %v2621 = vand.u32 %v2342, 4294901760
      %2622 = vmatpush1.msra.mxu0 %v2621
      %2623 = vmatprep.subr.mxu0 0.0
      %v2624 = vand.u32 %v2343, 4294901760
      %2625 = vmatpush1.msra.mxu0 %v2624
      %2626 = vmatprep.subr.mxu0 0.0
      %v2627 = vand.u32 %v2344, 4294901760
      %2628 = vmatpush1.msra.mxu0 %v2627
      %2629 = vmatprep.subr.mxu0 0.0
      %v2630 = vand.u32 %v2345, 4294901760
      %2631 = vmatpush1.msra.mxu0 %v2630
      %2632 = vmatprep.subr.mxu0 0.0
      %2633 = vmatpush1.msra.mxu0 0.0
      %2634 = vmatprep.subr.mxu0 0.0
      %2635 = vmatpush1.msra.mxu0 0.0
      %2636 = vmatprep.subr.mxu0 0.0
      %2637 = vmatpush1.msra.mxu0 0.0
      %2638 = vmatprep.subr.mxu0 0.0
      %2639 = vmatpush1.msra.mxu0 0.0
      %2640 = vmatprep.subr.mxu0 0.0
      %2641 = vmatpush1.msra.mxu0 0.0
      %2642 = vmatprep.subr.mxu0 0.0
      %2643 = vmatpush1.msra.mxu0 0.0
      %2644 = vmatprep.subr.mxu0 0.0
      %2645 = vmatpush1.msra.mxu0 0.0
      %2646 = vmatprep.subr.mxu0 0.0
      %2647 = vmatpush1.msra.mxu0 0.0
      %2648 = vmatprep.subr.mxu0 0.0
      %2649 = vmatpush1.msra.mxu0 0.0
      %2650 = vmatprep.subr.mxu0 0.0
      %2651 = vmatpush1.msra.mxu0 0.0
      %2652 = vmatprep.subr.mxu0 0.0
      %2653 = vmatpush1.msra.mxu0 0.0
      %2654 = vmatprep.subr.mxu0 0.0
      %2655 = vmatpush1.msra.mxu0 0.0
      %2656 = vmatprep.subr.mxu0 0.0
      %2657 = vmatpush1.msra.mxu0 0.0
      %2658 = vmatprep.subr.mxu0 0.0
      %2659 = vmatpush1.msra.mxu0 0.0
      %2660 = vmatprep.subr.mxu0 0.0
      %2661 = vmatpush1.msra.mxu0 0.0
      %2662 = vmatprep.subr.mxu0 0.0
      %2663 = vmatpush1.msra.mxu0 0.0
      %2664 = vmatprep.subr.mxu0 0.0
      %2665 = vmatpush1.msra.mxu0 0.0
      %2666 = vmatprep.subr.mxu0 0.0
      %2667 = vmatpush1.msra.mxu0 0.0
      %2668 = vmatprep.subr.mxu0 0.0
      %2669 = vmatpush1.msra.mxu0 0.0
      %2670 = vmatprep.subr.mxu0 0.0
      %2671 = vmatpush1.msra.mxu0 0.0
      %2672 = vmatprep.subr.mxu0 0.0
      %2673 = vmatpush1.msra.mxu0 0.0
      %2674 = vmatprep.subr.mxu0 0.0
      %2675 = vmatpush1.msra.mxu0 0.0
      %2676 = vmatprep.subr.mxu0 0.0
      %2677 = vmatpush1.msra.mxu0 0.0
      %2678 = vmatprep.subr.mxu0 0.0
      %2679 = vmatpush1.msra.mxu0 0.0
      %2680 = vmatprep.subr.mxu0 0.0
      %2681 = vmatpush1.msra.mxu0 0.0
      %2682 = vmatprep.subr.mxu0 0.0
      %2683 = vmatpush1.msra.mxu0 0.0
      %2684 = vmatprep.subr.mxu0 0.0
      %2685 = vmatpush1.msra.mxu0 0.0
      %2686 = vmatprep.subr.mxu0 0.0
      %2687 = vmatpush1.msra.mxu0 0.0
      %2688 = vmatprep.mubr.f32.mxu0 0.0
      %v2689 = vand.u32 %v2368, 4294901760
      %v2690 = vsub.f32 %v2368, %v2689
      %v2691 = vand.u32 %v2690, 4294901760
      %2692 = vmatmul.mubr.f32.gmra.mrb[0].mxu0 %v2691
      %v2693 = vpop.f32.mrb[0].mxu0
      %v2694 = vadd.f32 %v2617, %v2693
      %v2695 = vpop.f32.mrb[0].mxu0
      %2696 = vdwg.mxu0
      %2697 = vmatprep.subr.mxu0 0.0
      %v2698 = vand.u32 %v2342, 4294901760
      %v2699 = vsub.f32 %v2342, %v2698
      %v2700 = vand.u32 %v2699, 4294901760
      %2701 = vmatpush1.msra.mxu0 %v2700
      %2702 = vmatprep.subr.mxu0 0.0
      %v2703 = vand.u32 %v2343, 4294901760
      %v2704 = vsub.f32 %v2343, %v2703
      %v2705 = vand.u32 %v2704, 4294901760
      %2706 = vmatpush1.msra.mxu0 %v2705
      %2707 = vmatprep.subr.mxu0 0.0
      %v2708 = vand.u32 %v2344, 4294901760
      %v2709 = vsub.f32 %v2344, %v2708
      %v2710 = vand.u32 %v2709, 4294901760
      %2711 = vmatpush1.msra.mxu0 %v2710
      %2712 = vmatprep.subr.mxu0 0.0
      %v2713 = vand.u32 %v2345, 4294901760
      %v2714 = vsub.f32 %v2345, %v2713
      %v2715 = vand.u32 %v2714, 4294901760
      %2716 = vmatpush1.msra.mxu0 %v2715
      %2717 = vmatprep.subr.mxu0 0.0
      %2718 = vmatpush1.msra.mxu0 0.0
      %2719 = vmatprep.subr.mxu0 0.0
      %2720 = vmatpush1.msra.mxu0 0.0
      %2721 = vmatprep.subr.mxu0 0.0
      %2722 = vmatpush1.msra.mxu0 0.0
      %2723 = vmatprep.subr.mxu0 0.0
      %2724 = vmatpush1.msra.mxu0 0.0
      %2725 = vmatprep.subr.mxu0 0.0
      %2726 = vmatpush1.msra.mxu0 0.0
      %2727 = vmatprep.subr.mxu0 0.0
      %2728 = vmatpush1.msra.mxu0 0.0
      %2729 = vmatprep.subr.mxu0 0.0
      %2730 = vmatpush1.msra.mxu0 0.0
      %2731 = vmatprep.subr.mxu0 0.0
      %2732 = vmatpush1.msra.mxu0 0.0
      %2733 = vmatprep.subr.mxu0 0.0
      %2734 = vmatpush1.msra.mxu0 0.0
      %2735 = vmatprep.subr.mxu0 0.0
      %2736 = vmatpush1.msra.mxu0 0.0
      %2737 = vmatprep.subr.mxu0 0.0
      %2738 = vmatpush1.msra.mxu0 0.0
      %2739 = vmatprep.subr.mxu0 0.0
      %2740 = vmatpush1.msra.mxu0 0.0
      %2741 = vmatprep.subr.mxu0 0.0
      %2742 = vmatpush1.msra.mxu0 0.0
      %2743 = vmatprep.subr.mxu0 0.0
      %2744 = vmatpush1.msra.mxu0 0.0
      %2745 = vmatprep.subr.mxu0 0.0
      %2746 = vmatpush1.msra.mxu0 0.0
      %2747 = vmatprep.subr.mxu0 0.0
      %2748 = vmatpush1.msra.mxu0 0.0
      %2749 = vmatprep.subr.mxu0 0.0
      %2750 = vmatpush1.msra.mxu0 0.0
      %2751 = vmatprep.subr.mxu0 0.0
      %2752 = vmatpush1.msra.mxu0 0.0
      %2753 = vmatprep.subr.mxu0 0.0
      %2754 = vmatpush1.msra.mxu0 0.0
      %2755 = vmatprep.subr.mxu0 0.0
      %2756 = vmatpush1.msra.mxu0 0.0
      %2757 = vmatprep.subr.mxu0 0.0
      %2758 = vmatpush1.msra.mxu0 0.0
      %2759 = vmatprep.subr.mxu0 0.0
      %2760 = vmatpush1.msra.mxu0 0.0
      %2761 = vmatprep.subr.mxu0 0.0
      %2762 = vmatpush1.msra.mxu0 0.0
      %2763 = vmatprep.subr.mxu0 0.0
      %2764 = vmatpush1.msra.mxu0 0.0
      %2765 = vmatprep.subr.mxu0 0.0
      %2766 = vmatpush1.msra.mxu0 0.0
      %2767 = vmatprep.subr.mxu0 0.0
      %2768 = vmatpush1.msra.mxu0 0.0
      %2769 = vmatprep.subr.mxu0 0.0
      %2770 = vmatpush1.msra.mxu0 0.0
      %2771 = vmatprep.subr.mxu0 0.0
      %2772 = vmatpush1.msra.mxu0 0.0
      %2773 = vmatprep.mubr.f32.mxu0 0.0
      %v2774 = vand.u32 %v2368, 4294901760
      %2775 = vmatmul.mubr.f32.gmra.mrb[0].mxu0 %v2774
      %v2776 = vpop.f32.mrb[0].mxu0
      %v2777 = vadd.f32 %v2694, %v2776
      %v2778 = vpop.f32.mrb[0].mxu0
      %2779 = vdwg.mxu0
      %2780 = vmatprep.subr.mxu0 0.0
      %v2781 = vand.u32 %v2342, 4294901760
      %2782 = vmatpush1.msra.mxu0 %v2781
      %2783 = vmatprep.subr.mxu0 0.0
      %v2784 = vand.u32 %v2343, 4294901760
      %2785 = vmatpush1.msra.mxu0 %v2784
      %2786 = vmatprep.subr.mxu0 0.0
      %v2787 = vand.u32 %v2344, 4294901760
      %2788 = vmatpush1.msra.mxu0 %v2787
      %2789 = vmatprep.subr.mxu0 0.0
      %v2790 = vand.u32 %v2345, 4294901760
      %2791 = vmatpush1.msra.mxu0 %v2790
      %2792 = vmatprep.subr.mxu0 0.0
      %2793 = vmatpush1.msra.mxu0 0.0
      %2794 = vmatprep.subr.mxu0 0.0
      %2795 = vmatpush1.msra.mxu0 0.0
      %2796 = vmatprep.subr.mxu0 0.0
      %2797 = vmatpush1.msra.mxu0 0.0
      %2798 = vmatprep.subr.mxu0 0.0
      %2799 = vmatpush1.msra.mxu0 0.0
      %2800 = vmatprep.subr.mxu0 0.0
      %2801 = vmatpush1.msra.mxu0 0.0
      %2802 = vmatprep.subr.mxu0 0.0
      %2803 = vmatpush1.msra.mxu0 0.0
      %2804 = vmatprep.subr.mxu0 0.0
      %2805 = vmatpush1.msra.mxu0 0.0
      %2806 = vmatprep.subr.mxu0 0.0
      %2807 = vmatpush1.msra.mxu0 0.0
      %2808 = vmatprep.subr.mxu0 0.0
      %2809 = vmatpush1.msra.mxu0 0.0
      %2810 = vmatprep.subr.mxu0 0.0
      %2811 = vmatpush1.msra.mxu0 0.0
      %2812 = vmatprep.subr.mxu0 0.0
      %2813 = vmatpush1.msra.mxu0 0.0
      %2814 = vmatprep.subr.mxu0 0.0
      %2815 = vmatpush1.msra.mxu0 0.0
      %2816 = vmatprep.subr.mxu0 0.0
      %2817 = vmatpush1.msra.mxu0 0.0
      %2818 = vmatprep.subr.mxu0 0.0
      %2819 = vmatpush1.msra.mxu0 0.0
      %2820 = vmatprep.subr.mxu0 0.0
      %2821 = vmatpush1.msra.mxu0 0.0
      %2822 = vmatprep.subr.mxu0 0.0
      %2823 = vmatpush1.msra.mxu0 0.0
      %2824 = vmatprep.subr.mxu0 0.0
      %2825 = vmatpush1.msra.mxu0 0.0
      %2826 = vmatprep.subr.mxu0 0.0
      %2827 = vmatpush1.msra.mxu0 0.0
      %2828 = vmatprep.subr.mxu0 0.0
      %2829 = vmatpush1.msra.mxu0 0.0
      %2830 = vmatprep.subr.mxu0 0.0
      %2831 = vmatpush1.msra.mxu0 0.0
      %2832 = vmatprep.subr.mxu0 0.0
      %2833 = vmatpush1.msra.mxu0 0.0
      %2834 = vmatprep.subr.mxu0 0.0
      %2835 = vmatpush1.msra.mxu0 0.0
      %2836 = vmatprep.subr.mxu0 0.0
      %2837 = vmatpush1.msra.mxu0 0.0
      %2838 = vmatprep.subr.mxu0 0.0
      %2839 = vmatpush1.msra.mxu0 0.0
      %2840 = vmatprep.subr.mxu0 0.0
      %2841 = vmatpush1.msra.mxu0 0.0
      %2842 = vmatprep.subr.mxu0 0.0
      %2843 = vmatpush1.msra.mxu0 0.0
      %2844 = vmatprep.subr.mxu0 0.0
      %2845 = vmatpush1.msra.mxu0 0.0
      %2846 = vmatprep.subr.mxu0 0.0
      %2847 = vmatpush1.msra.mxu0 0.0
      %2848 = vmatprep.mubr.f32.mxu0 0.0
      %v2849 = vand.u32 %v2368, 4294901760
      %2850 = vmatmul.mubr.f32.gmra.mrb[0].mxu0 %v2849
      %v2851 = vpop.f32.mrb[0].mxu0
      %v2852 = vadd.f32 %v2777, %v2851
      %v2853 = vpop.f32.mrb[0].mxu0
      %2854 = vdwg.mxu0
      %v2856 = vlaneseq
      %v2857 = vshrl.u32 %v2856, 7
      %v2858 = vsub.s32 0, %v2857
      %v2859 = vrot.slane %v2349, %v2858
      %2862 = vrot.lane.b32.xlu0 %v2356, 112
      %v2863 = vpop.permute.xlu0 %2862
      %v2864 = vsel %vm2189, %v2863, 0
      %2866 = vmatprep.subr.mxu0 0.0
      %v2867 = vand.u32 %v2346, 4294901760
      %2868 = vmatpush1.msra.mxu0 %v2867
      %2869 = vmatprep.subr.mxu0 0.0
      %v2870 = vand.u32 %v2347, 4294901760
      %2871 = vmatpush1.msra.mxu0 %v2870
      %2872 = vmatprep.subr.mxu0 0.0
      %2873 = vmatpush1.msra.mxu0 0.0
      %2874 = vmatprep.subr.mxu0 0.0
      %2875 = vmatpush1.msra.mxu0 0.0
      %2876 = vmatprep.subr.mxu0 0.0
      %2877 = vmatpush1.msra.mxu0 0.0
      %2878 = vmatprep.subr.mxu0 0.0
      %2879 = vmatpush1.msra.mxu0 0.0
      %2880 = vmatprep.subr.mxu0 0.0
      %2881 = vmatpush1.msra.mxu0 0.0
      %2882 = vmatprep.subr.mxu0 0.0
      %2883 = vmatpush1.msra.mxu0 0.0
      %2884 = vmatprep.subr.mxu0 0.0
      %2885 = vmatpush1.msra.mxu0 0.0
      %2886 = vmatprep.subr.mxu0 0.0
      %2887 = vmatpush1.msra.mxu0 0.0
      %2888 = vmatprep.subr.mxu0 0.0
      %2889 = vmatpush1.msra.mxu0 0.0
      %2890 = vmatprep.subr.mxu0 0.0
      %2891 = vmatpush1.msra.mxu0 0.0
      %2892 = vmatprep.subr.mxu0 0.0
      %2893 = vmatpush1.msra.mxu0 0.0
      %2894 = vmatprep.subr.mxu0 0.0
      %2895 = vmatpush1.msra.mxu0 0.0
      %2896 = vmatprep.subr.mxu0 0.0
      %2897 = vmatpush1.msra.mxu0 0.0
      %2898 = vmatprep.subr.mxu0 0.0
      %2899 = vmatpush1.msra.mxu0 0.0
      %2900 = vmatprep.subr.mxu0 0.0
      %2901 = vmatpush1.msra.mxu0 0.0
      %2902 = vmatprep.subr.mxu0 0.0
      %2903 = vmatpush1.msra.mxu0 0.0
      %2904 = vmatprep.subr.mxu0 0.0
      %2905 = vmatpush1.msra.mxu0 0.0
      %2906 = vmatprep.subr.mxu0 0.0
      %2907 = vmatpush1.msra.mxu0 0.0
      %2908 = vmatprep.subr.mxu0 0.0
      %2909 = vmatpush1.msra.mxu0 0.0
      %2910 = vmatprep.subr.mxu0 0.0
      %2911 = vmatpush1.msra.mxu0 0.0
      %2912 = vmatprep.subr.mxu0 0.0
      %2913 = vmatpush1.msra.mxu0 0.0
      %2914 = vmatprep.subr.mxu0 0.0
      %2915 = vmatpush1.msra.mxu0 0.0
      %2916 = vmatprep.subr.mxu0 0.0
      %2917 = vmatpush1.msra.mxu0 0.0
      %2918 = vmatprep.subr.mxu0 0.0
      %2919 = vmatpush1.msra.mxu0 0.0
      %2920 = vmatprep.subr.mxu0 0.0
      %2921 = vmatpush1.msra.mxu0 0.0
      %2922 = vmatprep.subr.mxu0 0.0
      %2923 = vmatpush1.msra.mxu0 0.0
      %2924 = vmatprep.subr.mxu0 0.0
      %2925 = vmatpush1.msra.mxu0 0.0
      %2926 = vmatprep.subr.mxu0 0.0
      %2927 = vmatpush1.msra.mxu0 0.0
      %2928 = vmatprep.subr.mxu0 0.0
      %2929 = vmatpush1.msra.mxu0 0.0
      %2930 = vmatprep.subr.mxu0 0.0
      %2931 = vmatpush1.msra.mxu0 0.0
      %2932 = vmatprep.mubr.f32.mxu0 0.0
      %v2933 = vand.u32 %v2864, 4294901760
      %v2934 = vsub.f32 %v2864, %v2933
      %v2935 = vand.u32 %v2934, 4294901760
      %v2936 = vsub.f32 %v2934, %v2935
      %v2937 = vand.u32 %v2936, 4294901760
      %2938 = vmatmul.mubr.f32.gmra.mrb[0].mxu0 %v2937
      %v2939 = vpop.f32.mrb[0].mxu0
      %v2940 = vadd.f32 %v2859, %v2939
      %v2941 = vpop.f32.mrb[0].mxu0
      %2942 = vdwg.mxu0
      %2943 = vmatprep.subr.mxu0 0.0
      %v2944 = vand.u32 %v2346, 4294901760
      %v2945 = vsub.f32 %v2346, %v2944
      %v2946 = vand.u32 %v2945, 4294901760
      %v2947 = vsub.f32 %v2945, %v2946
      %v2948 = vand.u32 %v2947, 4294901760
      %2949 = vmatpush1.msra.mxu0 %v2948
      %2950 = vmatprep.subr.mxu0 0.0
      %v2951 = vand.u32 %v2347, 4294901760
      %v2952 = vsub.f32 %v2347, %v2951
      %v2953 = vand.u32 %v2952, 4294901760
      %v2954 = vsub.f32 %v2952, %v2953
      %v2955 = vand.u32 %v2954, 4294901760
      %2956 = vmatpush1.msra.mxu0 %v2955
      %2957 = vmatprep.subr.mxu0 0.0
      %2958 = vmatpush1.msra.mxu0 0.0
      %2959 = vmatprep.subr.mxu0 0.0
      %2960 = vmatpush1.msra.mxu0 0.0
      %2961 = vmatprep.subr.mxu0 0.0
      %2962 = vmatpush1.msra.mxu0 0.0
      %2963 = vmatprep.subr.mxu0 0.0
      %2964 = vmatpush1.msra.mxu0 0.0
      %2965 = vmatprep.subr.mxu0 0.0
      %2966 = vmatpush1.msra.mxu0 0.0
      %2967 = vmatprep.subr.mxu0 0.0
      %2968 = vmatpush1.msra.mxu0 0.0
      %2969 = vmatprep.subr.mxu0 0.0
      %2970 = vmatpush1.msra.mxu0 0.0
      %2971 = vmatprep.subr.mxu0 0.0
      %2972 = vmatpush1.msra.mxu0 0.0
      %2973 = vmatprep.subr.mxu0 0.0
      %2974 = vmatpush1.msra.mxu0 0.0
      %2975 = vmatprep.subr.mxu0 0.0
      %2976 = vmatpush1.msra.mxu0 0.0
      %2977 = vmatprep.subr.mxu0 0.0
      %2978 = vmatpush1.msra.mxu0 0.0
      %2979 = vmatprep.subr.mxu0 0.0
      %2980 = vmatpush1.msra.mxu0 0.0
      %2981 = vmatprep.subr.mxu0 0.0
      %2982 = vmatpush1.msra.mxu0 0.0
      %2983 = vmatprep.subr.mxu0 0.0
      %2984 = vmatpush1.msra.mxu0 0.0
      %2985 = vmatprep.subr.mxu0 0.0
      %2986 = vmatpush1.msra.mxu0 0.0
      %2987 = vmatprep.subr.mxu0 0.0
      %2988 = vmatpush1.msra.mxu0 0.0
      %2989 = vmatprep.subr.mxu0 0.0
      %2990 = vmatpush1.msra.mxu0 0.0
      %2991 = vmatprep.subr.mxu0 0.0
      %2992 = vmatpush1.msra.mxu0 0.0
      %2993 = vmatprep.subr.mxu0 0.0
      %2994 = vmatpush1.msra.mxu0 0.0
      %2995 = vmatprep.subr.mxu0 0.0
      %2996 = vmatpush1.msra.mxu0 0.0
      %2997 = vmatprep.subr.mxu0 0.0
      %2998 = vmatpush1.msra.mxu0 0.0
      %2999 = vmatprep.subr.mxu0 0.0
      %3000 = vmatpush1.msra.mxu0 0.0
      %3001 = vmatprep.subr.mxu0 0.0
      %3002 = vmatpush1.msra.mxu0 0.0
      %3003 = vmatprep.subr.mxu0 0.0
      %3004 = vmatpush1.msra.mxu0 0.0
      %3005 = vmatprep.subr.mxu0 0.0
      %3006 = vmatpush1.msra.mxu0 0.0
      %3007 = vmatprep.subr.mxu0 0.0
      %3008 = vmatpush1.msra.mxu0 0.0
      %3009 = vmatprep.subr.mxu0 0.0
      %3010 = vmatpush1.msra.mxu0 0.0
      %3011 = vmatprep.subr.mxu0 0.0
      %3012 = vmatpush1.msra.mxu0 0.0
      %3013 = vmatprep.subr.mxu0 0.0
      %3014 = vmatpush1.msra.mxu0 0.0
      %3015 = vmatprep.subr.mxu0 0.0
      %3016 = vmatpush1.msra.mxu0 0.0
      %3017 = vmatprep.mubr.f32.mxu0 0.0
      %v3018 = vand.u32 %v2864, 4294901760
      %3019 = vmatmul.mubr.f32.gmra.mrb[0].mxu0 %v3018
      %v3020 = vpop.f32.mrb[0].mxu0
      %v3021 = vadd.f32 %v2940, %v3020
      %v3022 = vpop.f32.mrb[0].mxu0
      %3023 = vdwg.mxu0
      %3024 = vmatprep.subr.mxu0 0.0
      %v3025 = vand.u32 %v2346, 4294901760
      %v3026 = vsub.f32 %v2346, %v3025
      %3027 = vmatpush1.msra.mxu0 %v3026
      %3028 = vmatprep.subr.mxu0 0.0
      %v3029 = vand.u32 %v2347, 4294901760
      %v3030 = vsub.f32 %v2347, %v3029
      %3031 = vmatpush1.msra.mxu0 %v3030
      %3032 = vmatprep.subr.mxu0 0.0
      %3033 = vmatpush1.msra.mxu0 0.0
      %3034 = vmatprep.subr.mxu0 0.0
      %3035 = vmatpush1.msra.mxu0 0.0
      %3036 = vmatprep.subr.mxu0 0.0
      %3037 = vmatpush1.msra.mxu0 0.0
      %3038 = vmatprep.subr.mxu0 0.0
      %3039 = vmatpush1.msra.mxu0 0.0
      %3040 = vmatprep.subr.mxu0 0.0
      %3041 = vmatpush1.msra.mxu0 0.0
      %3042 = vmatprep.subr.mxu0 0.0
      %3043 = vmatpush1.msra.mxu0 0.0
      %3044 = vmatprep.subr.mxu0 0.0
      %3045 = vmatpush1.msra.mxu0 0.0
      %3046 = vmatprep.subr.mxu0 0.0
      %3047 = vmatpush1.msra.mxu0 0.0
      %3048 = vmatprep.subr.mxu0 0.0
      %3049 = vmatpush1.msra.mxu0 0.0
      %3050 = vmatprep.subr.mxu0 0.0
      %3051 = vmatpush1.msra.mxu0 0.0
      %3052 = vmatprep.subr.mxu0 0.0
      %3053 = vmatpush1.msra.mxu0 0.0
      %3054 = vmatprep.subr.mxu0 0.0
      %3055 = vmatpush1.msra.mxu0 0.0
      %3056 = vmatprep.subr.mxu0 0.0
      %3057 = vmatpush1.msra.mxu0 0.0
      %3058 = vmatprep.subr.mxu0 0.0
      %3059 = vmatpush1.msra.mxu0 0.0
      %3060 = vmatprep.subr.mxu0 0.0
      %3061 = vmatpush1.msra.mxu0 0.0
      %3062 = vmatprep.subr.mxu0 0.0
      %3063 = vmatpush1.msra.mxu0 0.0
      %3064 = vmatprep.subr.mxu0 0.0
      %3065 = vmatpush1.msra.mxu0 0.0
      %3066 = vmatprep.subr.mxu0 0.0
      %3067 = vmatpush1.msra.mxu0 0.0
      %3068 = vmatprep.subr.mxu0 0.0
      %3069 = vmatpush1.msra.mxu0 0.0
      %3070 = vmatprep.subr.mxu0 0.0
      %3071 = vmatpush1.msra.mxu0 0.0
      %3072 = vmatprep.subr.mxu0 0.0
      %3073 = vmatpush1.msra.mxu0 0.0
      %3074 = vmatprep.subr.mxu0 0.0
      %3075 = vmatpush1.msra.mxu0 0.0
      %3076 = vmatprep.subr.mxu0 0.0
      %3077 = vmatpush1.msra.mxu0 0.0
      %3078 = vmatprep.subr.mxu0 0.0
      %3079 = vmatpush1.msra.mxu0 0.0
      %3080 = vmatprep.subr.mxu0 0.0
      %3081 = vmatpush1.msra.mxu0 0.0
      %3082 = vmatprep.subr.mxu0 0.0
      %3083 = vmatpush1.msra.mxu0 0.0
      %3084 = vmatprep.subr.mxu0 0.0
      %3085 = vmatpush1.msra.mxu0 0.0
      %3086 = vmatprep.subr.mxu0 0.0
      %3087 = vmatpush1.msra.mxu0 0.0
      %3088 = vmatprep.subr.mxu0 0.0
      %3089 = vmatpush1.msra.mxu0 0.0
      %3090 = vmatprep.subr.mxu0 0.0
      %3091 = vmatpush1.msra.mxu0 0.0
      %3092 = vmatprep.mubr.f32.mxu0 0.0
      %v3093 = vand.u32 %v2864, 4294901760
      %v3094 = vsub.f32 %v2864, %v3093
      %3095 = vmatmul.mubr.f32.gmra.mrb[0].mxu0 %v3094
      %v3096 = vpop.f32.mrb[0].mxu0
      %v3097 = vadd.f32 %v3021, %v3096
      %v3098 = vpop.f32.mrb[0].mxu0
      %3099 = vdwg.mxu0
      %3100 = vmatprep.subr.mxu0 0.0
      %v3101 = vand.u32 %v2346, 4294901760
      %3102 = vmatpush1.msra.mxu0 %v3101
      %3103 = vmatprep.subr.mxu0 0.0
      %v3104 = vand.u32 %v2347, 4294901760
      %3105 = vmatpush1.msra.mxu0 %v3104
      %3106 = vmatprep.subr.mxu0 0.0
      %3107 = vmatpush1.msra.mxu0 0.0
      %3108 = vmatprep.subr.mxu0 0.0
      %3109 = vmatpush1.msra.mxu0 0.0
      %3110 = vmatprep.subr.mxu0 0.0
      %3111 = vmatpush1.msra.mxu0 0.0
      %3112 = vmatprep.subr.mxu0 0.0
      %3113 = vmatpush1.msra.mxu0 0.0
      %3114 = vmatprep.subr.mxu0 0.0
      %3115 = vmatpush1.msra.mxu0 0.0
      %3116 = vmatprep.subr.mxu0 0.0
      %3117 = vmatpush1.msra.mxu0 0.0
      %3118 = vmatprep.subr.mxu0 0.0
      %3119 = vmatpush1.msra.mxu0 0.0
      %3120 = vmatprep.subr.mxu0 0.0
      %3121 = vmatpush1.msra.mxu0 0.0
      %3122 = vmatprep.subr.mxu0 0.0
      %3123 = vmatpush1.msra.mxu0 0.0
      %3124 = vmatprep.subr.mxu0 0.0
      %3125 = vmatpush1.msra.mxu0 0.0
      %3126 = vmatprep.subr.mxu0 0.0
      %3127 = vmatpush1.msra.mxu0 0.0
      %3128 = vmatprep.subr.mxu0 0.0
      %3129 = vmatpush1.msra.mxu0 0.0
      %3130 = vmatprep.subr.mxu0 0.0
      %3131 = vmatpush1.msra.mxu0 0.0
      %3132 = vmatprep.subr.mxu0 0.0
      %3133 = vmatpush1.msra.mxu0 0.0
      %3134 = vmatprep.subr.mxu0 0.0
      %3135 = vmatpush1.msra.mxu0 0.0
      %3136 = vmatprep.subr.mxu0 0.0
      %3137 = vmatpush1.msra.mxu0 0.0
      %3138 = vmatprep.subr.mxu0 0.0
      %3139 = vmatpush1.msra.mxu0 0.0
      %3140 = vmatprep.subr.mxu0 0.0
      %3141 = vmatpush1.msra.mxu0 0.0
      %3142 = vmatprep.subr.mxu0 0.0
      %3143 = vmatpush1.msra.mxu0 0.0
      %3144 = vmatprep.subr.mxu0 0.0
      %3145 = vmatpush1.msra.mxu0 0.0
      %3146 = vmatprep.subr.mxu0 0.0
      %3147 = vmatpush1.msra.mxu0 0.0
      %3148 = vmatprep.subr.mxu0 0.0
      %3149 = vmatpush1.msra.mxu0 0.0
      %3150 = vmatprep.subr.mxu0 0.0
      %3151 = vmatpush1.msra.mxu0 0.0
      %3152 = vmatprep.subr.mxu0 0.0
      %3153 = vmatpush1.msra.mxu0 0.0
      %3154 = vmatprep.subr.mxu0 0.0
      %3155 = vmatpush1.msra.mxu0 0.0
      %3156 = vmatprep.subr.mxu0 0.0
      %3157 = vmatpush1.msra.mxu0 0.0
      %3158 = vmatprep.subr.mxu0 0.0
      %3159 = vmatpush1.msra.mxu0 0.0
      %3160 = vmatprep.subr.mxu0 0.0
      %3161 = vmatpush1.msra.mxu0 0.0
      %3162 = vmatprep.subr.mxu0 0.0
      %3163 = vmatpush1.msra.mxu0 0.0
      %3164 = vmatprep.subr.mxu0 0.0
      %3165 = vmatpush1.msra.mxu0 0.0
      %3166 = vmatprep.mubr.f32.mxu0 0.0
      %v3167 = vand.u32 %v2864, 4294901760
      %v3168 = vsub.f32 %v2864, %v3167
      %v3169 = vand.u32 %v3168, 4294901760
      %3170 = vmatmul.mubr.f32.gmra.mrb[0].mxu0 %v3169
      %v3171 = vpop.f32.mrb[0].mxu0
      %v3172 = vadd.f32 %v3097, %v3171
      %v3173 = vpop.f32.mrb[0].mxu0
      %3174 = vdwg.mxu0
      %3175 = vmatprep.subr.mxu0 0.0
      %v3176 = vand.u32 %v2346, 4294901760
      %v3177 = vsub.f32 %v2346, %v3176
      %v3178 = vand.u32 %v3177, 4294901760
      %3179 = vmatpush1.msra.mxu0 %v3178
      %3180 = vmatprep.subr.mxu0 0.0
      %v3181 = vand.u32 %v2347, 4294901760
      %v3182 = vsub.f32 %v2347, %v3181
      %v3183 = vand.u32 %v3182, 4294901760
      %3184 = vmatpush1.msra.mxu0 %v3183
      %3185 = vmatprep.subr.mxu0 0.0
      %3186 = vmatpush1.msra.mxu0 0.0
      %3187 = vmatprep.subr.mxu0 0.0
      %3188 = vmatpush1.msra.mxu0 0.0
      %3189 = vmatprep.subr.mxu0 0.0
      %3190 = vmatpush1.msra.mxu0 0.0
      %3191 = vmatprep.subr.mxu0 0.0
      %3192 = vmatpush1.msra.mxu0 0.0
      %3193 = vmatprep.subr.mxu0 0.0
      %3194 = vmatpush1.msra.mxu0 0.0
      %3195 = vmatprep.subr.mxu0 0.0
      %3196 = vmatpush1.msra.mxu0 0.0
      %3197 = vmatprep.subr.mxu0 0.0
      %3198 = vmatpush1.msra.mxu0 0.0
      %3199 = vmatprep.subr.mxu0 0.0
      %3200 = vmatpush1.msra.mxu0 0.0
      %3201 = vmatprep.subr.mxu0 0.0
      %3202 = vmatpush1.msra.mxu0 0.0
      %3203 = vmatprep.subr.mxu0 0.0
      %3204 = vmatpush1.msra.mxu0 0.0
      %3205 = vmatprep.subr.mxu0 0.0
      %3206 = vmatpush1.msra.mxu0 0.0
      %3207 = vmatprep.subr.mxu0 0.0
      %3208 = vmatpush1.msra.mxu0 0.0
      %3209 = vmatprep.subr.mxu0 0.0
      %3210 = vmatpush1.msra.mxu0 0.0
      %3211 = vmatprep.subr.mxu0 0.0
      %3212 = vmatpush1.msra.mxu0 0.0
      %3213 = vmatprep.subr.mxu0 0.0
      %3214 = vmatpush1.msra.mxu0 0.0
      %3215 = vmatprep.subr.mxu0 0.0
      %3216 = vmatpush1.msra.mxu0 0.0
      %3217 = vmatprep.subr.mxu0 0.0
      %3218 = vmatpush1.msra.mxu0 0.0
      %3219 = vmatprep.subr.mxu0 0.0
      %3220 = vmatpush1.msra.mxu0 0.0
      %3221 = vmatprep.subr.mxu0 0.0
      %3222 = vmatpush1.msra.mxu0 0.0
      %3223 = vmatprep.subr.mxu0 0.0
      %3224 = vmatpush1.msra.mxu0 0.0
      %3225 = vmatprep.subr.mxu0 0.0
      %3226 = vmatpush1.msra.mxu0 0.0
      %3227 = vmatprep.subr.mxu0 0.0
      %3228 = vmatpush1.msra.mxu0 0.0
      %3229 = vmatprep.subr.mxu0 0.0
      %3230 = vmatpush1.msra.mxu0 0.0
      %3231 = vmatprep.subr.mxu0 0.0
      %3232 = vmatpush1.msra.mxu0 0.0
      %3233 = vmatprep.subr.mxu0 0.0
      %3234 = vmatpush1.msra.mxu0 0.0
      %3235 = vmatprep.subr.mxu0 0.0
      %3236 = vmatpush1.msra.mxu0 0.0
      %3237 = vmatprep.subr.mxu0 0.0
      %3238 = vmatpush1.msra.mxu0 0.0
      %3239 = vmatprep.subr.mxu0 0.0
      %3240 = vmatpush1.msra.mxu0 0.0
      %3241 = vmatprep.subr.mxu0 0.0
      %3242 = vmatpush1.msra.mxu0 0.0
      %3243 = vmatprep.subr.mxu0 0.0
      %3244 = vmatpush1.msra.mxu0 0.0
      %3245 = vmatprep.mubr.f32.mxu0 0.0
      %v3246 = vand.u32 %v2864, 4294901760
      %3247 = vmatmul.mubr.f32.gmra.mrb[0].mxu0 %v3246
      %v3248 = vpop.f32.mrb[0].mxu0
      %v3249 = vadd.f32 %v3172, %v3248
      %v3250 = vpop.f32.mrb[0].mxu0
      %3251 = vdwg.mxu0
      %3252 = vmatprep.subr.mxu0 0.0
      %v3253 = vand.u32 %v2346, 4294901760
      %3254 = vmatpush1.msra.mxu0 %v3253
      %3255 = vmatprep.subr.mxu0 0.0
      %v3256 = vand.u32 %v2347, 4294901760
      %3257 = vmatpush1.msra.mxu0 %v3256
      %3258 = vmatprep.subr.mxu0 0.0
      %3259 = vmatpush1.msra.mxu0 0.0
      %3260 = vmatprep.subr.mxu0 0.0
      %3261 = vmatpush1.msra.mxu0 0.0
      %3262 = vmatprep.subr.mxu0 0.0
      %3263 = vmatpush1.msra.mxu0 0.0
      %3264 = vmatprep.subr.mxu0 0.0
      %3265 = vmatpush1.msra.mxu0 0.0
      %3266 = vmatprep.subr.mxu0 0.0
      %3267 = vmatpush1.msra.mxu0 0.0
      %3268 = vmatprep.subr.mxu0 0.0
      %3269 = vmatpush1.msra.mxu0 0.0
      %3270 = vmatprep.subr.mxu0 0.0
      %3271 = vmatpush1.msra.mxu0 0.0
      %3272 = vmatprep.subr.mxu0 0.0
      %3273 = vmatpush1.msra.mxu0 0.0
      %3274 = vmatprep.subr.mxu0 0.0
      %3275 = vmatpush1.msra.mxu0 0.0
      %3276 = vmatprep.subr.mxu0 0.0
      %3277 = vmatpush1.msra.mxu0 0.0
      %3278 = vmatprep.subr.mxu0 0.0
      %3279 = vmatpush1.msra.mxu0 0.0
      %3280 = vmatprep.subr.mxu0 0.0
      %3281 = vmatpush1.msra.mxu0 0.0
      %3282 = vmatprep.subr.mxu0 0.0
      %3283 = vmatpush1.msra.mxu0 0.0
      %3284 = vmatprep.subr.mxu0 0.0
      %3285 = vmatpush1.msra.mxu0 0.0
      %3286 = vmatprep.subr.mxu0 0.0
      %3287 = vmatpush1.msra.mxu0 0.0
      %3288 = vmatprep.subr.mxu0 0.0
      %3289 = vmatpush1.msra.mxu0 0.0
      %3290 = vmatprep.subr.mxu0 0.0
      %3291 = vmatpush1.msra.mxu0 0.0
      %3292 = vmatprep.subr.mxu0 0.0
      %3293 = vmatpush1.msra.mxu0 0.0
      %3294 = vmatprep.subr.mxu0 0.0
      %3295 = vmatpush1.msra.mxu0 0.0
      %3296 = vmatprep.subr.mxu0 0.0
      %3297 = vmatpush1.msra.mxu0 0.0
      %3298 = vmatprep.subr.mxu0 0.0
      %3299 = vmatpush1.msra.mxu0 0.0
      %3300 = vmatprep.subr.mxu0 0.0
      %3301 = vmatpush1.msra.mxu0 0.0
      %3302 = vmatprep.subr.mxu0 0.0
      %3303 = vmatpush1.msra.mxu0 0.0
      %3304 = vmatprep.subr.mxu0 0.0
      %3305 = vmatpush1.msra.mxu0 0.0
      %3306 = vmatprep.subr.mxu0 0.0
      %3307 = vmatpush1.msra.mxu0 0.0
      %3308 = vmatprep.subr.mxu0 0.0
      %3309 = vmatpush1.msra.mxu0 0.0
      %3310 = vmatprep.subr.mxu0 0.0
      %3311 = vmatpush1.msra.mxu0 0.0
      %3312 = vmatprep.subr.mxu0 0.0
      %3313 = vmatpush1.msra.mxu0 0.0
      %3314 = vmatprep.subr.mxu0 0.0
      %3315 = vmatpush1.msra.mxu0 0.0
      %3316 = vmatprep.subr.mxu0 0.0
      %3317 = vmatpush1.msra.mxu0 0.0
      %3318 = vmatprep.mubr.f32.mxu0 0.0
      %v3319 = vand.u32 %v2864, 4294901760
      %3320 = vmatmul.mubr.f32.gmra.mrb[0].mxu0 %v3319
      %v3321 = vpop.f32.mrb[0].mxu0
      %v3322 = vadd.f32 %v3249, %v3321
      %v3323 = vpop.f32.mrb[0].mxu0
      %3324 = vdwg.mxu0
      %v3325 = vadd.f32 %v2852, %v3322
      %v3326 = vxor.u32 %v3325, 2147483648
      %v3327 = vmul.f32 %v3326, 1.442695
      %v3328 = vpow.pop %v3327
      %v3329 = vadd.f32 %v3328, 1.0
      %v3330 = vrcp.pop %v3329
      %v3331 = vmul.f32 1.0, %v3330
      %3333 = vrot.lane.b32.xlu0 %v3322, 96
      %v3334 = vpop.permute.xlu0 %3333
      %v3336 = vmul.f32 %v3331, %v3334
      %3338 = vrot.lane.b32.xlu0 %v3336, 32
      %v3339 = vpop.permute.xlu0 %3338
      %v3341 = vadd.f32 %v2852, %v3339
      %v3342 = vtanh.pop %v3341
      %v3343 = vsub.f32 1.0, %v3331
      %3345 = vrot.lane.b32.xlu0 %v3342, 112
      %v3346 = vpop.permute.xlu0 %3345
      %v3348 = vmul.f32 %v3343, %v3346
      %v3349 = vmul.f32 %v3331, %v2356
      %v3350 = vadd.f32 %v3348, %v3349
      %v3351 = vstv %s2351
      %vm3352 = vcmp.lt.s32.totalorder %v3351, %v141
      %v3353 = vsel %vm3352, 1, 0
      %3354 = vset.pattern.permute.xlu0 0
      %3355 = vperm.xlu0 %3354, %v3353
      %v3356 = vpop.permute.xlu0 %3355
      %vm3357 = vcmp.eq.s32.totalorder %v3356, 1
      %v3358 = vsel %vm3357, %v3350, %v2356
    $region104: #{tpu_custom_call.1} parent=1 // loop_footer
      %s2355 = sadd.s32 1, %s2351
    $region105: #{tpu_custom_call.1} parent=1 // loop_footer_branch
      %2350 = sbr.rel target = $region101
    $region106: #{tpu_custom_call.1} parent=1 // loop_exit
      _
    %s3359 = scalar_lea.vmem %s6, 32
    %v3360 = vld [vmem:[%s3359] sm:$0xff]
    %v3361 = vld [vmem:[%s3359 + $0x8] sm:$0xff]
    %v3362 = vld [vmem:[%s3359 + $0x10] sm:$0xff]
    %v3363 = vld [vmem:[%s3359 + $0x18] sm:$0xff]
    %s3364 = scalar_lea.vmem [#allocation11], 16
    %v3365 = vld [vmem:[%s3364] sm:$0xff]
    %v3366 = vld [vmem:[%s3364 + $0x8] sm:$0xff]
    %s3367 = scalar_lea.vmem [#allocation13], 1
    %v3368 = vld [vmem:[%s3367] sm:$0x1]
    %s3369 = scalar_lea.vmem [#allocation14], 1
    %v3370 = vld [vmem:[%s3369] sm:$0x1]
    loop: start=0, step=1, limit=8
    $region107: #{tpu_custom_call.1} parent=1 // loop_pre_header
      _
    $region108: #{tpu_custom_call.1} parent=1 // loop_header
      %s3372 = sphi 0, %s3376
      %p3373 = scmp.ge.s32.totalorder %s3372, 8
      %v3377 = vphi 0.0, %v4380
    $region109: #{tpu_custom_call.1} parent=1 // loop_header_branch
      %3375 = sbr.rel (%p3373) target = $region113
    $region110: #{tpu_custom_call.1} parent=1 // loop_body
      %s3378 = ssub.s32 7, %s3372
      %s3379 = smul.u32 %s3378, 2
      %s3380 = scalar_lea.vmem [#allocation4], %s3379
      %v3381 = vld [vmem:[%s3380] sm:$0x3]
      %v3383 = vlaneseq
      %v3384 = vshrl.u32 %v3383, 7
      %v3385 = vsub.s32 0, %v3384
      %v3386 = vrot.slane %v3368, %v3385
      %vm3388 = vcmask 261120
      %v3390 = vsel %vm3388, %v3381, 0
      %3392 = vmatprep.subr.mxu0 0.0
      %v3393 = vand.u32 %v3360, 4294901760
      %3394 = vmatpush1.msra.mxu0 %v3393
      %3395 = vmatprep.subr.mxu0 0.0
      %v3396 = vand.u32 %v3361, 4294901760
      %3397 = vmatpush1.msra.mxu0 %v3396
      %3398 = vmatprep.subr.mxu0 0.0
      %v3399 = vand.u32 %v3362, 4294901760
      %3400 = vmatpush1.msra.mxu0 %v3399
      %3401 = vmatprep.subr.mxu0 0.0
      %v3402 = vand.u32 %v3363, 4294901760
      %3403 = vmatpush1.msra.mxu0 %v3402
      %3404 = vmatprep.subr.mxu0 0.0
      %3405 = vmatpush1.msra.mxu0 0.0
      %3406 = vmatprep.subr.mxu0 0.0
      %3407 = vmatpush1.msra.mxu0 0.0
      %3408 = vmatprep.subr.mxu0 0.0
      %3409 = vmatpush1.msra.mxu0 0.0
      %3410 = vmatprep.subr.mxu0 0.0
      %3411 = vmatpush1.msra.mxu0 0.0
      %3412 = vmatprep.subr.mxu0 0.0
      %3413 = vmatpush1.msra.mxu0 0.0
      %3414 = vmatprep.subr.mxu0 0.0
      %3415 = vmatpush1.msra.mxu0 0.0
      %3416 = vmatprep.subr.mxu0 0.0
      %3417 = vmatpush1.msra.mxu0 0.0
      %3418 = vmatprep.subr.mxu0 0.0
      %3419 = vmatpush1.msra.mxu0 0.0
      %3420 = vmatprep.subr.mxu0 0.0
      %3421 = vmatpush1.msra.mxu0 0.0
      %3422 = vmatprep.subr.mxu0 0.0
      %3423 = vmatpush1.msra.mxu0 0.0
      %3424 = vmatprep.subr.mxu0 0.0
      %3425 = vmatpush1.msra.mxu0 0.0
      %3426 = vmatprep.subr.mxu0 0.0
      %3427 = vmatpush1.msra.mxu0 0.0
      %3428 = vmatprep.subr.mxu0 0.0
      %3429 = vmatpush1.msra.mxu0 0.0
      %3430 = vmatprep.subr.mxu0 0.0
      %3431 = vmatpush1.msra.mxu0 0.0
      %3432 = vmatprep.subr.mxu0 0.0
      %3433 = vmatpush1.msra.mxu0 0.0
      %3434 = vmatprep.subr.mxu0 0.0
      %3435 = vmatpush1.msra.mxu0 0.0
      %3436 = vmatprep.subr.mxu0 0.0
      %3437 = vmatpush1.msra.mxu0 0.0
      %3438 = vmatprep.subr.mxu0 0.0
      %3439 = vmatpush1.msra.mxu0 0.0
      %3440 = vmatprep.subr.mxu0 0.0
      %3441 = vmatpush1.msra.mxu0 0.0
      %3442 = vmatprep.subr.mxu0 0.0
      %3443 = vmatpush1.msra.mxu0 0.0
      %3444 = vmatprep.subr.mxu0 0.0
      %3445 = vmatpush1.msra.mxu0 0.0
      %3446 = vmatprep.subr.mxu0 0.0
      %3447 = vmatpush1.msra.mxu0 0.0
      %3448 = vmatprep.subr.mxu0 0.0
      %3449 = vmatpush1.msra.mxu0 0.0
      %3450 = vmatprep.subr.mxu0 0.0
      %3451 = vmatpush1.msra.mxu0 0.0
      %3452 = vmatprep.subr.mxu0 0.0
      %3453 = vmatpush1.msra.mxu0 0.0
      %3454 = vmatprep.subr.mxu0 0.0
      %3455 = vmatpush1.msra.mxu0 0.0
      %3456 = vmatprep.subr.mxu0 0.0
      %3457 = vmatpush1.msra.mxu0 0.0
      %3458 = vmatprep.subr.mxu0 0.0
      %3459 = vmatpush1.msra.mxu0 0.0
      %3460 = vmatprep.mubr.f32.mxu0 0.0
      %v3461 = vand.u32 %v3390, 4294901760
      %v3462 = vsub.f32 %v3390, %v3461
      %v3463 = vand.u32 %v3462, 4294901760
      %v3464 = vsub.f32 %v3462, %v3463
      %v3465 = vand.u32 %v3464, 4294901760
      %3466 = vmatmul.mubr.f32.gmra.mrb[0].mxu0 %v3465
      %v3467 = vpop.f32.mrb[0].mxu0
      %v3468 = vadd.f32 %v3386, %v3467
      %v3469 = vpop.f32.mrb[0].mxu0
      %3470 = vdwg.mxu0
      %3471 = vmatprep.subr.mxu0 0.0
      %v3472 = vand.u32 %v3360, 4294901760
      %v3473 = vsub.f32 %v3360, %v3472
      %v3474 = vand.u32 %v3473, 4294901760
      %v3475 = vsub.f32 %v3473, %v3474
      %v3476 = vand.u32 %v3475, 4294901760
      %3477 = vmatpush1.msra.mxu0 %v3476
      %3478 = vmatprep.subr.mxu0 0.0
      %v3479 = vand.u32 %v3361, 4294901760
      %v3480 = vsub.f32 %v3361, %v3479
      %v3481 = vand.u32 %v3480, 4294901760
      %v3482 = vsub.f32 %v3480, %v3481
      %v3483 = vand.u32 %v3482, 4294901760
      %3484 = vmatpush1.msra.mxu0 %v3483
      %3485 = vmatprep.subr.mxu0 0.0
      %v3486 = vand.u32 %v3362, 4294901760
      %v3487 = vsub.f32 %v3362, %v3486
      %v3488 = vand.u32 %v3487, 4294901760
      %v3489 = vsub.f32 %v3487, %v3488
      %v3490 = vand.u32 %v3489, 4294901760
      %3491 = vmatpush1.msra.mxu0 %v3490
      %3492 = vmatprep.subr.mxu0 0.0
      %v3493 = vand.u32 %v3363, 4294901760
      %v3494 = vsub.f32 %v3363, %v3493
      %v3495 = vand.u32 %v3494, 4294901760
      %v3496 = vsub.f32 %v3494, %v3495
      %v3497 = vand.u32 %v3496, 4294901760
      %3498 = vmatpush1.msra.mxu0 %v3497
      %3499 = vmatprep.subr.mxu0 0.0
      %3500 = vmatpush1.msra.mxu0 0.0
      %3501 = vmatprep.subr.mxu0 0.0
      %3502 = vmatpush1.msra.mxu0 0.0
      %3503 = vmatprep.subr.mxu0 0.0
      %3504 = vmatpush1.msra.mxu0 0.0
      %3505 = vmatprep.subr.mxu0 0.0
      %3506 = vmatpush1.msra.mxu0 0.0
      %3507 = vmatprep.subr.mxu0 0.0
      %3508 = vmatpush1.msra.mxu0 0.0
      %3509 = vmatprep.subr.mxu0 0.0
      %3510 = vmatpush1.msra.mxu0 0.0
      %3511 = vmatprep.subr.mxu0 0.0
      %3512 = vmatpush1.msra.mxu0 0.0
      %3513 = vmatprep.subr.mxu0 0.0
      %3514 = vmatpush1.msra.mxu0 0.0
      %3515 = vmatprep.subr.mxu0 0.0
      %3516 = vmatpush1.msra.mxu0 0.0
      %3517 = vmatprep.subr.mxu0 0.0
      %3518 = vmatpush1.msra.mxu0 0.0
      %3519 = vmatprep.subr.mxu0 0.0
      %3520 = vmatpush1.msra.mxu0 0.0
      %3521 = vmatprep.subr.mxu0 0.0
      %3522 = vmatpush1.msra.mxu0 0.0
      %3523 = vmatprep.subr.mxu0 0.0
      %3524 = vmatpush1.msra.mxu0 0.0
      %3525 = vmatprep.subr.mxu0 0.0
      %3526 = vmatpush1.msra.mxu0 0.0
      %3527 = vmatprep.subr.mxu0 0.0
      %3528 = vmatpush1.msra.mxu0 0.0
      %3529 = vmatprep.subr.mxu0 0.0
      %3530 = vmatpush1.msra.mxu0 0.0
      %3531 = vmatprep.subr.mxu0 0.0
      %3532 = vmatpush1.msra.mxu0 0.0
      %3533 = vmatprep.subr.mxu0 0.0
      %3534 = vmatpush1.msra.mxu0 0.0
      %3535 = vmatprep.subr.mxu0 0.0
      %3536 = vmatpush1.msra.mxu0 0.0
      %3537 = vmatprep.subr.mxu0 0.0
      %3538 = vmatpush1.msra.mxu0 0.0
      %3539 = vmatprep.subr.mxu0 0.0
      %3540 = vmatpush1.msra.mxu0 0.0
      %3541 = vmatprep.subr.mxu0 0.0
      %3542 = vmatpush1.msra.mxu0 0.0
      %3543 = vmatprep.subr.mxu0 0.0
      %3544 = vmatpush1.msra.mxu0 0.0
      %3545 = vmatprep.subr.mxu0 0.0
      %3546 = vmatpush1.msra.mxu0 0.0
      %3547 = vmatprep.subr.mxu0 0.0
      %3548 = vmatpush1.msra.mxu0 0.0
      %3549 = vmatprep.subr.mxu0 0.0
      %3550 = vmatpush1.msra.mxu0 0.0
      %3551 = vmatprep.subr.mxu0 0.0
      %3552 = vmatpush1.msra.mxu0 0.0
      %3553 = vmatprep.subr.mxu0 0.0
      %3554 = vmatpush1.msra.mxu0 0.0
      %3555 = vmatprep.mubr.f32.mxu0 0.0
      %v3556 = vand.u32 %v3390, 4294901760
      %3557 = vmatmul.mubr.f32.gmra.mrb[0].mxu0 %v3556
      %v3558 = vpop.f32.mrb[0].mxu0
      %v3559 = vadd.f32 %v3468, %v3558
      %v3560 = vpop.f32.mrb[0].mxu0
      %3561 = vdwg.mxu0
      %3562 = vmatprep.subr.mxu0 0.0
      %v3563 = vand.u32 %v3360, 4294901760
      %v3564 = vsub.f32 %v3360, %v3563
      %3565 = vmatpush1.msra.mxu0 %v3564
      %3566 = vmatprep.subr.mxu0 0.0
      %v3567 = vand.u32 %v3361, 4294901760
      %v3568 = vsub.f32 %v3361, %v3567
      %3569 = vmatpush1.msra.mxu0 %v3568
      %3570 = vmatprep.subr.mxu0 0.0
      %v3571 = vand.u32 %v3362, 4294901760
      %v3572 = vsub.f32 %v3362, %v3571
      %3573 = vmatpush1.msra.mxu0 %v3572
      %3574 = vmatprep.subr.mxu0 0.0
      %v3575 = vand.u32 %v3363, 4294901760
      %v3576 = vsub.f32 %v3363, %v3575
      %3577 = vmatpush1.msra.mxu0 %v3576
      %3578 = vmatprep.subr.mxu0 0.0
      %3579 = vmatpush1.msra.mxu0 0.0
      %3580 = vmatprep.subr.mxu0 0.0
      %3581 = vmatpush1.msra.mxu0 0.0
      %3582 = vmatprep.subr.mxu0 0.0
      %3583 = vmatpush1.msra.mxu0 0.0
      %3584 = vmatprep.subr.mxu0 0.0
      %3585 = vmatpush1.msra.mxu0 0.0
      %3586 = vmatprep.subr.mxu0 0.0
      %3587 = vmatpush1.msra.mxu0 0.0
      %3588 = vmatprep.subr.mxu0 0.0
      %3589 = vmatpush1.msra.mxu0 0.0
      %3590 = vmatprep.subr.mxu0 0.0
      %3591 = vmatpush1.msra.mxu0 0.0
      %3592 = vmatprep.subr.mxu0 0.0
      %3593 = vmatpush1.msra.mxu0 0.0
      %3594 = vmatprep.subr.mxu0 0.0
      %3595 = vmatpush1.msra.mxu0 0.0
      %3596 = vmatprep.subr.mxu0 0.0
      %3597 = vmatpush1.msra.mxu0 0.0
      %3598 = vmatprep.subr.mxu0 0.0
      %3599 = vmatpush1.msra.mxu0 0.0
      %3600 = vmatprep.subr.mxu0 0.0
      %3601 = vmatpush1.msra.mxu0 0.0
      %3602 = vmatprep.subr.mxu0 0.0
      %3603 = vmatpush1.msra.mxu0 0.0
      %3604 = vmatprep.subr.mxu0 0.0
      %3605 = vmatpush1.msra.mxu0 0.0
      %3606 = vmatprep.subr.mxu0 0.0
      %3607 = vmatpush1.msra.mxu0 0.0
      %3608 = vmatprep.subr.mxu0 0.0
      %3609 = vmatpush1.msra.mxu0 0.0
      %3610 = vmatprep.subr.mxu0 0.0
      %3611 = vmatpush1.msra.mxu0 0.0
      %3612 = vmatprep.subr.mxu0 0.0
      %3613 = vmatpush1.msra.mxu0 0.0
      %3614 = vmatprep.subr.mxu0 0.0
      %3615 = vmatpush1.msra.mxu0 0.0
      %3616 = vmatprep.subr.mxu0 0.0
      %3617 = vmatpush1.msra.mxu0 0.0
      %3618 = vmatprep.subr.mxu0 0.0
      %3619 = vmatpush1.msra.mxu0 0.0
      %3620 = vmatprep.subr.mxu0 0.0
      %3621 = vmatpush1.msra.mxu0 0.0
      %3622 = vmatprep.subr.mxu0 0.0
      %3623 = vmatpush1.msra.mxu0 0.0
      %3624 = vmatprep.subr.mxu0 0.0
      %3625 = vmatpush1.msra.mxu0 0.0
      %3626 = vmatprep.subr.mxu0 0.0
      %3627 = vmatpush1.msra.mxu0 0.0
      %3628 = vmatprep.subr.mxu0 0.0
      %3629 = vmatpush1.msra.mxu0 0.0
      %3630 = vmatprep.subr.mxu0 0.0
      %3631 = vmatpush1.msra.mxu0 0.0
      %3632 = vmatprep.subr.mxu0 0.0
      %3633 = vmatpush1.msra.mxu0 0.0
      %3634 = vmatprep.mubr.f32.mxu0 0.0
      %v3635 = vand.u32 %v3390, 4294901760
      %v3636 = vsub.f32 %v3390, %v3635
      %3637 = vmatmul.mubr.f32.gmra.mrb[0].mxu0 %v3636
      %v3638 = vpop.f32.mrb[0].mxu0
      %v3639 = vadd.f32 %v3559, %v3638
      %v3640 = vpop.f32.mrb[0].mxu0
      %3641 = vdwg.mxu0
      %3642 = vmatprep.subr.mxu0 0.0
      %v3643 = vand.u32 %v3360, 4294901760
      %3644 = vmatpush1.msra.mxu0 %v3643
      %3645 = vmatprep.subr.mxu0 0.0
      %v3646 = vand.u32 %v3361, 4294901760
      %3647 = vmatpush1.msra.mxu0 %v3646
      %3648 = vmatprep.subr.mxu0 0.0
      %v3649 = vand.u32 %v3362, 4294901760
      %3650 = vmatpush1.msra.mxu0 %v3649
      %3651 = vmatprep.subr.mxu0 0.0
      %v3652 = vand.u32 %v3363, 4294901760
      %3653 = vmatpush1.msra.mxu0 %v3652
      %3654 = vmatprep.subr.mxu0 0.0
      %3655 = vmatpush1.msra.mxu0 0.0
      %3656 = vmatprep.subr.mxu0 0.0
      %3657 = vmatpush1.msra.mxu0 0.0
      %3658 = vmatprep.subr.mxu0 0.0
      %3659 = vmatpush1.msra.mxu0 0.0
      %3660 = vmatprep.subr.mxu0 0.0
      %3661 = vmatpush1.msra.mxu0 0.0
      %3662 = vmatprep.subr.mxu0 0.0
      %3663 = vmatpush1.msra.mxu0 0.0
      %3664 = vmatprep.subr.mxu0 0.0
      %3665 = vmatpush1.msra.mxu0 0.0
      %3666 = vmatprep.subr.mxu0 0.0
      %3667 = vmatpush1.msra.mxu0 0.0
      %3668 = vmatprep.subr.mxu0 0.0
      %3669 = vmatpush1.msra.mxu0 0.0
      %3670 = vmatprep.subr.mxu0 0.0
      %3671 = vmatpush1.msra.mxu0 0.0
      %3672 = vmatprep.subr.mxu0 0.0
      %3673 = vmatpush1.msra.mxu0 0.0
      %3674 = vmatprep.subr.mxu0 0.0
      %3675 = vmatpush1.msra.mxu0 0.0
      %3676 = vmatprep.subr.mxu0 0.0
      %3677 = vmatpush1.msra.mxu0 0.0
      %3678 = vmatprep.subr.mxu0 0.0
      %3679 = vmatpush1.msra.mxu0 0.0
      %3680 = vmatprep.subr.mxu0 0.0
      %3681 = vmatpush1.msra.mxu0 0.0
      %3682 = vmatprep.subr.mxu0 0.0
      %3683 = vmatpush1.msra.mxu0 0.0
      %3684 = vmatprep.subr.mxu0 0.0
      %3685 = vmatpush1.msra.mxu0 0.0
      %3686 = vmatprep.subr.mxu0 0.0
      %3687 = vmatpush1.msra.mxu0 0.0
      %3688 = vmatprep.subr.mxu0 0.0
      %3689 = vmatpush1.msra.mxu0 0.0
      %3690 = vmatprep.subr.mxu0 0.0
      %3691 = vmatpush1.msra.mxu0 0.0
      %3692 = vmatprep.subr.mxu0 0.0
      %3693 = vmatpush1.msra.mxu0 0.0
      %3694 = vmatprep.subr.mxu0 0.0
      %3695 = vmatpush1.msra.mxu0 0.0
      %3696 = vmatprep.subr.mxu0 0.0
      %3697 = vmatpush1.msra.mxu0 0.0
      %3698 = vmatprep.subr.mxu0 0.0
      %3699 = vmatpush1.msra.mxu0 0.0
      %3700 = vmatprep.subr.mxu0 0.0
      %3701 = vmatpush1.msra.mxu0 0.0
      %3702 = vmatprep.subr.mxu0 0.0
      %3703 = vmatpush1.msra.mxu0 0.0
      %3704 = vmatprep.subr.mxu0 0.0
      %3705 = vmatpush1.msra.mxu0 0.0
      %3706 = vmatprep.subr.mxu0 0.0
      %3707 = vmatpush1.msra.mxu0 0.0
      %3708 = vmatprep.subr.mxu0 0.0
      %3709 = vmatpush1.msra.mxu0 0.0
      %3710 = vmatprep.mubr.f32.mxu0 0.0
      %v3711 = vand.u32 %v3390, 4294901760
      %v3712 = vsub.f32 %v3390, %v3711
      %v3713 = vand.u32 %v3712, 4294901760
      %3714 = vmatmul.mubr.f32.gmra.mrb[0].mxu0 %v3713
      %v3715 = vpop.f32.mrb[0].mxu0
      %v3716 = vadd.f32 %v3639, %v3715
      %v3717 = vpop.f32.mrb[0].mxu0
      %3718 = vdwg.mxu0
      %3719 = vmatprep.subr.mxu0 0.0
      %v3720 = vand.u32 %v3360, 4294901760
      %v3721 = vsub.f32 %v3360, %v3720
      %v3722 = vand.u32 %v3721, 4294901760
      %3723 = vmatpush1.msra.mxu0 %v3722
      %3724 = vmatprep.subr.mxu0 0.0
      %v3725 = vand.u32 %v3361, 4294901760
      %v3726 = vsub.f32 %v3361, %v3725
      %v3727 = vand.u32 %v3726, 4294901760
      %3728 = vmatpush1.msra.mxu0 %v3727
      %3729 = vmatprep.subr.mxu0 0.0
      %v3730 = vand.u32 %v3362, 4294901760
      %v3731 = vsub.f32 %v3362, %v3730
      %v3732 = vand.u32 %v3731, 4294901760
      %3733 = vmatpush1.msra.mxu0 %v3732
      %3734 = vmatprep.subr.mxu0 0.0
      %v3735 = vand.u32 %v3363, 4294901760
      %v3736 = vsub.f32 %v3363, %v3735
      %v3737 = vand.u32 %v3736, 4294901760
      %3738 = vmatpush1.msra.mxu0 %v3737
      %3739 = vmatprep.subr.mxu0 0.0
      %3740 = vmatpush1.msra.mxu0 0.0
      %3741 = vmatprep.subr.mxu0 0.0
      %3742 = vmatpush1.msra.mxu0 0.0
      %3743 = vmatprep.subr.mxu0 0.0
      %3744 = vmatpush1.msra.mxu0 0.0
      %3745 = vmatprep.subr.mxu0 0.0
      %3746 = vmatpush1.msra.mxu0 0.0
      %3747 = vmatprep.subr.mxu0 0.0
      %3748 = vmatpush1.msra.mxu0 0.0
      %3749 = vmatprep.subr.mxu0 0.0
      %3750 = vmatpush1.msra.mxu0 0.0
      %3751 = vmatprep.subr.mxu0 0.0
      %3752 = vmatpush1.msra.mxu0 0.0
      %3753 = vmatprep.subr.mxu0 0.0
      %3754 = vmatpush1.msra.mxu0 0.0
      %3755 = vmatprep.subr.mxu0 0.0
      %3756 = vmatpush1.msra.mxu0 0.0
      %3757 = vmatprep.subr.mxu0 0.0
      %3758 = vmatpush1.msra.mxu0 0.0
      %3759 = vmatprep.subr.mxu0 0.0
      %3760 = vmatpush1.msra.mxu0 0.0
      %3761 = vmatprep.subr.mxu0 0.0
      %3762 = vmatpush1.msra.mxu0 0.0
      %3763 = vmatprep.subr.mxu0 0.0
      %3764 = vmatpush1.msra.mxu0 0.0
      %3765 = vmatprep.subr.mxu0 0.0
      %3766 = vmatpush1.msra.mxu0 0.0
      %3767 = vmatprep.subr.mxu0 0.0
      %3768 = vmatpush1.msra.mxu0 0.0
      %3769 = vmatprep.subr.mxu0 0.0
      %3770 = vmatpush1.msra.mxu0 0.0
      %3771 = vmatprep.subr.mxu0 0.0
      %3772 = vmatpush1.msra.mxu0 0.0
      %3773 = vmatprep.subr.mxu0 0.0
      %3774 = vmatpush1.msra.mxu0 0.0
      %3775 = vmatprep.subr.mxu0 0.0
      %3776 = vmatpush1.msra.mxu0 0.0
      %3777 = vmatprep.subr.mxu0 0.0
      %3778 = vmatpush1.msra.mxu0 0.0
      %3779 = vmatprep.subr.mxu0 0.0
      %3780 = vmatpush1.msra.mxu0 0.0
      %3781 = vmatprep.subr.mxu0 0.0
      %3782 = vmatpush1.msra.mxu0 0.0
      %3783 = vmatprep.subr.mxu0 0.0
      %3784 = vmatpush1.msra.mxu0 0.0
      %3785 = vmatprep.subr.mxu0 0.0
      %3786 = vmatpush1.msra.mxu0 0.0
      %3787 = vmatprep.subr.mxu0 0.0
      %3788 = vmatpush1.msra.mxu0 0.0
      %3789 = vmatprep.subr.mxu0 0.0
      %3790 = vmatpush1.msra.mxu0 0.0
      %3791 = vmatprep.subr.mxu0 0.0
      %3792 = vmatpush1.msra.mxu0 0.0
      %3793 = vmatprep.subr.mxu0 0.0
      %3794 = vmatpush1.msra.mxu0 0.0
      %3795 = vmatprep.mubr.f32.mxu0 0.0
      %v3796 = vand.u32 %v3390, 4294901760
      %3797 = vmatmul.mubr.f32.gmra.mrb[0].mxu0 %v3796
      %v3798 = vpop.f32.mrb[0].mxu0
      %v3799 = vadd.f32 %v3716, %v3798
      %v3800 = vpop.f32.mrb[0].mxu0
      %3801 = vdwg.mxu0
      %3802 = vmatprep.subr.mxu0 0.0
      %v3803 = vand.u32 %v3360, 4294901760
      %3804 = vmatpush1.msra.mxu0 %v3803
      %3805 = vmatprep.subr.mxu0 0.0
      %v3806 = vand.u32 %v3361, 4294901760
      %3807 = vmatpush1.msra.mxu0 %v3806
      %3808 = vmatprep.subr.mxu0 0.0
      %v3809 = vand.u32 %v3362, 4294901760
      %3810 = vmatpush1.msra.mxu0 %v3809
      %3811 = vmatprep.subr.mxu0 0.0
      %v3812 = vand.u32 %v3363, 4294901760
      %3813 = vmatpush1.msra.mxu0 %v3812
      %3814 = vmatprep.subr.mxu0 0.0
      %3815 = vmatpush1.msra.mxu0 0.0
      %3816 = vmatprep.subr.mxu0 0.0
      %3817 = vmatpush1.msra.mxu0 0.0
      %3818 = vmatprep.subr.mxu0 0.0
      %3819 = vmatpush1.msra.mxu0 0.0
      %3820 = vmatprep.subr.mxu0 0.0
      %3821 = vmatpush1.msra.mxu0 0.0
      %3822 = vmatprep.subr.mxu0 0.0
      %3823 = vmatpush1.msra.mxu0 0.0
      %3824 = vmatprep.subr.mxu0 0.0
      %3825 = vmatpush1.msra.mxu0 0.0
      %3826 = vmatprep.subr.mxu0 0.0
      %3827 = vmatpush1.msra.mxu0 0.0
      %3828 = vmatprep.subr.mxu0 0.0
      %3829 = vmatpush1.msra.mxu0 0.0
      %3830 = vmatprep.subr.mxu0 0.0
      %3831 = vmatpush1.msra.mxu0 0.0
      %3832 = vmatprep.subr.mxu0 0.0
      %3833 = vmatpush1.msra.mxu0 0.0
      %3834 = vmatprep.subr.mxu0 0.0
      %3835 = vmatpush1.msra.mxu0 0.0
      %3836 = vmatprep.subr.mxu0 0.0
      %3837 = vmatpush1.msra.mxu0 0.0
      %3838 = vmatprep.subr.mxu0 0.0
      %3839 = vmatpush1.msra.mxu0 0.0
      %3840 = vmatprep.subr.mxu0 0.0
      %3841 = vmatpush1.msra.mxu0 0.0
      %3842 = vmatprep.subr.mxu0 0.0
      %3843 = vmatpush1.msra.mxu0 0.0
      %3844 = vmatprep.subr.mxu0 0.0
      %3845 = vmatpush1.msra.mxu0 0.0
      %3846 = vmatprep.subr.mxu0 0.0
      %3847 = vmatpush1.msra.mxu0 0.0
      %3848 = vmatprep.subr.mxu0 0.0
      %3849 = vmatpush1.msra.mxu0 0.0
      %3850 = vmatprep.subr.mxu0 0.0
      %3851 = vmatpush1.msra.mxu0 0.0
      %3852 = vmatprep.subr.mxu0 0.0
      %3853 = vmatpush1.msra.mxu0 0.0
      %3854 = vmatprep.subr.mxu0 0.0
      %3855 = vmatpush1.msra.mxu0 0.0
      %3856 = vmatprep.subr.mxu0 0.0
      %3857 = vmatpush1.msra.mxu0 0.0
      %3858 = vmatprep.subr.mxu0 0.0
      %3859 = vmatpush1.msra.mxu0 0.0
      %3860 = vmatprep.subr.mxu0 0.0
      %3861 = vmatpush1.msra.mxu0 0.0
      %3862 = vmatprep.subr.mxu0 0.0
      %3863 = vmatpush1.msra.mxu0 0.0
      %3864 = vmatprep.subr.mxu0 0.0
      %3865 = vmatpush1.msra.mxu0 0.0
      %3866 = vmatprep.subr.mxu0 0.0
      %3867 = vmatpush1.msra.mxu0 0.0
      %3868 = vmatprep.subr.mxu0 0.0
      %3869 = vmatpush1.msra.mxu0 0.0
      %3870 = vmatprep.mubr.f32.mxu0 0.0
      %v3871 = vand.u32 %v3390, 4294901760
      %3872 = vmatmul.mubr.f32.gmra.mrb[0].mxu0 %v3871
      %v3873 = vpop.f32.mrb[0].mxu0
      %v3874 = vadd.f32 %v3799, %v3873
      %v3875 = vpop.f32.mrb[0].mxu0
      %3876 = vdwg.mxu0
      %v3878 = vlaneseq
      %v3879 = vshrl.u32 %v3878, 7
      %v3880 = vsub.s32 0, %v3879
      %v3881 = vrot.slane %v3370, %v3880
      %3884 = vrot.lane.b32.xlu0 %v3377, 112
      %v3885 = vpop.permute.xlu0 %3884
      %v3886 = vsel %vm2189, %v3885, 0
      %3888 = vmatprep.subr.mxu0 0.0
      %v3889 = vand.u32 %v3365, 4294901760
      %3890 = vmatpush1.msra.mxu0 %v3889
      %3891 = vmatprep.subr.mxu0 0.0
      %v3892 = vand.u32 %v3366, 4294901760
      %3893 = vmatpush1.msra.mxu0 %v3892
      %3894 = vmatprep.subr.mxu0 0.0
      %3895 = vmatpush1.msra.mxu0 0.0
      %3896 = vmatprep.subr.mxu0 0.0
      %3897 = vmatpush1.msra.mxu0 0.0
      %3898 = vmatprep.subr.mxu0 0.0
      %3899 = vmatpush1.msra.mxu0 0.0
      %3900 = vmatprep.subr.mxu0 0.0
      %3901 = vmatpush1.msra.mxu0 0.0
      %3902 = vmatprep.subr.mxu0 0.0
      %3903 = vmatpush1.msra.mxu0 0.0
      %3904 = vmatprep.subr.mxu0 0.0
      %3905 = vmatpush1.msra.mxu0 0.0
      %3906 = vmatprep.subr.mxu0 0.0
      %3907 = vmatpush1.msra.mxu0 0.0
      %3908 = vmatprep.subr.mxu0 0.0
      %3909 = vmatpush1.msra.mxu0 0.0
      %3910 = vmatprep.subr.mxu0 0.0
      %3911 = vmatpush1.msra.mxu0 0.0
      %3912 = vmatprep.subr.mxu0 0.0
      %3913 = vmatpush1.msra.mxu0 0.0
      %3914 = vmatprep.subr.mxu0 0.0
      %3915 = vmatpush1.msra.mxu0 0.0
      %3916 = vmatprep.subr.mxu0 0.0
      %3917 = vmatpush1.msra.mxu0 0.0
      %3918 = vmatprep.subr.mxu0 0.0
      %3919 = vmatpush1.msra.mxu0 0.0
      %3920 = vmatprep.subr.mxu0 0.0
      %3921 = vmatpush1.msra.mxu0 0.0
      %3922 = vmatprep.subr.mxu0 0.0
      %3923 = vmatpush1.msra.mxu0 0.0
      %3924 = vmatprep.subr.mxu0 0.0
      %3925 = vmatpush1.msra.mxu0 0.0
      %3926 = vmatprep.subr.mxu0 0.0
      %3927 = vmatpush1.msra.mxu0 0.0
      %3928 = vmatprep.subr.mxu0 0.0
      %3929 = vmatpush1.msra.mxu0 0.0
      %3930 = vmatprep.subr.mxu0 0.0
      %3931 = vmatpush1.msra.mxu0 0.0
      %3932 = vmatprep.subr.mxu0 0.0
      %3933 = vmatpush1.msra.mxu0 0.0
      %3934 = vmatprep.subr.mxu0 0.0
      %3935 = vmatpush1.msra.mxu0 0.0
      %3936 = vmatprep.subr.mxu0 0.0
      %3937 = vmatpush1.msra.mxu0 0.0
      %3938 = vmatprep.subr.mxu0 0.0
      %3939 = vmatpush1.msra.mxu0 0.0
      %3940 = vmatprep.subr.mxu0 0.0
      %3941 = vmatpush1.msra.mxu0 0.0
      %3942 = vmatprep.subr.mxu0 0.0
      %3943 = vmatpush1.msra.mxu0 0.0
      %3944 = vmatprep.subr.mxu0 0.0
      %3945 = vmatpush1.msra.mxu0 0.0
      %3946 = vmatprep.subr.mxu0 0.0
      %3947 = vmatpush1.msra.mxu0 0.0
      %3948 = vmatprep.subr.mxu0 0.0
      %3949 = vmatpush1.msra.mxu0 0.0
      %3950 = vmatprep.subr.mxu0 0.0
      %3951 = vmatpush1.msra.mxu0 0.0
      %3952 = vmatprep.subr.mxu0 0.0
      %3953 = vmatpush1.msra.mxu0 0.0
      %3954 = vmatprep.mubr.f32.mxu0 0.0
      %v3955 = vand.u32 %v3886, 4294901760
      %v3956 = vsub.f32 %v3886, %v3955
      %v3957 = vand.u32 %v3956, 4294901760
      %v3958 = vsub.f32 %v3956, %v3957
      %v3959 = vand.u32 %v3958, 4294901760
      %3960 = vmatmul.mubr.f32.gmra.mrb[0].mxu0 %v3959
      %v3961 = vpop.f32.mrb[0].mxu0
      %v3962 = vadd.f32 %v3881, %v3961
      %v3963 = vpop.f32.mrb[0].mxu0
      %3964 = vdwg.mxu0
      %3965 = vmatprep.subr.mxu0 0.0
      %v3966 = vand.u32 %v3365, 4294901760
      %v3967 = vsub.f32 %v3365, %v3966
      %v3968 = vand.u32 %v3967, 4294901760
      %v3969 = vsub.f32 %v3967, %v3968
      %v3970 = vand.u32 %v3969, 4294901760
      %3971 = vmatpush1.msra.mxu0 %v3970
      %3972 = vmatprep.subr.mxu0 0.0
      %v3973 = vand.u32 %v3366, 4294901760
      %v3974 = vsub.f32 %v3366, %v3973
      %v3975 = vand.u32 %v3974, 4294901760
      %v3976 = vsub.f32 %v3974, %v3975
      %v3977 = vand.u32 %v3976, 4294901760
      %3978 = vmatpush1.msra.mxu0 %v3977
      %3979 = vmatprep.subr.mxu0 0.0
      %3980 = vmatpush1.msra.mxu0 0.0
      %3981 = vmatprep.subr.mxu0 0.0
      %3982 = vmatpush1.msra.mxu0 0.0
      %3983 = vmatprep.subr.mxu0 0.0
      %3984 = vmatpush1.msra.mxu0 0.0
      %3985 = vmatprep.subr.mxu0 0.0
      %3986 = vmatpush1.msra.mxu0 0.0
      %3987 = vmatprep.subr.mxu0 0.0
      %3988 = vmatpush1.msra.mxu0 0.0
      %3989 = vmatprep.subr.mxu0 0.0
      %3990 = vmatpush1.msra.mxu0 0.0
      %3991 = vmatprep.subr.mxu0 0.0
      %3992 = vmatpush1.msra.mxu0 0.0
      %3993 = vmatprep.subr.mxu0 0.0
      %3994 = vmatpush1.msra.mxu0 0.0
      %3995 = vmatprep.subr.mxu0 0.0
      %3996 = vmatpush1.msra.mxu0 0.0
      %3997 = vmatprep.subr.mxu0 0.0
      %3998 = vmatpush1.msra.mxu0 0.0
      %3999 = vmatprep.subr.mxu0 0.0
      %4000 = vmatpush1.msra.mxu0 0.0
      %4001 = vmatprep.subr.mxu0 0.0
      %4002 = vmatpush1.msra.mxu0 0.0
      %4003 = vmatprep.subr.mxu0 0.0
      %4004 = vmatpush1.msra.mxu0 0.0
      %4005 = vmatprep.subr.mxu0 0.0
      %4006 = vmatpush1.msra.mxu0 0.0
      %4007 = vmatprep.subr.mxu0 0.0
      %4008 = vmatpush1.msra.mxu0 0.0
      %4009 = vmatprep.subr.mxu0 0.0
      %4010 = vmatpush1.msra.mxu0 0.0
      %4011 = vmatprep.subr.mxu0 0.0
      %4012 = vmatpush1.msra.mxu0 0.0
      %4013 = vmatprep.subr.mxu0 0.0
      %4014 = vmatpush1.msra.mxu0 0.0
      %4015 = vmatprep.subr.mxu0 0.0
      %4016 = vmatpush1.msra.mxu0 0.0
      %4017 = vmatprep.subr.mxu0 0.0
      %4018 = vmatpush1.msra.mxu0 0.0
      %4019 = vmatprep.subr.mxu0 0.0
      %4020 = vmatpush1.msra.mxu0 0.0
      %4021 = vmatprep.subr.mxu0 0.0
      %4022 = vmatpush1.msra.mxu0 0.0
      %4023 = vmatprep.subr.mxu0 0.0
      %4024 = vmatpush1.msra.mxu0 0.0
      %4025 = vmatprep.subr.mxu0 0.0
      %4026 = vmatpush1.msra.mxu0 0.0
      %4027 = vmatprep.subr.mxu0 0.0
      %4028 = vmatpush1.msra.mxu0 0.0
      %4029 = vmatprep.subr.mxu0 0.0
      %4030 = vmatpush1.msra.mxu0 0.0
      %4031 = vmatprep.subr.mxu0 0.0
      %4032 = vmatpush1.msra.mxu0 0.0
      %4033 = vmatprep.subr.mxu0 0.0
      %4034 = vmatpush1.msra.mxu0 0.0
      %4035 = vmatprep.subr.mxu0 0.0
      %4036 = vmatpush1.msra.mxu0 0.0
      %4037 = vmatprep.subr.mxu0 0.0
      %4038 = vmatpush1.msra.mxu0 0.0
      %4039 = vmatprep.mubr.f32.mxu0 0.0
      %v4040 = vand.u32 %v3886, 4294901760
      %4041 = vmatmul.mubr.f32.gmra.mrb[0].mxu0 %v4040
      %v4042 = vpop.f32.mrb[0].mxu0
      %v4043 = vadd.f32 %v3962, %v4042
      %v4044 = vpop.f32.mrb[0].mxu0
      %4045 = vdwg.mxu0
      %4046 = vmatprep.subr.mxu0 0.0
      %v4047 = vand.u32 %v3365, 4294901760
      %v4048 = vsub.f32 %v3365, %v4047
      %4049 = vmatpush1.msra.mxu0 %v4048
      %4050 = vmatprep.subr.mxu0 0.0
      %v4051 = vand.u32 %v3366, 4294901760
      %v4052 = vsub.f32 %v3366, %v4051
      %4053 = vmatpush1.msra.mxu0 %v4052
      %4054 = vmatprep.subr.mxu0 0.0
      %4055 = vmatpush1.msra.mxu0 0.0
      %4056 = vmatprep.subr.mxu0 0.0
      %4057 = vmatpush1.msra.mxu0 0.0
      %4058 = vmatprep.subr.mxu0 0.0
      %4059 = vmatpush1.msra.mxu0 0.0
      %4060 = vmatprep.subr.mxu0 0.0
      %4061 = vmatpush1.msra.mxu0 0.0
      %4062 = vmatprep.subr.mxu0 0.0
      %4063 = vmatpush1.msra.mxu0 0.0
      %4064 = vmatprep.subr.mxu0 0.0
      %4065 = vmatpush1.msra.mxu0 0.0
      %4066 = vmatprep.subr.mxu0 0.0
      %4067 = vmatpush1.msra.mxu0 0.0
      %4068 = vmatprep.subr.mxu0 0.0
      %4069 = vmatpush1.msra.mxu0 0.0
      %4070 = vmatprep.subr.mxu0 0.0
      %4071 = vmatpush1.msra.mxu0 0.0
      %4072 = vmatprep.subr.mxu0 0.0
      %4073 = vmatpush1.msra.mxu0 0.0
      %4074 = vmatprep.subr.mxu0 0.0
      %4075 = vmatpush1.msra.mxu0 0.0
      %4076 = vmatprep.subr.mxu0 0.0
      %4077 = vmatpush1.msra.mxu0 0.0
      %4078 = vmatprep.subr.mxu0 0.0
      %4079 = vmatpush1.msra.mxu0 0.0
      %4080 = vmatprep.subr.mxu0 0.0
      %4081 = vmatpush1.msra.mxu0 0.0
      %4082 = vmatprep.subr.mxu0 0.0
      %4083 = vmatpush1.msra.mxu0 0.0
      %4084 = vmatprep.subr.mxu0 0.0
      %4085 = vmatpush1.msra.mxu0 0.0
      %4086 = vmatprep.subr.mxu0 0.0
      %4087 = vmatpush1.msra.mxu0 0.0
      %4088 = vmatprep.subr.mxu0 0.0
      %4089 = vmatpush1.msra.mxu0 0.0
      %4090 = vmatprep.subr.mxu0 0.0
      %4091 = vmatpush1.msra.mxu0 0.0
      %4092 = vmatprep.subr.mxu0 0.0
      %4093 = vmatpush1.msra.mxu0 0.0
      %4094 = vmatprep.subr.mxu0 0.0
      %4095 = vmatpush1.msra.mxu0 0.0
      %4096 = vmatprep.subr.mxu0 0.0
      %4097 = vmatpush1.msra.mxu0 0.0
      %4098 = vmatprep.subr.mxu0 0.0
      %4099 = vmatpush1.msra.mxu0 0.0
      %4100 = vmatprep.subr.mxu0 0.0
      %4101 = vmatpush1.msra.mxu0 0.0
      %4102 = vmatprep.subr.mxu0 0.0
      %4103 = vmatpush1.msra.mxu0 0.0
      %4104 = vmatprep.subr.mxu0 0.0
      %4105 = vmatpush1.msra.mxu0 0.0
      %4106 = vmatprep.subr.mxu0 0.0
      %4107 = vmatpush1.msra.mxu0 0.0
      %4108 = vmatprep.subr.mxu0 0.0
      %4109 = vmatpush1.msra.mxu0 0.0
      %4110 = vmatprep.subr.mxu0 0.0
      %4111 = vmatpush1.msra.mxu0 0.0
      %4112 = vmatprep.subr.mxu0 0.0
      %4113 = vmatpush1.msra.mxu0 0.0
      %4114 = vmatprep.mubr.f32.mxu0 0.0
      %v4115 = vand.u32 %v3886, 4294901760
      %v4116 = vsub.f32 %v3886, %v4115
      %4117 = vmatmul.mubr.f32.gmra.mrb[0].mxu0 %v4116
      %v4118 = vpop.f32.mrb[0].mxu0
      %v4119 = vadd.f32 %v4043, %v4118
      %v4120 = vpop.f32.mrb[0].mxu0
      %4121 = vdwg.mxu0
      %4122 = vmatprep.subr.mxu0 0.0
      %v4123 = vand.u32 %v3365, 4294901760
      %4124 = vmatpush1.msra.mxu0 %v4123
      %4125 = vmatprep.subr.mxu0 0.0
      %v4126 = vand.u32 %v3366, 4294901760
      %4127 = vmatpush1.msra.mxu0 %v4126
      %4128 = vmatprep.subr.mxu0 0.0
      %4129 = vmatpush1.msra.mxu0 0.0
      %4130 = vmatprep.subr.mxu0 0.0
      %4131 = vmatpush1.msra.mxu0 0.0
      %4132 = vmatprep.subr.mxu0 0.0
      %4133 = vmatpush1.msra.mxu0 0.0
      %4134 = vmatprep.subr.mxu0 0.0
      %4135 = vmatpush1.msra.mxu0 0.0
      %4136 = vmatprep.subr.mxu0 0.0
      %4137 = vmatpush1.msra.mxu0 0.0
      %4138 = vmatprep.subr.mxu0 0.0
      %4139 = vmatpush1.msra.mxu0 0.0
      %4140 = vmatprep.subr.mxu0 0.0
      %4141 = vmatpush1.msra.mxu0 0.0
      %4142 = vmatprep.subr.mxu0 0.0
      %4143 = vmatpush1.msra.mxu0 0.0
      %4144 = vmatprep.subr.mxu0 0.0
      %4145 = vmatpush1.msra.mxu0 0.0
      %4146 = vmatprep.subr.mxu0 0.0
      %4147 = vmatpush1.msra.mxu0 0.0
      %4148 = vmatprep.subr.mxu0 0.0
      %4149 = vmatpush1.msra.mxu0 0.0
      %4150 = vmatprep.subr.mxu0 0.0
      %4151 = vmatpush1.msra.mxu0 0.0
      %4152 = vmatprep.subr.mxu0 0.0
      %4153 = vmatpush1.msra.mxu0 0.0
      %4154 = vmatprep.subr.mxu0 0.0
      %4155 = vmatpush1.msra.mxu0 0.0
      %4156 = vmatprep.subr.mxu0 0.0
      %4157 = vmatpush1.msra.mxu0 0.0
      %4158 = vmatprep.subr.mxu0 0.0
      %4159 = vmatpush1.msra.mxu0 0.0
      %4160 = vmatprep.subr.mxu0 0.0
      %4161 = vmatpush1.msra.mxu0 0.0
      %4162 = vmatprep.subr.mxu0 0.0
      %4163 = vmatpush1.msra.mxu0 0.0
      %4164 = vmatprep.subr.mxu0 0.0
      %4165 = vmatpush1.msra.mxu0 0.0
      %4166 = vmatprep.subr.mxu0 0.0
      %4167 = vmatpush1.msra.mxu0 0.0
      %4168 = vmatprep.subr.mxu0 0.0
      %4169 = vmatpush1.msra.mxu0 0.0
      %4170 = vmatprep.subr.mxu0 0.0
      %4171 = vmatpush1.msra.mxu0 0.0
      %4172 = vmatprep.subr.mxu0 0.0
      %4173 = vmatpush1.msra.mxu0 0.0
      %4174 = vmatprep.subr.mxu0 0.0
      %4175 = vmatpush1.msra.mxu0 0.0
      %4176 = vmatprep.subr.mxu0 0.0
      %4177 = vmatpush1.msra.mxu0 0.0
      %4178 = vmatprep.subr.mxu0 0.0
      %4179 = vmatpush1.msra.mxu0 0.0
      %4180 = vmatprep.subr.mxu0 0.0
      %4181 = vmatpush1.msra.mxu0 0.0
      %4182 = vmatprep.subr.mxu0 0.0
      %4183 = vmatpush1.msra.mxu0 0.0
      %4184 = vmatprep.subr.mxu0 0.0
      %4185 = vmatpush1.msra.mxu0 0.0
      %4186 = vmatprep.subr.mxu0 0.0
      %4187 = vmatpush1.msra.mxu0 0.0
      %4188 = vmatprep.mubr.f32.mxu0 0.0
      %v4189 = vand.u32 %v3886, 4294901760
      %v4190 = vsub.f32 %v3886, %v4189
      %v4191 = vand.u32 %v4190, 4294901760
      %4192 = vmatmul.mubr.f32.gmra.mrb[0].mxu0 %v4191
      %v4193 = vpop.f32.mrb[0].mxu0
      %v4194 = vadd.f32 %v4119, %v4193
      %v4195 = vpop.f32.mrb[0].mxu0
      %4196 = vdwg.mxu0
      %4197 = vmatprep.subr.mxu0 0.0
      %v4198 = vand.u32 %v3365, 4294901760
      %v4199 = vsub.f32 %v3365, %v4198
      %v4200 = vand.u32 %v4199, 4294901760
      %4201 = vmatpush1.msra.mxu0 %v4200
      %4202 = vmatprep.subr.mxu0 0.0
      %v4203 = vand.u32 %v3366, 4294901760
      %v4204 = vsub.f32 %v3366, %v4203
      %v4205 = vand.u32 %v4204, 4294901760
      %4206 = vmatpush1.msra.mxu0 %v4205
      %4207 = vmatprep.subr.mxu0 0.0
      %4208 = vmatpush1.msra.mxu0 0.0
      %4209 = vmatprep.subr.mxu0 0.0
      %4210 = vmatpush1.msra.mxu0 0.0
      %4211 = vmatprep.subr.mxu0 0.0
      %4212 = vmatpush1.msra.mxu0 0.0
      %4213 = vmatprep.subr.mxu0 0.0
      %4214 = vmatpush1.msra.mxu0 0.0
      %4215 = vmatprep.subr.mxu0 0.0
      %4216 = vmatpush1.msra.mxu0 0.0
      %4217 = vmatprep.subr.mxu0 0.0
      %4218 = vmatpush1.msra.mxu0 0.0
      %4219 = vmatprep.subr.mxu0 0.0
      %4220 = vmatpush1.msra.mxu0 0.0
      %4221 = vmatprep.subr.mxu0 0.0
      %4222 = vmatpush1.msra.mxu0 0.0
      %4223 = vmatprep.subr.mxu0 0.0
      %4224 = vmatpush1.msra.mxu0 0.0
      %4225 = vmatprep.subr.mxu0 0.0
      %4226 = vmatpush1.msra.mxu0 0.0
      %4227 = vmatprep.subr.mxu0 0.0
      %4228 = vmatpush1.msra.mxu0 0.0
      %4229 = vmatprep.subr.mxu0 0.0
      %4230 = vmatpush1.msra.mxu0 0.0
      %4231 = vmatprep.subr.mxu0 0.0
      %4232 = vmatpush1.msra.mxu0 0.0
      %4233 = vmatprep.subr.mxu0 0.0
      %4234 = vmatpush1.msra.mxu0 0.0
      %4235 = vmatprep.subr.mxu0 0.0
      %4236 = vmatpush1.msra.mxu0 0.0
      %4237 = vmatprep.subr.mxu0 0.0
      %4238 = vmatpush1.msra.mxu0 0.0
      %4239 = vmatprep.subr.mxu0 0.0
      %4240 = vmatpush1.msra.mxu0 0.0
      %4241 = vmatprep.subr.mxu0 0.0
      %4242 = vmatpush1.msra.mxu0 0.0
      %4243 = vmatprep.subr.mxu0 0.0
      %4244 = vmatpush1.msra.mxu0 0.0
      %4245 = vmatprep.subr.mxu0 0.0
      %4246 = vmatpush1.msra.mxu0 0.0
      %4247 = vmatprep.subr.mxu0 0.0
      %4248 = vmatpush1.msra.mxu0 0.0
      %4249 = vmatprep.subr.mxu0 0.0
      %4250 = vmatpush1.msra.mxu0 0.0
      %4251 = vmatprep.subr.mxu0 0.0
      %4252 = vmatpush1.msra.mxu0 0.0
      %4253 = vmatprep.subr.mxu0 0.0
      %4254 = vmatpush1.msra.mxu0 0.0
      %4255 = vmatprep.subr.mxu0 0.0
      %4256 = vmatpush1.msra.mxu0 0.0
      %4257 = vmatprep.subr.mxu0 0.0
      %4258 = vmatpush1.msra.mxu0 0.0
      %4259 = vmatprep.subr.mxu0 0.0
      %4260 = vmatpush1.msra.mxu0 0.0
      %4261 = vmatprep.subr.mxu0 0.0
      %4262 = vmatpush1.msra.mxu0 0.0
      %4263 = vmatprep.subr.mxu0 0.0
      %4264 = vmatpush1.msra.mxu0 0.0
      %4265 = vmatprep.subr.mxu0 0.0
      %4266 = vmatpush1.msra.mxu0 0.0
      %4267 = vmatprep.mubr.f32.mxu0 0.0
      %v4268 = vand.u32 %v3886, 4294901760
      %4269 = vmatmul.mubr.f32.gmra.mrb[0].mxu0 %v4268
      %v4270 = vpop.f32.mrb[0].mxu0
      %v4271 = vadd.f32 %v4194, %v4270
      %v4272 = vpop.f32.mrb[0].mxu0
      %4273 = vdwg.mxu0
      %4274 = vmatprep.subr.mxu0 0.0
      %v4275 = vand.u32 %v3365, 4294901760
      %4276 = vmatpush1.msra.mxu0 %v4275
      %4277 = vmatprep.subr.mxu0 0.0
      %v4278 = vand.u32 %v3366, 4294901760
      %4279 = vmatpush1.msra.mxu0 %v4278
      %4280 = vmatprep.subr.mxu0 0.0
      %4281 = vmatpush1.msra.mxu0 0.0
      %4282 = vmatprep.subr.mxu0 0.0
      %4283 = vmatpush1.msra.mxu0 0.0
      %4284 = vmatprep.subr.mxu0 0.0
      %4285 = vmatpush1.msra.mxu0 0.0
      %4286 = vmatprep.subr.mxu0 0.0
      %4287 = vmatpush1.msra.mxu0 0.0
      %4288 = vmatprep.subr.mxu0 0.0
      %4289 = vmatpush1.msra.mxu0 0.0
      %4290 = vmatprep.subr.mxu0 0.0
      %4291 = vmatpush1.msra.mxu0 0.0
      %4292 = vmatprep.subr.mxu0 0.0
      %4293 = vmatpush1.msra.mxu0 0.0
      %4294 = vmatprep.subr.mxu0 0.0
      %4295 = vmatpush1.msra.mxu0 0.0
      %4296 = vmatprep.subr.mxu0 0.0
      %4297 = vmatpush1.msra.mxu0 0.0
      %4298 = vmatprep.subr.mxu0 0.0
      %4299 = vmatpush1.msra.mxu0 0.0
      %4300 = vmatprep.subr.mxu0 0.0
      %4301 = vmatpush1.msra.mxu0 0.0
      %4302 = vmatprep.subr.mxu0 0.0
      %4303 = vmatpush1.msra.mxu0 0.0
      %4304 = vmatprep.subr.mxu0 0.0
      %4305 = vmatpush1.msra.mxu0 0.0
      %4306 = vmatprep.subr.mxu0 0.0
      %4307 = vmatpush1.msra.mxu0 0.0
      %4308 = vmatprep.subr.mxu0 0.0
      %4309 = vmatpush1.msra.mxu0 0.0
      %4310 = vmatprep.subr.mxu0 0.0
      %4311 = vmatpush1.msra.mxu0 0.0
      %4312 = vmatprep.subr.mxu0 0.0
      %4313 = vmatpush1.msra.mxu0 0.0
      %4314 = vmatprep.subr.mxu0 0.0
      %4315 = vmatpush1.msra.mxu0 0.0
      %4316 = vmatprep.subr.mxu0 0.0
      %4317 = vmatpush1.msra.mxu0 0.0
      %4318 = vmatprep.subr.mxu0 0.0
      %4319 = vmatpush1.msra.mxu0 0.0
      %4320 = vmatprep.subr.mxu0 0.0
      %4321 = vmatpush1.msra.mxu0 0.0
      %4322 = vmatprep.subr.mxu0 0.0
      %4323 = vmatpush1.msra.mxu0 0.0
      %4324 = vmatprep.subr.mxu0 0.0
      %4325 = vmatpush1.msra.mxu0 0.0
      %4326 = vmatprep.subr.mxu0 0.0
      %4327 = vmatpush1.msra.mxu0 0.0
      %4328 = vmatprep.subr.mxu0 0.0
      %4329 = vmatpush1.msra.mxu0 0.0
      %4330 = vmatprep.subr.mxu0 0.0
      %4331 = vmatpush1.msra.mxu0 0.0
      %4332 = vmatprep.subr.mxu0 0.0
      %4333 = vmatpush1.msra.mxu0 0.0
      %4334 = vmatprep.subr.mxu0 0.0
      %4335 = vmatpush1.msra.mxu0 0.0
      %4336 = vmatprep.subr.mxu0 0.0
      %4337 = vmatpush1.msra.mxu0 0.0
      %4338 = vmatprep.subr.mxu0 0.0
      %4339 = vmatpush1.msra.mxu0 0.0
      %4340 = vmatprep.mubr.f32.mxu0 0.0
      %v4341 = vand.u32 %v3886, 4294901760
      %4342 = vmatmul.mubr.f32.gmra.mrb[0].mxu0 %v4341
      %v4343 = vpop.f32.mrb[0].mxu0
      %v4344 = vadd.f32 %v4271, %v4343
      %v4345 = vpop.f32.mrb[0].mxu0
      %4346 = vdwg.mxu0
      %v4347 = vadd.f32 %v3874, %v4344
      %v4348 = vxor.u32 %v4347, 2147483648
      %v4349 = vmul.f32 %v4348, 1.442695
      %v4350 = vpow.pop %v4349
      %v4351 = vadd.f32 %v4350, 1.0
      %v4352 = vrcp.pop %v4351
      %v4353 = vmul.f32 1.0, %v4352
      %4355 = vrot.lane.b32.xlu0 %v4344, 96
      %v4356 = vpop.permute.xlu0 %4355
      %v4358 = vmul.f32 %v4353, %v4356
      %4360 = vrot.lane.b32.xlu0 %v4358, 32
      %v4361 = vpop.permute.xlu0 %4360
      %v4363 = vadd.f32 %v3874, %v4361
      %v4364 = vtanh.pop %v4363
      %v4365 = vsub.f32 1.0, %v4353
      %4367 = vrot.lane.b32.xlu0 %v4364, 112
      %v4368 = vpop.permute.xlu0 %4367
      %v4370 = vmul.f32 %v4365, %v4368
      %v4371 = vmul.f32 %v4353, %v3377
      %v4372 = vadd.f32 %v4370, %v4371
      %v4373 = vstv %s3378
      %vm4374 = vcmp.lt.s32.totalorder %v4373, %v141
      %v4375 = vsel %vm4374, 1, 0
      %4376 = vset.pattern.permute.xlu0 0
      %4377 = vperm.xlu0 %4376, %v4375
      %v4378 = vpop.permute.xlu0 %4377
      %vm4379 = vcmp.eq.s32.totalorder %v4378, 1
      %v4380 = vsel %vm4379, %v4372, %v3377
    $region111: #{tpu_custom_call.1} parent=1 // loop_footer
      %s3376 = sadd.s32 1, %s3372
    $region112: #{tpu_custom_call.1} parent=1 // loop_footer_branch
      %3371 = sbr.rel target = $region108
    $region113: #{tpu_custom_call.1} parent=1 // loop_exit
      _
    %4382 = vrot.lane.b32.xlu0 %v154, 112
    %v4383 = vpop.permute.xlu0 %4382
    %4386 = vrot.lane.b32.xlu0 %v1155, 16
    %v4387 = vpop.permute.xlu0 %4386
    %4390 = vrot.lane.b32.xlu0 %v3377, 32
    %v4391 = vpop.permute.xlu0 %4390
    %v4393 = vsel %vm2189, %v4383, %v2356
    %vm4394 = vcmask 261120
    %v4395 = vsel %vm4394, %v4393, %v4387
    %vm4396 = vcmask 392192
    %v4397 = vsel %vm4396, %v4395, %v4391
    %v4398 = vld [vmem:[%s12] sm:$0xff]
    %v4399 = vld [vmem:[%s12 + $0x8] sm:$0xff]
    %v4400 = vld [vmem:[%s12 + $0x10] sm:$0xff]
    %v4401 = vld [vmem:[%s12 + $0x18] sm:$0xff]
    %v4402 = vld [vmem:[%s12 + $0x20] sm:$0xff]
    %v4403 = vld [vmem:[%s12 + $0x28] sm:$0xff]
    %v4404 = vld [vmem:[%s12 + $0x30] sm:$0xff]
    %v4405 = vld [vmem:[%s12 + $0x38] sm:$0xff]
    %v4406 = vld [vmem:[%s13] sm:$0x1]
    %v4408 = vlaneseq
    %v4409 = vshrl.u32 %v4408, 7
    %v4410 = vsub.s32 0, %v4409
    %v4411 = vrot.slane %v4406, %v4410
    %vm4413 = vcmask 523264
    %v4415 = vsel %vm4413, %v4397, 0
    %4417 = vmatprep.subr.mxu0 0.0
    %v4418 = vand.u32 %v4398, 4294901760
    %4419 = vmatpush1.msra.mxu0 %v4418
    %4420 = vmatprep.subr.mxu0 0.0
    %v4421 = vand.u32 %v4399, 4294901760
    %4422 = vmatpush1.msra.mxu0 %v4421
    %4423 = vmatprep.subr.mxu0 0.0
    %v4424 = vand.u32 %v4400, 4294901760
    %4425 = vmatpush1.msra.mxu0 %v4424
    %4426 = vmatprep.subr.mxu0 0.0
    %v4427 = vand.u32 %v4401, 4294901760
    %4428 = vmatpush1.msra.mxu0 %v4427
    %4429 = vmatprep.subr.mxu0 0.0
    %v4430 = vand.u32 %v4402, 4294901760
    %4431 = vmatpush1.msra.mxu0 %v4430
    %4432 = vmatprep.subr.mxu0 0.0
    %v4433 = vand.u32 %v4403, 4294901760
    %4434 = vmatpush1.msra.mxu0 %v4433
    %4435 = vmatprep.subr.mxu0 0.0
    %v4436 = vand.u32 %v4404, 4294901760
    %4437 = vmatpush1.msra.mxu0 %v4436
    %4438 = vmatprep.subr.mxu0 0.0
    %v4439 = vand.u32 %v4405, 4294901760
    %4440 = vmatpush1.msra.mxu0 %v4439
    %4441 = vmatprep.subr.mxu0 0.0
    %4442 = vmatpush1.msra.mxu0 0.0
    %4443 = vmatprep.subr.mxu0 0.0
    %4444 = vmatpush1.msra.mxu0 0.0
    %4445 = vmatprep.subr.mxu0 0.0
    %4446 = vmatpush1.msra.mxu0 0.0
    %4447 = vmatprep.subr.mxu0 0.0
    %4448 = vmatpush1.msra.mxu0 0.0
    %4449 = vmatprep.subr.mxu0 0.0
    %4450 = vmatpush1.msra.mxu0 0.0
    %4451 = vmatprep.subr.mxu0 0.0
    %4452 = vmatpush1.msra.mxu0 0.0
    %4453 = vmatprep.subr.mxu0 0.0
    %4454 = vmatpush1.msra.mxu0 0.0
    %4455 = vmatprep.subr.mxu0 0.0
    %4456 = vmatpush1.msra.mxu0 0.0
    %4457 = vmatprep.subr.mxu0 0.0
    %4458 = vmatpush1.msra.mxu0 0.0
    %4459 = vmatprep.subr.mxu0 0.0
    %4460 = vmatpush1.msra.mxu0 0.0
    %4461 = vmatprep.subr.mxu0 0.0
    %4462 = vmatpush1.msra.mxu0 0.0
    %4463 = vmatprep.subr.mxu0 0.0
    %4464 = vmatpush1.msra.mxu0 0.0
    %4465 = vmatprep.subr.mxu0 0.0
    %4466 = vmatpush1.msra.mxu0 0.0
    %4467 = vmatprep.subr.mxu0 0.0
    %4468 = vmatpush1.msra.mxu0 0.0
    %4469 = vmatprep.subr.mxu0 0.0
    %4470 = vmatpush1.msra.mxu0 0.0
    %4471 = vmatprep.subr.mxu0 0.0
    %4472 = vmatpush1.msra.mxu0 0.0
    %4473 = vmatprep.subr.mxu0 0.0
    %4474 = vmatpush1.msra.mxu0 0.0
    %4475 = vmatprep.subr.mxu0 0.0
    %4476 = vmatpush1.msra.mxu0 0.0
    %4477 = vmatprep.subr.mxu0 0.0
    %4478 = vmatpush1.msra.mxu0 0.0
    %4479 = vmatprep.subr.mxu0 0.0
    %4480 = vmatpush1.msra.mxu0 0.0
    %4481 = vmatprep.subr.mxu0 0.0
    %4482 = vmatpush1.msra.mxu0 0.0
    %4483 = vmatprep.subr.mxu0 0.0
    %4484 = vmatpush1.msra.mxu0 0.0
    %4485 = vmatprep.subr.mxu0 0.0
    %4486 = vmatpush1.msra.mxu0 0.0
    %4487 = vmatprep.subr.mxu0 0.0
    %4488 = vmatpush1.msra.mxu0 0.0
    %4489 = vmatprep.mubr.f32.mxu0 0.0
    %v4490 = vand.u32 %v4415, 4294901760
    %v4491 = vsub.f32 %v4415, %v4490
    %v4492 = vand.u32 %v4491, 4294901760
    %v4493 = vsub.f32 %v4491, %v4492
    %v4494 = vand.u32 %v4493, 4294901760
    %4495 = vmatmul.mubr.f32.gmra.mrb[0].mxu0 %v4494
    %v4496 = vpop.f32.mrb[0].mxu0
    %v4497 = vadd.f32 %v4411, %v4496
    %v4498 = vpop.f32.mrb[0].mxu0
    %4499 = vdwg.mxu0
    %4500 = vmatprep.subr.mxu0 0.0
    %v4501 = vand.u32 %v4398, 4294901760
    %v4502 = vsub.f32 %v4398, %v4501
    %v4503 = vand.u32 %v4502, 4294901760
    %v4504 = vsub.f32 %v4502, %v4503
    %v4505 = vand.u32 %v4504, 4294901760
    %4506 = vmatpush1.msra.mxu0 %v4505
    %4507 = vmatprep.subr.mxu0 0.0
    %v4508 = vand.u32 %v4399, 4294901760
    %v4509 = vsub.f32 %v4399, %v4508
    %v4510 = vand.u32 %v4509, 4294901760
    %v4511 = vsub.f32 %v4509, %v4510
    %v4512 = vand.u32 %v4511, 4294901760
    %4513 = vmatpush1.msra.mxu0 %v4512
    %4514 = vmatprep.subr.mxu0 0.0
    %v4515 = vand.u32 %v4400, 4294901760
    %v4516 = vsub.f32 %v4400, %v4515
    %v4517 = vand.u32 %v4516, 4294901760
    %v4518 = vsub.f32 %v4516, %v4517
    %v4519 = vand.u32 %v4518, 4294901760
    %4520 = vmatpush1.msra.mxu0 %v4519
    %4521 = vmatprep.subr.mxu0 0.0
    %v4522 = vand.u32 %v4401, 4294901760
    %v4523 = vsub.f32 %v4401, %v4522
    %v4524 = vand.u32 %v4523, 4294901760
    %v4525 = vsub.f32 %v4523, %v4524
    %v4526 = vand.u32 %v4525, 4294901760
    %4527 = vmatpush1.msra.mxu0 %v4526
    %4528 = vmatprep.subr.mxu0 0.0
    %v4529 = vand.u32 %v4402, 4294901760
    %v4530 = vsub.f32 %v4402, %v4529
    %v4531 = vand.u32 %v4530, 4294901760
    %v4532 = vsub.f32 %v4530, %v4531
    %v4533 = vand.u32 %v4532, 4294901760
    %4534 = vmatpush1.msra.mxu0 %v4533
    %4535 = vmatprep.subr.mxu0 0.0
    %v4536 = vand.u32 %v4403, 4294901760
    %v4537 = vsub.f32 %v4403, %v4536
    %v4538 = vand.u32 %v4537, 4294901760
    %v4539 = vsub.f32 %v4537, %v4538
    %v4540 = vand.u32 %v4539, 4294901760
    %4541 = vmatpush1.msra.mxu0 %v4540
    %4542 = vmatprep.subr.mxu0 0.0
    %v4543 = vand.u32 %v4404, 4294901760
    %v4544 = vsub.f32 %v4404, %v4543
    %v4545 = vand.u32 %v4544, 4294901760
    %v4546 = vsub.f32 %v4544, %v4545
    %v4547 = vand.u32 %v4546, 4294901760
    %4548 = vmatpush1.msra.mxu0 %v4547
    %4549 = vmatprep.subr.mxu0 0.0
    %v4550 = vand.u32 %v4405, 4294901760
    %v4551 = vsub.f32 %v4405, %v4550
    %v4552 = vand.u32 %v4551, 4294901760
    %v4553 = vsub.f32 %v4551, %v4552
    %v4554 = vand.u32 %v4553, 4294901760
    %4555 = vmatpush1.msra.mxu0 %v4554
    %4556 = vmatprep.subr.mxu0 0.0
    %4557 = vmatpush1.msra.mxu0 0.0
    %4558 = vmatprep.subr.mxu0 0.0
    %4559 = vmatpush1.msra.mxu0 0.0
    %4560 = vmatprep.subr.mxu0 0.0
    %4561 = vmatpush1.msra.mxu0 0.0
    %4562 = vmatprep.subr.mxu0 0.0
    %4563 = vmatpush1.msra.mxu0 0.0
    %4564 = vmatprep.subr.mxu0 0.0
    %4565 = vmatpush1.msra.mxu0 0.0
    %4566 = vmatprep.subr.mxu0 0.0
    %4567 = vmatpush1.msra.mxu0 0.0
    %4568 = vmatprep.subr.mxu0 0.0
    %4569 = vmatpush1.msra.mxu0 0.0
    %4570 = vmatprep.subr.mxu0 0.0
    %4571 = vmatpush1.msra.mxu0 0.0
    %4572 = vmatprep.subr.mxu0 0.0
    %4573 = vmatpush1.msra.mxu0 0.0
    %4574 = vmatprep.subr.mxu0 0.0
    %4575 = vmatpush1.msra.mxu0 0.0
    %4576 = vmatprep.subr.mxu0 0.0
    %4577 = vmatpush1.msra.mxu0 0.0
    %4578 = vmatprep.subr.mxu0 0.0
    %4579 = vmatpush1.msra.mxu0 0.0
    %4580 = vmatprep.subr.mxu0 0.0
    %4581 = vmatpush1.msra.mxu0 0.0
    %4582 = vmatprep.subr.mxu0 0.0
    %4583 = vmatpush1.msra.mxu0 0.0
    %4584 = vmatprep.subr.mxu0 0.0
    %4585 = vmatpush1.msra.mxu0 0.0
    %4586 = vmatprep.subr.mxu0 0.0
    %4587 = vmatpush1.msra.mxu0 0.0
    %4588 = vmatprep.subr.mxu0 0.0
    %4589 = vmatpush1.msra.mxu0 0.0
    %4590 = vmatprep.subr.mxu0 0.0
    %4591 = vmatpush1.msra.mxu0 0.0
    %4592 = vmatprep.subr.mxu0 0.0
    %4593 = vmatpush1.msra.mxu0 0.0
    %4594 = vmatprep.subr.mxu0 0.0
    %4595 = vmatpush1.msra.mxu0 0.0
    %4596 = vmatprep.subr.mxu0 0.0
    %4597 = vmatpush1.msra.mxu0 0.0
    %4598 = vmatprep.subr.mxu0 0.0
    %4599 = vmatpush1.msra.mxu0 0.0
    %4600 = vmatprep.subr.mxu0 0.0
    %4601 = vmatpush1.msra.mxu0 0.0
    %4602 = vmatprep.subr.mxu0 0.0
    %4603 = vmatpush1.msra.mxu0 0.0
    %4604 = vmatprep.mubr.f32.mxu0 0.0
    %v4605 = vand.u32 %v4415, 4294901760
    %4606 = vmatmul.mubr.f32.gmra.mrb[0].mxu0 %v4605
    %v4607 = vpop.f32.mrb[0].mxu0
    %v4608 = vadd.f32 %v4497, %v4607
    %v4609 = vpop.f32.mrb[0].mxu0
    %4610 = vdwg.mxu0
    %4611 = vmatprep.subr.mxu0 0.0
    %v4612 = vand.u32 %v4398, 4294901760
    %v4613 = vsub.f32 %v4398, %v4612
    %4614 = vmatpush1.msra.mxu0 %v4613
    %4615 = vmatprep.subr.mxu0 0.0
    %v4616 = vand.u32 %v4399, 4294901760
    %v4617 = vsub.f32 %v4399, %v4616
    %4618 = vmatpush1.msra.mxu0 %v4617
    %4619 = vmatprep.subr.mxu0 0.0
    %v4620 = vand.u32 %v4400, 4294901760
    %v4621 = vsub.f32 %v4400, %v4620
    %4622 = vmatpush1.msra.mxu0 %v4621
    %4623 = vmatprep.subr.mxu0 0.0
    %v4624 = vand.u32 %v4401, 4294901760
    %v4625 = vsub.f32 %v4401, %v4624
    %4626 = vmatpush1.msra.mxu0 %v4625
    %4627 = vmatprep.subr.mxu0 0.0
    %v4628 = vand.u32 %v4402, 4294901760
    %v4629 = vsub.f32 %v4402, %v4628
    %4630 = vmatpush1.msra.mxu0 %v4629
    %4631 = vmatprep.subr.mxu0 0.0
    %v4632 = vand.u32 %v4403, 4294901760
    %v4633 = vsub.f32 %v4403, %v4632
    %4634 = vmatpush1.msra.mxu0 %v4633
    %4635 = vmatprep.subr.mxu0 0.0
    %v4636 = vand.u32 %v4404, 4294901760
    %v4637 = vsub.f32 %v4404, %v4636
    %4638 = vmatpush1.msra.mxu0 %v4637
    %4639 = vmatprep.subr.mxu0 0.0
    %v4640 = vand.u32 %v4405, 4294901760
    %v4641 = vsub.f32 %v4405, %v4640
    %4642 = vmatpush1.msra.mxu0 %v4641
    %4643 = vmatprep.subr.mxu0 0.0
    %4644 = vmatpush1.msra.mxu0 0.0
    %4645 = vmatprep.subr.mxu0 0.0
    %4646 = vmatpush1.msra.mxu0 0.0
    %4647 = vmatprep.subr.mxu0 0.0
    %4648 = vmatpush1.msra.mxu0 0.0
    %4649 = vmatprep.subr.mxu0 0.0
    %4650 = vmatpush1.msra.mxu0 0.0
    %4651 = vmatprep.subr.mxu0 0.0
    %4652 = vmatpush1.msra.mxu0 0.0
    %4653 = vmatprep.subr.mxu0 0.0
    %4654 = vmatpush1.msra.mxu0 0.0
    %4655 = vmatprep.subr.mxu0 0.0
    %4656 = vmatpush1.msra.mxu0 0.0
    %4657 = vmatprep.subr.mxu0 0.0
    %4658 = vmatpush1.msra.mxu0 0.0
    %4659 = vmatprep.subr.mxu0 0.0
    %4660 = vmatpush1.msra.mxu0 0.0
    %4661 = vmatprep.subr.mxu0 0.0
    %4662 = vmatpush1.msra.mxu0 0.0
    %4663 = vmatprep.subr.mxu0 0.0
    %4664 = vmatpush1.msra.mxu0 0.0
    %4665 = vmatprep.subr.mxu0 0.0
    %4666 = vmatpush1.msra.mxu0 0.0
    %4667 = vmatprep.subr.mxu0 0.0
    %4668 = vmatpush1.msra.mxu0 0.0
    %4669 = vmatprep.subr.mxu0 0.0
    %4670 = vmatpush1.msra.mxu0 0.0
    %4671 = vmatprep.subr.mxu0 0.0
    %4672 = vmatpush1.msra.mxu0 0.0
    %4673 = vmatprep.subr.mxu0 0.0
    %4674 = vmatpush1.msra.mxu0 0.0
    %4675 = vmatprep.subr.mxu0 0.0
    %4676 = vmatpush1.msra.mxu0 0.0
    %4677 = vmatprep.subr.mxu0 0.0
    %4678 = vmatpush1.msra.mxu0 0.0
    %4679 = vmatprep.subr.mxu0 0.0
    %4680 = vmatpush1.msra.mxu0 0.0
    %4681 = vmatprep.subr.mxu0 0.0
    %4682 = vmatpush1.msra.mxu0 0.0
    %4683 = vmatprep.subr.mxu0 0.0
    %4684 = vmatpush1.msra.mxu0 0.0
    %4685 = vmatprep.subr.mxu0 0.0
    %4686 = vmatpush1.msra.mxu0 0.0
    %4687 = vmatprep.subr.mxu0 0.0
    %4688 = vmatpush1.msra.mxu0 0.0
    %4689 = vmatprep.subr.mxu0 0.0
    %4690 = vmatpush1.msra.mxu0 0.0
    %4691 = vmatprep.mubr.f32.mxu0 0.0
    %v4692 = vand.u32 %v4415, 4294901760
    %v4693 = vsub.f32 %v4415, %v4692
    %4694 = vmatmul.mubr.f32.gmra.mrb[0].mxu0 %v4693
    %v4695 = vpop.f32.mrb[0].mxu0
    %v4696 = vadd.f32 %v4608, %v4695
    %v4697 = vpop.f32.mrb[0].mxu0
    %4698 = vdwg.mxu0
    %4699 = vmatprep.subr.mxu0 0.0
    %v4700 = vand.u32 %v4398, 4294901760
    %4701 = vmatpush1.msra.mxu0 %v4700
    %4702 = vmatprep.subr.mxu0 0.0
    %v4703 = vand.u32 %v4399, 4294901760
    %4704 = vmatpush1.msra.mxu0 %v4703
    %4705 = vmatprep.subr.mxu0 0.0
    %v4706 = vand.u32 %v4400, 4294901760
    %4707 = vmatpush1.msra.mxu0 %v4706
    %4708 = vmatprep.subr.mxu0 0.0
    %v4709 = vand.u32 %v4401, 4294901760
    %4710 = vmatpush1.msra.mxu0 %v4709
    %4711 = vmatprep.subr.mxu0 0.0
    %v4712 = vand.u32 %v4402, 4294901760
    %4713 = vmatpush1.msra.mxu0 %v4712
    %4714 = vmatprep.subr.mxu0 0.0
    %v4715 = vand.u32 %v4403, 4294901760
    %4716 = vmatpush1.msra.mxu0 %v4715
    %4717 = vmatprep.subr.mxu0 0.0
    %v4718 = vand.u32 %v4404, 4294901760
    %4719 = vmatpush1.msra.mxu0 %v4718
    %4720 = vmatprep.subr.mxu0 0.0
    %v4721 = vand.u32 %v4405, 4294901760
    %4722 = vmatpush1.msra.mxu0 %v4721
    %4723 = vmatprep.subr.mxu0 0.0
    %4724 = vmatpush1.msra.mxu0 0.0
    %4725 = vmatprep.subr.mxu0 0.0
    %4726 = vmatpush1.msra.mxu0 0.0
    %4727 = vmatprep.subr.mxu0 0.0
    %4728 = vmatpush1.msra.mxu0 0.0
    %4729 = vmatprep.subr.mxu0 0.0
    %4730 = vmatpush1.msra.mxu0 0.0
    %4731 = vmatprep.subr.mxu0 0.0
    %4732 = vmatpush1.msra.mxu0 0.0
    %4733 = vmatprep.subr.mxu0 0.0
    %4734 = vmatpush1.msra.mxu0 0.0
    %4735 = vmatprep.subr.mxu0 0.0
    %4736 = vmatpush1.msra.mxu0 0.0
    %4737 = vmatprep.subr.mxu0 0.0
    %4738 = vmatpush1.msra.mxu0 0.0
    %4739 = vmatprep.subr.mxu0 0.0
    %4740 = vmatpush1.msra.mxu0 0.0
    %4741 = vmatprep.subr.mxu0 0.0
    %4742 = vmatpush1.msra.mxu0 0.0
    %4743 = vmatprep.subr.mxu0 0.0
    %4744 = vmatpush1.msra.mxu0 0.0
    %4745 = vmatprep.subr.mxu0 0.0
    %4746 = vmatpush1.msra.mxu0 0.0
    %4747 = vmatprep.subr.mxu0 0.0
    %4748 = vmatpush1.msra.mxu0 0.0
    %4749 = vmatprep.subr.mxu0 0.0
    %4750 = vmatpush1.msra.mxu0 0.0
    %4751 = vmatprep.subr.mxu0 0.0
    %4752 = vmatpush1.msra.mxu0 0.0
    %4753 = vmatprep.subr.mxu0 0.0
    %4754 = vmatpush1.msra.mxu0 0.0
    %4755 = vmatprep.subr.mxu0 0.0
    %4756 = vmatpush1.msra.mxu0 0.0
    %4757 = vmatprep.subr.mxu0 0.0
    %4758 = vmatpush1.msra.mxu0 0.0
    %4759 = vmatprep.subr.mxu0 0.0
    %4760 = vmatpush1.msra.mxu0 0.0
    %4761 = vmatprep.subr.mxu0 0.0
    %4762 = vmatpush1.msra.mxu0 0.0
    %4763 = vmatprep.subr.mxu0 0.0
    %4764 = vmatpush1.msra.mxu0 0.0
    %4765 = vmatprep.subr.mxu0 0.0
    %4766 = vmatpush1.msra.mxu0 0.0
    %4767 = vmatprep.subr.mxu0 0.0
    %4768 = vmatpush1.msra.mxu0 0.0
    %4769 = vmatprep.subr.mxu0 0.0
    %4770 = vmatpush1.msra.mxu0 0.0
    %4771 = vmatprep.mubr.f32.mxu0 0.0
    %v4772 = vand.u32 %v4415, 4294901760
    %v4773 = vsub.f32 %v4415, %v4772
    %v4774 = vand.u32 %v4773, 4294901760
    %4775 = vmatmul.mubr.f32.gmra.mrb[0].mxu0 %v4774
    %v4776 = vpop.f32.mrb[0].mxu0
    %v4777 = vadd.f32 %v4696, %v4776
    %v4778 = vpop.f32.mrb[0].mxu0
    %4779 = vdwg.mxu0
    %4780 = vmatprep.subr.mxu0 0.0
    %v4781 = vand.u32 %v4398, 4294901760
    %v4782 = vsub.f32 %v4398, %v4781
    %v4783 = vand.u32 %v4782, 4294901760
    %4784 = vmatpush1.msra.mxu0 %v4783
    %4785 = vmatprep.subr.mxu0 0.0
    %v4786 = vand.u32 %v4399, 4294901760
    %v4787 = vsub.f32 %v4399, %v4786
    %v4788 = vand.u32 %v4787, 4294901760
    %4789 = vmatpush1.msra.mxu0 %v4788
    %4790 = vmatprep.subr.mxu0 0.0
    %v4791 = vand.u32 %v4400, 4294901760
    %v4792 = vsub.f32 %v4400, %v4791
    %v4793 = vand.u32 %v4792, 4294901760
    %4794 = vmatpush1.msra.mxu0 %v4793
    %4795 = vmatprep.subr.mxu0 0.0
    %v4796 = vand.u32 %v4401, 4294901760
    %v4797 = vsub.f32 %v4401, %v4796
    %v4798 = vand.u32 %v4797, 4294901760
    %4799 = vmatpush1.msra.mxu0 %v4798
    %4800 = vmatprep.subr.mxu0 0.0
    %v4801 = vand.u32 %v4402, 4294901760
    %v4802 = vsub.f32 %v4402, %v4801
    %v4803 = vand.u32 %v4802, 4294901760
    %4804 = vmatpush1.msra.mxu0 %v4803
    %4805 = vmatprep.subr.mxu0 0.0
    %v4806 = vand.u32 %v4403, 4294901760
    %v4807 = vsub.f32 %v4403, %v4806
    %v4808 = vand.u32 %v4807, 4294901760
    %4809 = vmatpush1.msra.mxu0 %v4808
    %4810 = vmatprep.subr.mxu0 0.0
    %v4811 = vand.u32 %v4404, 4294901760
    %v4812 = vsub.f32 %v4404, %v4811
    %v4813 = vand.u32 %v4812, 4294901760
    %4814 = vmatpush1.msra.mxu0 %v4813
    %4815 = vmatprep.subr.mxu0 0.0
    %v4816 = vand.u32 %v4405, 4294901760
    %v4817 = vsub.f32 %v4405, %v4816
    %v4818 = vand.u32 %v4817, 4294901760
    %4819 = vmatpush1.msra.mxu0 %v4818
    %4820 = vmatprep.subr.mxu0 0.0
    %4821 = vmatpush1.msra.mxu0 0.0
    %4822 = vmatprep.subr.mxu0 0.0
    %4823 = vmatpush1.msra.mxu0 0.0
    %4824 = vmatprep.subr.mxu0 0.0
    %4825 = vmatpush1.msra.mxu0 0.0
    %4826 = vmatprep.subr.mxu0 0.0
    %4827 = vmatpush1.msra.mxu0 0.0
    %4828 = vmatprep.subr.mxu0 0.0
    %4829 = vmatpush1.msra.mxu0 0.0
    %4830 = vmatprep.subr.mxu0 0.0
    %4831 = vmatpush1.msra.mxu0 0.0
    %4832 = vmatprep.subr.mxu0 0.0
    %4833 = vmatpush1.msra.mxu0 0.0
    %4834 = vmatprep.subr.mxu0 0.0
    %4835 = vmatpush1.msra.mxu0 0.0
    %4836 = vmatprep.subr.mxu0 0.0
    %4837 = vmatpush1.msra.mxu0 0.0
    %4838 = vmatprep.subr.mxu0 0.0
    %4839 = vmatpush1.msra.mxu0 0.0
    %4840 = vmatprep.subr.mxu0 0.0
    %4841 = vmatpush1.msra.mxu0 0.0
    %4842 = vmatprep.subr.mxu0 0.0
    %4843 = vmatpush1.msra.mxu0 0.0
    %4844 = vmatprep.subr.mxu0 0.0
    %4845 = vmatpush1.msra.mxu0 0.0
    %4846 = vmatprep.subr.mxu0 0.0
    %4847 = vmatpush1.msra.mxu0 0.0
    %4848 = vmatprep.subr.mxu0 0.0
    %4849 = vmatpush1.msra.mxu0 0.0
    %4850 = vmatprep.subr.mxu0 0.0
    %4851 = vmatpush1.msra.mxu0 0.0
    %4852 = vmatprep.subr.mxu0 0.0
    %4853 = vmatpush1.msra.mxu0 0.0
    %4854 = vmatprep.subr.mxu0 0.0
    %4855 = vmatpush1.msra.mxu0 0.0
    %4856 = vmatprep.subr.mxu0 0.0
    %4857 = vmatpush1.msra.mxu0 0.0
    %4858 = vmatprep.subr.mxu0 0.0
    %4859 = vmatpush1.msra.mxu0 0.0
    %4860 = vmatprep.subr.mxu0 0.0
    %4861 = vmatpush1.msra.mxu0 0.0
    %4862 = vmatprep.subr.mxu0 0.0
    %4863 = vmatpush1.msra.mxu0 0.0
    %4864 = vmatprep.subr.mxu0 0.0
    %4865 = vmatpush1.msra.mxu0 0.0
    %4866 = vmatprep.subr.mxu0 0.0
    %4867 = vmatpush1.msra.mxu0 0.0
    %4868 = vmatprep.mubr.f32.mxu0 0.0
    %v4869 = vand.u32 %v4415, 4294901760
    %4870 = vmatmul.mubr.f32.gmra.mrb[0].mxu0 %v4869
    %v4871 = vpop.f32.mrb[0].mxu0
    %v4872 = vadd.f32 %v4777, %v4871
    %v4873 = vpop.f32.mrb[0].mxu0
    %4874 = vdwg.mxu0
    %4875 = vmatprep.subr.mxu0 0.0
    %v4876 = vand.u32 %v4398, 4294901760
    %4877 = vmatpush1.msra.mxu0 %v4876
    %4878 = vmatprep.subr.mxu0 0.0
    %v4879 = vand.u32 %v4399, 4294901760
    %4880 = vmatpush1.msra.mxu0 %v4879
    %4881 = vmatprep.subr.mxu0 0.0
    %v4882 = vand.u32 %v4400, 4294901760
    %4883 = vmatpush1.msra.mxu0 %v4882
    %4884 = vmatprep.subr.mxu0 0.0
    %v4885 = vand.u32 %v4401, 4294901760
    %4886 = vmatpush1.msra.mxu0 %v4885
    %4887 = vmatprep.subr.mxu0 0.0
    %v4888 = vand.u32 %v4402, 4294901760
    %4889 = vmatpush1.msra.mxu0 %v4888
    %4890 = vmatprep.subr.mxu0 0.0
    %v4891 = vand.u32 %v4403, 4294901760
    %4892 = vmatpush1.msra.mxu0 %v4891
    %4893 = vmatprep.subr.mxu0 0.0
    %v4894 = vand.u32 %v4404, 4294901760
    %4895 = vmatpush1.msra.mxu0 %v4894
    %4896 = vmatprep.subr.mxu0 0.0
    %v4897 = vand.u32 %v4405, 4294901760
    %4898 = vmatpush1.msra.mxu0 %v4897
    %4899 = vmatprep.subr.mxu0 0.0
    %4900 = vmatpush1.msra.mxu0 0.0
    %4901 = vmatprep.subr.mxu0 0.0
    %4902 = vmatpush1.msra.mxu0 0.0
    %4903 = vmatprep.subr.mxu0 0.0
    %4904 = vmatpush1.msra.mxu0 0.0
    %4905 = vmatprep.subr.mxu0 0.0
    %4906 = vmatpush1.msra.mxu0 0.0
    %4907 = vmatprep.subr.mxu0 0.0
    %4908 = vmatpush1.msra.mxu0 0.0
    %4909 = vmatprep.subr.mxu0 0.0
    %4910 = vmatpush1.msra.mxu0 0.0
    %4911 = vmatprep.subr.mxu0 0.0
    %4912 = vmatpush1.msra.mxu0 0.0
    %4913 = vmatprep.subr.mxu0 0.0
    %4914 = vmatpush1.msra.mxu0 0.0
    %4915 = vmatprep.subr.mxu0 0.0
    %4916 = vmatpush1.msra.mxu0 0.0
    %4917 = vmatprep.subr.mxu0 0.0
    %4918 = vmatpush1.msra.mxu0 0.0
    %4919 = vmatprep.subr.mxu0 0.0
    %4920 = vmatpush1.msra.mxu0 0.0
    %4921 = vmatprep.subr.mxu0 0.0
    %4922 = vmatpush1.msra.mxu0 0.0
    %4923 = vmatprep.subr.mxu0 0.0
    %4924 = vmatpush1.msra.mxu0 0.0
    %4925 = vmatprep.subr.mxu0 0.0
    %4926 = vmatpush1.msra.mxu0 0.0
    %4927 = vmatprep.subr.mxu0 0.0
    %4928 = vmatpush1.msra.mxu0 0.0
    %4929 = vmatprep.subr.mxu0 0.0
    %4930 = vmatpush1.msra.mxu0 0.0
    %4931 = vmatprep.subr.mxu0 0.0
    %4932 = vmatpush1.msra.mxu0 0.0
    %4933 = vmatprep.subr.mxu0 0.0
    %4934 = vmatpush1.msra.mxu0 0.0
    %4935 = vmatprep.subr.mxu0 0.0
    %4936 = vmatpush1.msra.mxu0 0.0
    %4937 = vmatprep.subr.mxu0 0.0
    %4938 = vmatpush1.msra.mxu0 0.0
    %4939 = vmatprep.subr.mxu0 0.0
    %4940 = vmatpush1.msra.mxu0 0.0
    %4941 = vmatprep.subr.mxu0 0.0
    %4942 = vmatpush1.msra.mxu0 0.0
    %4943 = vmatprep.subr.mxu0 0.0
    %4944 = vmatpush1.msra.mxu0 0.0
    %4945 = vmatprep.subr.mxu0 0.0
    %4946 = vmatpush1.msra.mxu0 0.0
    %4947 = vmatprep.mubr.f32.mxu0 0.0
    %v4948 = vand.u32 %v4415, 4294901760
    %4949 = vmatmul.mubr.f32.gmra.mrb[0].mxu0 %v4948
    %v4950 = vpop.f32.mrb[0].mxu0
    %v4951 = vadd.f32 %v4872, %v4950
    %v4952 = vpop.f32.mrb[0].mxu0
    %4953 = vdwg.mxu0
    %vm4954 = vcmp.ge.f32.partialorder %v4951, 0.0
    %v4955 = vmul.f32 %v4951, 0.01
    %v4956 = vsel %vm4954, %v4951, %v4955
    %4957 = vst.msk [vmem:[#allocation17] sm:$0x3] %vm2198, %v4956
    // Predicated region
    $region114: #{tpu_custom_call.1} parent=1 // pred_check
      _
    $region115: #{tpu_custom_call.1} parent=1 // pred_check_branch
      %4959 = sbr.rel (0) target = $region117
    $region116: #{tpu_custom_call.1} parent=1 // pred_region
      %s4961 = ssub.s32 32, 32
      %4962 = vsyncadd [#allocation7], %s4961
      %s4964 = sshll.u32 [#allocation17], 4
      %s4965 = int_to_ptr.vmem [resolvable:$true] %s4964
      %4967 = dma.vmem_to_hbm [thread:$0]  %s4965, 32, %s14, [#allocation7]
    $region117: #{tpu_custom_call.1} parent=1 // pred_fallthru
      _
    // Predicated region
    $region118: #{tpu_custom_call.1} parent=1 // pred_check
      _
    $region119: #{tpu_custom_call.1} parent=1 // pred_check_branch
      %4969 = sbr.rel (0) target = $region121
    $region120: #{tpu_custom_call.1} parent=1 // pred_region
      %4970 = dma.done [#allocation7], 32
    $region121: #{tpu_custom_call.1} parent=1 // pred_fallthru
      _
    %4971 = vsyncpa [#allocation6], 1
    %4972 = vsyncpa [#allocation9], 1
    %4973 = vsyncpa [#allocation12], 1
    %4974 = vsyncpa [#allocation15], 1
    %4975 = vsyncpa [#allocation7], 1

</llo_original>
